<compile_context>
chip_gen: v7x
topology: tpu7x:2x2x1
jax: 0.10.0
libtpu: 0.0.40
codegen_flags: <defaults>
</compile_context>

<pallas_src>
import jax
import jax.numpy as jnp
from jax.experimental import pallas as pl
from jax.experimental.pallas import tpu as pltpu

F32 = jnp.float32


def _l_out(l_in, kernel_size, stride, padding):
    return (l_in + 2 * padding - kernel_size) // stride + 1


# ----------------------------------------------------------------------------
# Fused kernel builder (static dims closed over)
# ----------------------------------------------------------------------------
def _make_fused_kernel(*, B, W, P1, K1, S1, Lc1, Lp1, K2, P2, Lc2, T, H):

    def _sigmoid(z):
        # exp on the EUP + approximate reciprocal on the EUP (off the VPU path).
        return pl.reciprocal(1.0 + jnp.exp(-z), approx=True)

    def _gather(xpad_ref, b, k_taps, lc, stride):
        # Build the (lc, k_taps*C_in) im2col matrix from free ref slices.
        cols = []
        for k in range(k_taps):
            if stride == 1:
                cols.append(xpad_ref[b, k:k + lc, :])
            else:
                cols.append(xpad_ref[b, pl.ds(k, lc, stride), :])
        return jnp.concatenate(cols, axis=-1)

    def _maxpool(y, lp):
        # MaxPool1d(kernel=2, stride=2, padding=1) over rows of y=(Lc, C):
        # pooled[l] = max(y[2l-1], y[2l]) with implicit -inf boundaries.
        # Assembled as one dense (lp, C) value (no per-row stores).
        lc = y.shape[0]
        rows = []
        for l in range(lp):
            i0, i1 = 2 * l - 1, 2 * l
            if i0 < 0:
                rows.append(y[i1:i1 + 1, :])
            elif i1 >= lc:
                rows.append(y[i0:i0 + 1, :])
            else:
                rows.append(jnp.maximum(y[i0:i0 + 1, :], y[i1:i1 + 1, :]))
        return jnp.concatenate(rows, axis=0)

    def kernel(x_ref, w1_ref, w2_ref, weih_ref, wehh_ref, wdih_ref, wdhh_ref,
               wout_ref, bout_ref, wp1_ref, bp1_ref, wp2_ref, bp2_ref,
               proj_ref, rec_ref, xp1_sc, xp2_sc, hid_sc):
        # ---- conv_block1: Conv1d + ReLU + MaxPool (Dropout == identity) ----
        xp1_sc[...] = jnp.zeros(xp1_sc.shape, F32)
        xp1_sc[:, P1:P1 + W, :] = x_ref[...]
        xp2_sc[...] = jnp.zeros(xp2_sc.shape, F32)

        xg1 = jnp.concatenate(
            [_gather(xp1_sc, b, K1, Lc1, S1) for b in range(B)], axis=0)
        y1 = jnp.maximum(
            jnp.dot(xg1, w1_ref[...], preferred_element_type=F32), 0.0)
        for b in range(B):
            xp2_sc[b, P2:P2 + Lp1, :] = _maxpool(y1[b * Lc1:(b + 1) * Lc1, :], Lp1)

        # ---- conv_block2: Conv1d + ReLU + MaxPool ----
        xg2 = jnp.concatenate(
            [_gather(xp2_sc, b, K2, Lc2, 1) for b in range(B)], axis=0)
        y2 = jnp.maximum(
            jnp.dot(xg2, w2_ref[...], preferred_element_type=F32), 0.0)
        for b in range(B):
            hid_sc[b] = _maxpool(y2[b * Lc2:(b + 1) * Lc2, :], T)

        hid_t = [hid_sc[:, t, :] for t in range(T)]        # T x (B, C)
        hidden_flat = jnp.concatenate(hid_t, axis=-1)      # (B, T*C)

        wehh = wehh_ref[...]
        wdih = wdih_ref[...]
        wdhh = wdhh_ref[...]
        wout = wout_ref[...]
        bout = bout_ref[...]

        def lstm_cell(gates, c):
            i = _sigmoid(gates[:, 0 * H:1 * H])
            f = _sigmoid(gates[:, 1 * H:2 * H])
            g = jnp.tanh(gates[:, 2 * H:3 * H])
            o = _sigmoid(gates[:, 3 * H:4 * H])
            c_new = f * c + i * g
            return o * jnp.tanh(c_new), c_new

        # ---- encoder LSTM (zero init); input projection hoisted out ----
        x_tm = jnp.concatenate(hid_t, axis=0)              # (T*B, C) time-major
        xproj = jnp.dot(x_tm, weih_ref[...], preferred_element_type=F32)
        h = jnp.zeros((B, H), F32)
        c = jnp.zeros((B, H), F32)
        for t in range(T):
            gates = xproj[t * B:(t + 1) * B, :] + jnp.dot(
                h, wehh, preferred_element_type=F32)
            h, c = lstm_cell(gates, c)

        # ---- decoder rollout (eval branch: feeds back its reconstruction) ----
        outs = [None] * T
        dh, dc = h, c
        for t in reversed(range(T)):
            out_t = jnp.dot(dh, wout, preferred_element_type=F32) + bout
            outs[t] = out_t
            if t > 0:  # final decoder state is unused -> skip the dead step
                gates = (jnp.dot(out_t, wdih, preferred_element_type=F32)
                         + jnp.dot(dh, wdhh, preferred_element_type=F32))
                dh, dc = lstm_cell(gates, dc)
        output_flat = jnp.concatenate(outs, axis=-1)       # (B, T*C)

        # ---- projection head on the stacked (2B, F) batch (shared weights) ----
        z = jnp.concatenate([hidden_flat, output_flat], axis=0)
        z = jnp.maximum(
            jnp.dot(z, wp1_ref[...], preferred_element_type=F32) + bp1_ref[...],
            0.0)
        z = jnp.dot(z, wp2_ref[...], preferred_element_type=F32) + bp2_ref[...]
        proj_ref[...] = z[:B, :]
        rec_ref[...] = z[B:, :]

    return kernel


# ----------------------------------------------------------------------------
# Model
# ----------------------------------------------------------------------------
class COCARemoveBatchNorm1DPallas:
    def __init__(self, configs, key):
        self.cfg = configs
        Cin = configs.input_channels
        C = configs.final_out_channels
        H = configs.hidden_size
        K1 = configs.kernel_size
        S1 = configs.stride
        P = configs.project_channels
        # TODO(synk): multi-layer LSTM stacking not implemented; num_layers == 1.
        assert configs.num_layers == 1

        W = configs.window_size
        P1 = K1 // 2
        Lc1 = _l_out(W, K1, S1, P1)
        Lp1 = _l_out(Lc1, 2, 2, 1)
        K2, P2, C1 = 8, 4, 32
        Lc2 = _l_out(Lp1, K2, 1, P2)
        T = _l_out(Lc2, 2, 2, 1)
        F = C * T
        F2 = F // 2

        ks = jax.random.split(key, 12)
        n = lambda k, shape: jax.random.normal(k, shape, dtype=F32) * 0.1
        # PyTorch-layout parameters (deterministic synthetic init).
        self.w_conv1 = n(ks[0], (C1, Cin, K1))      # Conv1d(Cin, 32, K1), bias=False
        self.w_conv2 = n(ks[1], (C, C1, K2))        # Conv1d(32, C, 8), bias=False
        self.we_ih = n(ks[2], (4 * H, C))           # encoder weight_ih_l0 (bias=False)
        self.we_hh = n(ks[3], (4 * H, H))           # encoder weight_hh_l0
        self.wd_ih = n(ks[4], (4 * H, C))           # decoder weight_ih_l0
        self.wd_hh = n(ks[5], (4 * H, H))           # decoder weight_hh_l0
        self.w_out = n(ks[6], (C, H))               # output_layer weight
        self.b_out = n(ks[7], (C,))                 # output_layer bias
        self.w_p1 = n(ks[8], (F2, F))               # projection_head[0]
        self.b_p1 = n(ks[9], (F2,))
        self.w_p2 = n(ks[10], (P, F2))              # projection_head[2]
        self.b_p2 = n(ks[11], (P,))

        # Kernel-layout weights, precomputed once (hoisted out of the forward).
        self._w1f = jnp.transpose(self.w_conv1, (2, 1, 0)).reshape(K1 * Cin, C1)
        self._w2f = jnp.transpose(self.w_conv2, (2, 1, 0)).reshape(K2 * C1, C)
        self._weih = self.we_ih.T                   # (C, 4H), gate cols [i|f|g|o]
        self._wehh = self.we_hh.T                   # (H, 4H)
        self._wdih = self.wd_ih.T
        self._wdhh = self.wd_hh.T
        self._wout = self.w_out.T                   # (H, C)
        self._bout = self.b_out.reshape(1, -1)
        self._wp1 = self.w_p1.T                     # (F, F2)
        self._bp1 = self.b_p1.reshape(1, -1)
        self._wp2 = self.w_p2.T                     # (F2, P)
        self._bp2 = self.b_p2.reshape(1, -1)

        self._dims = dict(W=W, Cin=Cin, C1=C1, K1=K1, S1=S1, P1=P1, Lc1=Lc1,
                          Lp1=Lp1, K2=K2, P2=P2, Lc2=Lc2, T=T, C=C, H=H, P=P)
        self._fwd_cache = {}

    def _forward_fn(self, B):
        if B in self._fwd_cache:
            return self._fwd_cache[B]
        d = self._dims
        kernel = _make_fused_kernel(
            B=B, W=d["W"], P1=d["P1"], K1=d["K1"], S1=d["S1"], Lc1=d["Lc1"],
            Lp1=d["Lp1"], K2=d["K2"], P2=d["P2"], Lc2=d["Lc2"], T=d["T"],
            H=d["H"])
        call = pl.pallas_call(
            kernel,
            out_shape=(jax.ShapeDtypeStruct((B, d["P"]), F32),
                       jax.ShapeDtypeStruct((B, d["P"]), F32)),
            scratch_shapes=[
                pltpu.VMEM((B, d["W"] + 2 * d["P1"], d["Cin"]), F32),  # padded conv1 in
                pltpu.VMEM((B, d["Lp1"] + 2 * d["P2"], d["C1"]), F32),  # padded conv2 in
                pltpu.VMEM((B, d["T"], d["C"]), F32),                   # hidden (B,T,C)
            ],
        )

        @jax.jit
        def fwd(x_in):
            # x_in: (B, C_in, W) NCW -> channels-last (B, W, C_in)
            x = jnp.transpose(x_in.astype(F32), (0, 2, 1))
            return call(x, self._w1f, self._w2f, self._weih, self._wehh,
                        self._wdih, self._wdhh, self._wout, self._bout,
                        self._wp1, self._bp1, self._wp2, self._bp2)

        self._fwd_cache[B] = fwd
        return fwd

    def __call__(self, x_in):
        d = self._dims
        assert x_in.shape[1:] == (d["Cin"], d["W"])
        return self._forward_fn(x_in.shape[0])(x_in)


# ----------------------------------------------------------------------------
# Pure-JAX (XLA) reference with PyTorch semantics, for validation only.
# ----------------------------------------------------------------------------
def _reference_forward(model, x_in):
    cfg = model.cfg
    hp = jax.lax.Precision.HIGHEST
    x = x_in.astype(F32)

    def conv(x_ncw, w, stride, pad):
        return jax.lax.conv_general_dilated(
            x_ncw, w, window_strides=(stride,), padding=[(pad, pad)],
            dimension_numbers=("NCH", "OIH", "NCH"), precision=hp)

    def maxpool(x_ncw):
        return jax.lax.reduce_window(
            x_ncw, -jnp.inf, jax.lax.max, (1, 1, 2), (1, 1, 2),
            [(0, 0), (0, 0), (1, 1)])

    y = maxpool(jnp.maximum(conv(x, model.w_conv1, cfg.stride,
                                 cfg.kernel_size // 2), 0.0))
    y = maxpool(jnp.maximum(conv(y, model.w_conv2, 1, 4), 0.0))
    hidden = jnp.transpose(y, (0, 2, 1))            # (B, T, C)
    B, T, _ = hidden.shape
    H = cfg.hidden_size

    def lstm_step(x_t, h, c, w_ih, w_hh):
        g = (jnp.dot(x_t, w_ih.T, precision=hp)
             + jnp.dot(h, w_hh.T, precision=hp))
        i, f, gg, o = jnp.split(g, 4, axis=-1)
        c = jax.nn.sigmoid(f) * c + jax.nn.sigmoid(i) * jnp.tanh(gg)
        return jax.nn.sigmoid(o) * jnp.tanh(c), c

    h = jnp.zeros((B, H), F32)
    c = jnp.zeros((B, H), F32)
    for t in range(T):
        h, c = lstm_step(hidden[:, t, :], h, c, model.we_ih, model.we_hh)

    outs = [None] * T
    dh, dc = h, c
    for t in reversed(range(T)):
        o_t = jnp.dot(dh, model.w_out.T, precision=hp) + model.b_out
        outs[t] = o_t
        dh, dc = lstm_step(o_t, dh, dc, model.wd_ih, model.wd_hh)
    output = jnp.stack(outs, axis=1)                # (B, T, C)

    def proj(z):
        z = jnp.maximum(jnp.dot(z, model.w_p1.T, precision=hp) + model.b_p1, 0.0)
        return jnp.dot(z, model.w_p2.T, precision=hp) + model.b_p2

    return proj(hidden.reshape(B, -1)), proj(output.reshape(B, -1))


# ----------------------------------------------------------------------------
# Demo
# ----------------------------------------------------------------------------
if __name__ == "__main__":
    class Configs:
        input_channels = 4
        final_out_channels = 8
        features_len = 6          # unused by forward (self.project is unused)
        project_channels = 8
        hidden_size = 16
        window_size = 16
        num_layers = 1
        kernel_size = 4
        stride = 1
        dropout = 0.2             # eval mode -> identity

    cfg = Configs()
    key = jax.random.PRNGKey(0)
    kx, kp = jax.random.split(key)
    x_in = jax.random.normal(kx, (2, cfg.input_channels, cfg.window_size),
                             dtype=F32)

    model = COCARemoveBatchNorm1DPallas(cfg, kp)
    project, rec_project = model(x_in)
    jax.block_until_ready((project, rec_project))

    assert project.shape == (2, cfg.project_channels)
    assert rec_project.shape == (2, cfg.project_channels)
    assert bool(jnp.all(jnp.isfinite(project)))
    assert bool(jnp.all(jnp.isfinite(rec_project)))

    ref_p, ref_r = _reference_forward(model, x_in)
    assert bool(jnp.allclose(project, ref_p, rtol=2e-2, atol=2e-2)), \
        "project mismatch vs reference"
    assert bool(jnp.allclose(rec_project, ref_r, rtol=2e-2, atol=2e-2)), \
        "rec_project mismatch vs reference"

    print("KERNEL_OK")
</pallas_src>

<mosaic_0001>
module attributes {stable_mosaic.version = 11 : i64} {
  func.func @kernel(%arg0: memref<2x16x4xf32, #tpu.memory_space<vmem>>, %arg1: memref<16x32xf32, #tpu.memory_space<vmem>>, %arg2: memref<256x8xf32, #tpu.memory_space<vmem>>, %arg3: memref<8x64xf32, #tpu.memory_space<vmem>>, %arg4: memref<16x64xf32, #tpu.memory_space<vmem>>, %arg5: memref<8x64xf32, #tpu.memory_space<vmem>>, %arg6: memref<16x64xf32, #tpu.memory_space<vmem>>, %arg7: memref<16x8xf32, #tpu.memory_space<vmem>>, %arg8: memref<1x8xf32, #tpu.memory_space<vmem>>, %arg9: memref<48x24xf32, #tpu.memory_space<vmem>>, %arg10: memref<1x24xf32, #tpu.memory_space<vmem>>, %arg11: memref<24x8xf32, #tpu.memory_space<vmem>>, %arg12: memref<1x8xf32, #tpu.memory_space<vmem>>, %arg13: memref<2x8xf32, #tpu.memory_space<vmem>>, %arg14: memref<2x8xf32, #tpu.memory_space<vmem>>, %arg15: memref<2x20x4xf32, #tpu.memory_space<vmem>>, %arg16: memref<2x17x32xf32, #tpu.memory_space<vmem>>, %arg17: memref<2x6x8xf32, #tpu.memory_space<vmem>>) attributes {dimension_semantics = [], scalar_prefetch = 0 : i64, scratch_operands = 3 : i64, tpu.core_type = #tpu.core_type<tc>} {
    %cst = arith.constant 0.000000e+00 : f32
    %0 = vector.broadcast %cst : f32 to vector<2x20x4xf32>
    %c0 = arith.constant 0 : index
    %c0_0 = arith.constant 0 : index
    %c0_1 = arith.constant 0 : index
    %1 = vector.load %arg15[%c0, %c0_0, %c0_1] : memref<2x20x4xf32, #tpu.memory_space<vmem>>, vector<2x20x4xf32>
    tpu.vector_store %arg15[%c0, %c0_0, %c0_1], %0 {strides = array<i32>} : memref<2x20x4xf32, #tpu.memory_space<vmem>>, vector<2x20x4xf32>,
    %c0_2 = arith.constant 0 : index
    %c0_3 = arith.constant 0 : index
    %c0_4 = arith.constant 0 : index
    %2 = vector.load %arg0[%c0_2, %c0_3, %c0_4] : memref<2x16x4xf32, #tpu.memory_space<vmem>>, vector<2x16x4xf32>
    %c0_5 = arith.constant 0 : index
    %c2 = arith.constant 2 : index
    %c0_6 = arith.constant 0 : index
    %3 = vector.load %arg15[%c0_5, %c2, %c0_6] : memref<2x20x4xf32, #tpu.memory_space<vmem>>, vector<2x16x4xf32>
    tpu.vector_store %arg15[%c0_5, %c2, %c0_6], %2 {strides = array<i32>} : memref<2x20x4xf32, #tpu.memory_space<vmem>>, vector<2x16x4xf32>,
    %cst_7 = arith.constant 0.000000e+00 : f32
    %4 = vector.broadcast %cst_7 : f32 to vector<2x17x32xf32>
    %c0_8 = arith.constant 0 : index
    %c0_9 = arith.constant 0 : index
    %c0_10 = arith.constant 0 : index
    %5 = vector.load %arg16[%c0_8, %c0_9, %c0_10] : memref<2x17x32xf32, #tpu.memory_space<vmem>>, vector<2x17x32xf32>
    tpu.vector_store %arg16[%c0_8, %c0_9, %c0_10], %4 {strides = array<i32>} : memref<2x17x32xf32, #tpu.memory_space<vmem>>, vector<2x17x32xf32>,
    %c0_11 = arith.constant 0 : index
    %c0_12 = arith.constant 0 : index
    %c0_13 = arith.constant 0 : index
    %6 = vector.load %arg15[%c0_11, %c0_12, %c0_13] : memref<2x20x4xf32, #tpu.memory_space<vmem>>, vector<1x17x4xf32>
    %7 = vector.shape_cast %6 : vector<1x17x4xf32> to vector<17x4xf32>
    %c0_14 = arith.constant 0 : index
    %c1 = arith.constant 1 : index
    %c0_15 = arith.constant 0 : index
    %8 = vector.load %arg15[%c0_14, %c1, %c0_15] : memref<2x20x4xf32, #tpu.memory_space<vmem>>, vector<1x17x4xf32>
    %9 = vector.shape_cast %8 : vector<1x17x4xf32> to vector<17x4xf32>
    %c0_16 = arith.constant 0 : index
    %c2_17 = arith.constant 2 : index
    %c0_18 = arith.constant 0 : index
    %10 = vector.load %arg15[%c0_16, %c2_17, %c0_18] : memref<2x20x4xf32, #tpu.memory_space<vmem>>, vector<1x17x4xf32>
    %11 = vector.shape_cast %10 : vector<1x17x4xf32> to vector<17x4xf32>
    %c0_19 = arith.constant 0 : index
    %c3 = arith.constant 3 : index
    %c0_20 = arith.constant 0 : index
    %12 = vector.load %arg15[%c0_19, %c3, %c0_20] : memref<2x20x4xf32, #tpu.memory_space<vmem>>, vector<1x17x4xf32>
    %13 = vector.shape_cast %12 : vector<1x17x4xf32> to vector<17x4xf32>
    %14 = tpu.concatenate %7, %9, %11, %13 in 1 : vector<17x4xf32>, vector<17x4xf32>, vector<17x4xf32>, vector<17x4xf32> -> vector<17x16xf32>
    %c1_21 = arith.constant 1 : index
    %c0_22 = arith.constant 0 : index
    %c0_23 = arith.constant 0 : index
    %15 = vector.load %arg15[%c1_21, %c0_22, %c0_23] : memref<2x20x4xf32, #tpu.memory_space<vmem>>, vector<1x17x4xf32>
    %16 = vector.shape_cast %15 : vector<1x17x4xf32> to vector<17x4xf32>
    %c1_24 = arith.constant 1 : index
    %c1_25 = arith.constant 1 : index
    %c0_26 = arith.constant 0 : index
    %17 = vector.load %arg15[%c1_24, %c1_25, %c0_26] : memref<2x20x4xf32, #tpu.memory_space<vmem>>, vector<1x17x4xf32>
    %18 = vector.shape_cast %17 : vector<1x17x4xf32> to vector<17x4xf32>
    %c1_27 = arith.constant 1 : index
    %c2_28 = arith.constant 2 : index
    %c0_29 = arith.constant 0 : index
    %19 = vector.load %arg15[%c1_27, %c2_28, %c0_29] : memref<2x20x4xf32, #tpu.memory_space<vmem>>, vector<1x17x4xf32>
    %20 = vector.shape_cast %19 : vector<1x17x4xf32> to vector<17x4xf32>
    %c1_30 = arith.constant 1 : index
    %c3_31 = arith.constant 3 : index
    %c0_32 = arith.constant 0 : index
    %21 = vector.load %arg15[%c1_30, %c3_31, %c0_32] : memref<2x20x4xf32, #tpu.memory_space<vmem>>, vector<1x17x4xf32>
    %22 = vector.shape_cast %21 : vector<1x17x4xf32> to vector<17x4xf32>
    %23 = tpu.concatenate %16, %18, %20, %22 in 1 : vector<17x4xf32>, vector<17x4xf32>, vector<17x4xf32>, vector<17x4xf32> -> vector<17x16xf32>
    %24 = tpu.concatenate %14, %23 in 0 : vector<17x16xf32>, vector<17x16xf32> -> vector<34x16xf32>
    %c0_33 = arith.constant 0 : index
    %c0_34 = arith.constant 0 : index
    %25 = vector.load %arg1[%c0_33, %c0_34] : memref<16x32xf32, #tpu.memory_space<vmem>>, vector<16x32xf32>
    %cst_35 = arith.constant dense<0.000000e+00> : vector<34x32xf32>
    %26 = tpu.matmul %24, %25, %cst_35 {dimension_numbers = #tpu.dot_dimension_numbers<[1], [0], [0], [1], [0, 0, 1, 1], [], []>} : vector<34x16xf32>, vector<16x32xf32>, vector<34x32xf32> -> vector<34x32xf32>
    %cst_36 = arith.constant 0.000000e+00 : f32
    %27 = vector.broadcast %cst_36 : f32 to vector<34x32xf32>
    %28 = arith.maximumf %26, %27 : vector<34x32xf32>
    %29 = vector.extract_strided_slice %28 {offsets = [0, 0], sizes = [17, 32], strides = [1, 1]} : vector<34x32xf32> to vector<17x32xf32>
    %30 = vector.extract_strided_slice %29 {offsets = [0, 0], sizes = [1, 32], strides = [1, 1]} : vector<17x32xf32> to vector<1x32xf32>
    %31 = vector.extract_strided_slice %29 {offsets = [1, 0], sizes = [1, 32], strides = [1, 1]} : vector<17x32xf32> to vector<1x32xf32>
    %32 = vector.extract_strided_slice %29 {offsets = [2, 0], sizes = [1, 32], strides = [1, 1]} : vector<17x32xf32> to vector<1x32xf32>
    %33 = arith.maximumf %31, %32 : vector<1x32xf32>
    %34 = vector.extract_strided_slice %29 {offsets = [3, 0], sizes = [1, 32], strides = [1, 1]} : vector<17x32xf32> to vector<1x32xf32>
    %35 = vector.extract_strided_slice %29 {offsets = [4, 0], sizes = [1, 32], strides = [1, 1]} : vector<17x32xf32> to vector<1x32xf32>
    %36 = arith.maximumf %34, %35 : vector<1x32xf32>
    %37 = vector.extract_strided_slice %29 {offsets = [5, 0], sizes = [1, 32], strides = [1, 1]} : vector<17x32xf32> to vector<1x32xf32>
    %38 = vector.extract_strided_slice %29 {offsets = [6, 0], sizes = [1, 32], strides = [1, 1]} : vector<17x32xf32> to vector<1x32xf32>
    %39 = arith.maximumf %37, %38 : vector<1x32xf32>
    %40 = vector.extract_strided_slice %29 {offsets = [7, 0], sizes = [1, 32], strides = [1, 1]} : vector<17x32xf32> to vector<1x32xf32>
    %41 = vector.extract_strided_slice %29 {offsets = [8, 0], sizes = [1, 32], strides = [1, 1]} : vector<17x32xf32> to vector<1x32xf32>
    %42 = arith.maximumf %40, %41 : vector<1x32xf32>
    %43 = vector.extract_strided_slice %29 {offsets = [9, 0], sizes = [1, 32], strides = [1, 1]} : vector<17x32xf32> to vector<1x32xf32>
    %44 = vector.extract_strided_slice %29 {offsets = [10, 0], sizes = [1, 32], strides = [1, 1]} : vector<17x32xf32> to vector<1x32xf32>
    %45 = arith.maximumf %43, %44 : vector<1x32xf32>
    %46 = vector.extract_strided_slice %29 {offsets = [11, 0], sizes = [1, 32], strides = [1, 1]} : vector<17x32xf32> to vector<1x32xf32>
    %47 = vector.extract_strided_slice %29 {offsets = [12, 0], sizes = [1, 32], strides = [1, 1]} : vector<17x32xf32> to vector<1x32xf32>
    %48 = arith.maximumf %46, %47 : vector<1x32xf32>
    %49 = vector.extract_strided_slice %29 {offsets = [13, 0], sizes = [1, 32], strides = [1, 1]} : vector<17x32xf32> to vector<1x32xf32>
    %50 = vector.extract_strided_slice %29 {offsets = [14, 0], sizes = [1, 32], strides = [1, 1]} : vector<17x32xf32> to vector<1x32xf32>
    %51 = arith.maximumf %49, %50 : vector<1x32xf32>
    %52 = vector.extract_strided_slice %29 {offsets = [15, 0], sizes = [1, 32], strides = [1, 1]} : vector<17x32xf32> to vector<1x32xf32>
    %53 = vector.extract_strided_slice %29 {offsets = [16, 0], sizes = [1, 32], strides = [1, 1]} : vector<17x32xf32> to vector<1x32xf32>
    %54 = arith.maximumf %52, %53 : vector<1x32xf32>
    %55 = tpu.concatenate %30, %33, %36, %39, %42, %45, %48, %51, %54 in 0 : vector<1x32xf32>, vector<1x32xf32>, vector<1x32xf32>, vector<1x32xf32>, vector<1x32xf32>, vector<1x32xf32>, vector<1x32xf32>, vector<1x32xf32>, vector<1x32xf32> -> vector<9x32xf32>
    %c0_37 = arith.constant 0 : index
    %c4 = arith.constant 4 : index
    %c0_38 = arith.constant 0 : index
    %56 = vector.load %arg16[%c0_37, %c4, %c0_38] : memref<2x17x32xf32, #tpu.memory_space<vmem>>, vector<1x9x32xf32>
    %57 = vector.shape_cast %56 : vector<1x9x32xf32> to vector<9x32xf32>
    %58 = vector.shape_cast %55 : vector<9x32xf32> to vector<1x9x32xf32>
    tpu.vector_store %arg16[%c0_37, %c4, %c0_38], %58 {strides = array<i32>} : memref<2x17x32xf32, #tpu.memory_space<vmem>>, vector<1x9x32xf32>,
    %59 = vector.extract_strided_slice %28 {offsets = [17, 0], sizes = [17, 32], strides = [1, 1]} : vector<34x32xf32> to vector<17x32xf32>
    %60 = vector.extract_strided_slice %59 {offsets = [0, 0], sizes = [1, 32], strides = [1, 1]} : vector<17x32xf32> to vector<1x32xf32>
    %61 = vector.extract_strided_slice %59 {offsets = [1, 0], sizes = [1, 32], strides = [1, 1]} : vector<17x32xf32> to vector<1x32xf32>
    %62 = vector.extract_strided_slice %59 {offsets = [2, 0], sizes = [1, 32], strides = [1, 1]} : vector<17x32xf32> to vector<1x32xf32>
    %63 = arith.maximumf %61, %62 : vector<1x32xf32>
    %64 = vector.extract_strided_slice %59 {offsets = [3, 0], sizes = [1, 32], strides = [1, 1]} : vector<17x32xf32> to vector<1x32xf32>
    %65 = vector.extract_strided_slice %59 {offsets = [4, 0], sizes = [1, 32], strides = [1, 1]} : vector<17x32xf32> to vector<1x32xf32>
    %66 = arith.maximumf %64, %65 : vector<1x32xf32>
    %67 = vector.extract_strided_slice %59 {offsets = [5, 0], sizes = [1, 32], strides = [1, 1]} : vector<17x32xf32> to vector<1x32xf32>
    %68 = vector.extract_strided_slice %59 {offsets = [6, 0], sizes = [1, 32], strides = [1, 1]} : vector<17x32xf32> to vector<1x32xf32>
    %69 = arith.maximumf %67, %68 : vector<1x32xf32>
    %70 = vector.extract_strided_slice %59 {offsets = [7, 0], sizes = [1, 32], strides = [1, 1]} : vector<17x32xf32> to vector<1x32xf32>
    %71 = vector.extract_strided_slice %59 {offsets = [8, 0], sizes = [1, 32], strides = [1, 1]} : vector<17x32xf32> to vector<1x32xf32>
    %72 = arith.maximumf %70, %71 : vector<1x32xf32>
    %73 = vector.extract_strided_slice %59 {offsets = [9, 0], sizes = [1, 32], strides = [1, 1]} : vector<17x32xf32> to vector<1x32xf32>
    %74 = vector.extract_strided_slice %59 {offsets = [10, 0], sizes = [1, 32], strides = [1, 1]} : vector<17x32xf32> to vector<1x32xf32>
    %75 = arith.maximumf %73, %74 : vector<1x32xf32>
    %76 = vector.extract_strided_slice %59 {offsets = [11, 0], sizes = [1, 32], strides = [1, 1]} : vector<17x32xf32> to vector<1x32xf32>
    %77 = vector.extract_strided_slice %59 {offsets = [12, 0], sizes = [1, 32], strides = [1, 1]} : vector<17x32xf32> to vector<1x32xf32>
    %78 = arith.maximumf %76, %77 : vector<1x32xf32>
    %79 = vector.extract_strided_slice %59 {offsets = [13, 0], sizes = [1, 32], strides = [1, 1]} : vector<17x32xf32> to vector<1x32xf32>
    %80 = vector.extract_strided_slice %59 {offsets = [14, 0], sizes = [1, 32], strides = [1, 1]} : vector<17x32xf32> to vector<1x32xf32>
    %81 = arith.maximumf %79, %80 : vector<1x32xf32>
    %82 = vector.extract_strided_slice %59 {offsets = [15, 0], sizes = [1, 32], strides = [1, 1]} : vector<17x32xf32> to vector<1x32xf32>
    %83 = vector.extract_strided_slice %59 {offsets = [16, 0], sizes = [1, 32], strides = [1, 1]} : vector<17x32xf32> to vector<1x32xf32>
    %84 = arith.maximumf %82, %83 : vector<1x32xf32>
    %85 = tpu.concatenate %60, %63, %66, %69, %72, %75, %78, %81, %84 in 0 : vector<1x32xf32>, vector<1x32xf32>, vector<1x32xf32>, vector<1x32xf32>, vector<1x32xf32>, vector<1x32xf32>, vector<1x32xf32>, vector<1x32xf32>, vector<1x32xf32> -> vector<9x32xf32>
    %c1_39 = arith.constant 1 : index
    %c4_40 = arith.constant 4 : index
    %c0_41 = arith.constant 0 : index
    %86 = vector.load %arg16[%c1_39, %c4_40, %c0_41] : memref<2x17x32xf32, #tpu.memory_space<vmem>>, vector<1x9x32xf32>
    %87 = vector.shape_cast %86 : vector<1x9x32xf32> to vector<9x32xf32>
    %88 = vector.shape_cast %85 : vector<9x32xf32> to vector<1x9x32xf32>
    tpu.vector_store %arg16[%c1_39, %c4_40, %c0_41], %88 {strides = array<i32>} : memref<2x17x32xf32, #tpu.memory_space<vmem>>, vector<1x9x32xf32>,
    %c0_42 = arith.constant 0 : index
    %c0_43 = arith.constant 0 : index
    %c0_44 = arith.constant 0 : index
    %89 = vector.load %arg16[%c0_42, %c0_43, %c0_44] : memref<2x17x32xf32, #tpu.memory_space<vmem>>, vector<1x10x32xf32>
    %90 = vector.shape_cast %89 : vector<1x10x32xf32> to vector<10x32xf32>
    %c0_45 = arith.constant 0 : index
    %c1_46 = arith.constant 1 : index
    %c0_47 = arith.constant 0 : index
    %91 = vector.load %arg16[%c0_45, %c1_46, %c0_47] : memref<2x17x32xf32, #tpu.memory_space<vmem>>, vector<1x10x32xf32>
    %92 = vector.shape_cast %91 : vector<1x10x32xf32> to vector<10x32xf32>
    %c0_48 = arith.constant 0 : index
    %c2_49 = arith.constant 2 : index
    %c0_50 = arith.constant 0 : index
    %93 = vector.load %arg16[%c0_48, %c2_49, %c0_50] : memref<2x17x32xf32, #tpu.memory_space<vmem>>, vector<1x10x32xf32>
    %94 = vector.shape_cast %93 : vector<1x10x32xf32> to vector<10x32xf32>
    %c0_51 = arith.constant 0 : index
    %c3_52 = arith.constant 3 : index
    %c0_53 = arith.constant 0 : index
    %95 = vector.load %arg16[%c0_51, %c3_52, %c0_53] : memref<2x17x32xf32, #tpu.memory_space<vmem>>, vector<1x10x32xf32>
    %96 = vector.shape_cast %95 : vector<1x10x32xf32> to vector<10x32xf32>
    %c0_54 = arith.constant 0 : index
    %c4_55 = arith.constant 4 : index
    %c0_56 = arith.constant 0 : index
    %97 = vector.load %arg16[%c0_54, %c4_55, %c0_56] : memref<2x17x32xf32, #tpu.memory_space<vmem>>, vector<1x10x32xf32>
    %98 = vector.shape_cast %97 : vector<1x10x32xf32> to vector<10x32xf32>
    %c0_57 = arith.constant 0 : index
    %c5 = arith.constant 5 : index
    %c0_58 = arith.constant 0 : index
    %99 = vector.load %arg16[%c0_57, %c5, %c0_58] : memref<2x17x32xf32, #tpu.memory_space<vmem>>, vector<1x10x32xf32>
    %100 = vector.shape_cast %99 : vector<1x10x32xf32> to vector<10x32xf32>
    %c0_59 = arith.constant 0 : index
    %c6 = arith.constant 6 : index
    %c0_60 = arith.constant 0 : index
    %101 = vector.load %arg16[%c0_59, %c6, %c0_60] : memref<2x17x32xf32, #tpu.memory_space<vmem>>, vector<1x10x32xf32>
    %102 = vector.shape_cast %101 : vector<1x10x32xf32> to vector<10x32xf32>
    %c0_61 = arith.constant 0 : index
    %c7 = arith.constant 7 : index
    %c0_62 = arith.constant 0 : index
    %103 = vector.load %arg16[%c0_61, %c7, %c0_62] : memref<2x17x32xf32, #tpu.memory_space<vmem>>, vector<1x10x32xf32>
    %104 = vector.shape_cast %103 : vector<1x10x32xf32> to vector<10x32xf32>
    %105 = tpu.concatenate %90, %92, %94, %96, %98, %100, %102, %104 in 1 : vector<10x32xf32>, vector<10x32xf32>, vector<10x32xf32>, vector<10x32xf32>, vector<10x32xf32>, vector<10x32xf32>, vector<10x32xf32>, vector<10x32xf32> -> vector<10x256xf32>
    %c1_63 = arith.constant 1 : index
    %c0_64 = arith.constant 0 : index
    %c0_65 = arith.constant 0 : index
    %106 = vector.load %arg16[%c1_63, %c0_64, %c0_65] : memref<2x17x32xf32, #tpu.memory_space<vmem>>, vector<1x10x32xf32>
    %107 = vector.shape_cast %106 : vector<1x10x32xf32> to vector<10x32xf32>
    %c1_66 = arith.constant 1 : index
    %c1_67 = arith.constant 1 : index
    %c0_68 = arith.constant 0 : index
    %108 = vector.load %arg16[%c1_66, %c1_67, %c0_68] : memref<2x17x32xf32, #tpu.memory_space<vmem>>, vector<1x10x32xf32>
    %109 = vector.shape_cast %108 : vector<1x10x32xf32> to vector<10x32xf32>
    %c1_69 = arith.constant 1 : index
    %c2_70 = arith.constant 2 : index
    %c0_71 = arith.constant 0 : index
    %110 = vector.load %arg16[%c1_69, %c2_70, %c0_71] : memref<2x17x32xf32, #tpu.memory_space<vmem>>, vector<1x10x32xf32>
    %111 = vector.shape_cast %110 : vector<1x10x32xf32> to vector<10x32xf32>
    %c1_72 = arith.constant 1 : index
    %c3_73 = arith.constant 3 : index
    %c0_74 = arith.constant 0 : index
    %112 = vector.load %arg16[%c1_72, %c3_73, %c0_74] : memref<2x17x32xf32, #tpu.memory_space<vmem>>, vector<1x10x32xf32>
    %113 = vector.shape_cast %112 : vector<1x10x32xf32> to vector<10x32xf32>
    %c1_75 = arith.constant 1 : index
    %c4_76 = arith.constant 4 : index
    %c0_77 = arith.constant 0 : index
    %114 = vector.load %arg16[%c1_75, %c4_76, %c0_77] : memref<2x17x32xf32, #tpu.memory_space<vmem>>, vector<1x10x32xf32>
    %115 = vector.shape_cast %114 : vector<1x10x32xf32> to vector<10x32xf32>
    %c1_78 = arith.constant 1 : index
    %c5_79 = arith.constant 5 : index
    %c0_80 = arith.constant 0 : index
    %116 = vector.load %arg16[%c1_78, %c5_79, %c0_80] : memref<2x17x32xf32, #tpu.memory_space<vmem>>, vector<1x10x32xf32>
    %117 = vector.shape_cast %116 : vector<1x10x32xf32> to vector<10x32xf32>
    %c1_81 = arith.constant 1 : index
    %c6_82 = arith.constant 6 : index
    %c0_83 = arith.constant 0 : index
    %118 = vector.load %arg16[%c1_81, %c6_82, %c0_83] : memref<2x17x32xf32, #tpu.memory_space<vmem>>, vector<1x10x32xf32>
    %119 = vector.shape_cast %118 : vector<1x10x32xf32> to vector<10x32xf32>
    %c1_84 = arith.constant 1 : index
    %c7_85 = arith.constant 7 : index
    %c0_86 = arith.constant 0 : index
    %120 = vector.load %arg16[%c1_84, %c7_85, %c0_86] : memref<2x17x32xf32, #tpu.memory_space<vmem>>, vector<1x10x32xf32>
    %121 = vector.shape_cast %120 : vector<1x10x32xf32> to vector<10x32xf32>
    %122 = tpu.concatenate %107, %109, %111, %113, %115, %117, %119, %121 in 1 : vector<10x32xf32>, vector<10x32xf32>, vector<10x32xf32>, vector<10x32xf32>, vector<10x32xf32>, vector<10x32xf32>, vector<10x32xf32>, vector<10x32xf32> -> vector<10x256xf32>
    %123 = tpu.concatenate %105, %122 in 0 : vector<10x256xf32>, vector<10x256xf32> -> vector<20x256xf32>
    %c0_87 = arith.constant 0 : index
    %c0_88 = arith.constant 0 : index
    %124 = vector.load %arg2[%c0_87, %c0_88] : memref<256x8xf32, #tpu.memory_space<vmem>>, vector<256x8xf32>
    %cst_89 = arith.constant dense<0.000000e+00> : vector<20x8xf32>
    %125 = tpu.matmul %123, %124, %cst_89 {dimension_numbers = #tpu.dot_dimension_numbers<[1], [0], [0], [1], [0, 0, 1, 1], [], []>} : vector<20x256xf32>, vector<256x8xf32>, vector<20x8xf32> -> vector<20x8xf32>
    %cst_90 = arith.constant 0.000000e+00 : f32
    %126 = vector.broadcast %cst_90 : f32 to vector<20x8xf32>
    %127 = arith.maximumf %125, %126 : vector<20x8xf32>
    %128 = vector.extract_strided_slice %127 {offsets = [0, 0], sizes = [10, 8], strides = [1, 1]} : vector<20x8xf32> to vector<10x8xf32>
    %129 = vector.extract_strided_slice %128 {offsets = [0, 0], sizes = [1, 8], strides = [1, 1]} : vector<10x8xf32> to vector<1x8xf32>
    %130 = vector.extract_strided_slice %128 {offsets = [1, 0], sizes = [1, 8], strides = [1, 1]} : vector<10x8xf32> to vector<1x8xf32>
    %131 = vector.extract_strided_slice %128 {offsets = [2, 0], sizes = [1, 8], strides = [1, 1]} : vector<10x8xf32> to vector<1x8xf32>
    %132 = arith.maximumf %130, %131 : vector<1x8xf32>
    %133 = vector.extract_strided_slice %128 {offsets = [3, 0], sizes = [1, 8], strides = [1, 1]} : vector<10x8xf32> to vector<1x8xf32>
    %134 = vector.extract_strided_slice %128 {offsets = [4, 0], sizes = [1, 8], strides = [1, 1]} : vector<10x8xf32> to vector<1x8xf32>
    %135 = arith.maximumf %133, %134 : vector<1x8xf32>
    %136 = vector.extract_strided_slice %128 {offsets = [5, 0], sizes = [1, 8], strides = [1, 1]} : vector<10x8xf32> to vector<1x8xf32>
    %137 = vector.extract_strided_slice %128 {offsets = [6, 0], sizes = [1, 8], strides = [1, 1]} : vector<10x8xf32> to vector<1x8xf32>
    %138 = arith.maximumf %136, %137 : vector<1x8xf32>
    %139 = vector.extract_strided_slice %128 {offsets = [7, 0], sizes = [1, 8], strides = [1, 1]} : vector<10x8xf32> to vector<1x8xf32>
    %140 = vector.extract_strided_slice %128 {offsets = [8, 0], sizes = [1, 8], strides = [1, 1]} : vector<10x8xf32> to vector<1x8xf32>
    %141 = arith.maximumf %139, %140 : vector<1x8xf32>
    %142 = vector.extract_strided_slice %128 {offsets = [9, 0], sizes = [1, 8], strides = [1, 1]} : vector<10x8xf32> to vector<1x8xf32>
    %143 = tpu.concatenate %129, %132, %135, %138, %141, %142 in 0 : vector<1x8xf32>, vector<1x8xf32>, vector<1x8xf32>, vector<1x8xf32>, vector<1x8xf32>, vector<1x8xf32> -> vector<6x8xf32>
    %c0_91 = arith.constant 0 : index
    %c0_92 = arith.constant 0 : index
    %c0_93 = arith.constant 0 : index
    %144 = vector.load %arg17[%c0_91, %c0_92, %c0_93] : memref<2x6x8xf32, #tpu.memory_space<vmem>>, vector<1x6x8xf32>
    %145 = vector.shape_cast %144 : vector<1x6x8xf32> to vector<6x8xf32>
    %146 = vector.shape_cast %143 : vector<6x8xf32> to vector<1x6x8xf32>
    tpu.vector_store %arg17[%c0_91, %c0_92, %c0_93], %146 {strides = array<i32>} : memref<2x6x8xf32, #tpu.memory_space<vmem>>, vector<1x6x8xf32>,
    %147 = vector.extract_strided_slice %127 {offsets = [10, 0], sizes = [10, 8], strides = [1, 1]} : vector<20x8xf32> to vector<10x8xf32>
    %148 = vector.extract_strided_slice %147 {offsets = [0, 0], sizes = [1, 8], strides = [1, 1]} : vector<10x8xf32> to vector<1x8xf32>
    %149 = vector.extract_strided_slice %147 {offsets = [1, 0], sizes = [1, 8], strides = [1, 1]} : vector<10x8xf32> to vector<1x8xf32>
    %150 = vector.extract_strided_slice %147 {offsets = [2, 0], sizes = [1, 8], strides = [1, 1]} : vector<10x8xf32> to vector<1x8xf32>
    %151 = arith.maximumf %149, %150 : vector<1x8xf32>
    %152 = vector.extract_strided_slice %147 {offsets = [3, 0], sizes = [1, 8], strides = [1, 1]} : vector<10x8xf32> to vector<1x8xf32>
    %153 = vector.extract_strided_slice %147 {offsets = [4, 0], sizes = [1, 8], strides = [1, 1]} : vector<10x8xf32> to vector<1x8xf32>
    %154 = arith.maximumf %152, %153 : vector<1x8xf32>
    %155 = vector.extract_strided_slice %147 {offsets = [5, 0], sizes = [1, 8], strides = [1, 1]} : vector<10x8xf32> to vector<1x8xf32>
    %156 = vector.extract_strided_slice %147 {offsets = [6, 0], sizes = [1, 8], strides = [1, 1]} : vector<10x8xf32> to vector<1x8xf32>
    %157 = arith.maximumf %155, %156 : vector<1x8xf32>
    %158 = vector.extract_strided_slice %147 {offsets = [7, 0], sizes = [1, 8], strides = [1, 1]} : vector<10x8xf32> to vector<1x8xf32>
    %159 = vector.extract_strided_slice %147 {offsets = [8, 0], sizes = [1, 8], strides = [1, 1]} : vector<10x8xf32> to vector<1x8xf32>
    %160 = arith.maximumf %158, %159 : vector<1x8xf32>
    %161 = vector.extract_strided_slice %147 {offsets = [9, 0], sizes = [1, 8], strides = [1, 1]} : vector<10x8xf32> to vector<1x8xf32>
    %162 = tpu.concatenate %148, %151, %154, %157, %160, %161 in 0 : vector<1x8xf32>, vector<1x8xf32>, vector<1x8xf32>, vector<1x8xf32>, vector<1x8xf32>, vector<1x8xf32> -> vector<6x8xf32>
    %c1_94 = arith.constant 1 : index
    %c0_95 = arith.constant 0 : index
    %c0_96 = arith.constant 0 : index
    %163 = vector.load %arg17[%c1_94, %c0_95, %c0_96] : memref<2x6x8xf32, #tpu.memory_space<vmem>>, vector<1x6x8xf32>
    %164 = vector.shape_cast %163 : vector<1x6x8xf32> to vector<6x8xf32>
    %165 = vector.shape_cast %162 : vector<6x8xf32> to vector<1x6x8xf32>
    tpu.vector_store %arg17[%c1_94, %c0_95, %c0_96], %165 {strides = array<i32>} : memref<2x6x8xf32, #tpu.memory_space<vmem>>, vector<1x6x8xf32>,
    %c0_97 = arith.constant 0 : index
    %c0_98 = arith.constant 0 : index
    %c0_99 = arith.constant 0 : index
    %166 = vector.load %arg17[%c0_97, %c0_98, %c0_99] : memref<2x6x8xf32, #tpu.memory_space<vmem>>, vector<2x1x8xf32>
    %167 = vector.shape_cast %166 : vector<2x1x8xf32> to vector<2x8xf32>
    %c0_100 = arith.constant 0 : index
    %c1_101 = arith.constant 1 : index
    %c0_102 = arith.constant 0 : index
    %168 = vector.load %arg17[%c0_100, %c1_101, %c0_102] : memref<2x6x8xf32, #tpu.memory_space<vmem>>, vector<2x1x8xf32>
    %169 = vector.shape_cast %168 : vector<2x1x8xf32> to vector<2x8xf32>
    %c0_103 = arith.constant 0 : index
    %c2_104 = arith.constant 2 : index
    %c0_105 = arith.constant 0 : index
    %170 = vector.load %arg17[%c0_103, %c2_104, %c0_105] : memref<2x6x8xf32, #tpu.memory_space<vmem>>, vector<2x1x8xf32>
    %171 = vector.shape_cast %170 : vector<2x1x8xf32> to vector<2x8xf32>
    %c0_106 = arith.constant 0 : index
    %c3_107 = arith.constant 3 : index
    %c0_108 = arith.constant 0 : index
    %172 = vector.load %arg17[%c0_106, %c3_107, %c0_108] : memref<2x6x8xf32, #tpu.memory_space<vmem>>, vector<2x1x8xf32>
    %173 = vector.shape_cast %172 : vector<2x1x8xf32> to vector<2x8xf32>
    %c0_109 = arith.constant 0 : index
    %c4_110 = arith.constant 4 : index
    %c0_111 = arith.constant 0 : index
    %174 = vector.load %arg17[%c0_109, %c4_110, %c0_111] : memref<2x6x8xf32, #tpu.memory_space<vmem>>, vector<2x1x8xf32>
    %175 = vector.shape_cast %174 : vector<2x1x8xf32> to vector<2x8xf32>
    %c0_112 = arith.constant 0 : index
    %c5_113 = arith.constant 5 : index
    %c0_114 = arith.constant 0 : index
    %176 = vector.load %arg17[%c0_112, %c5_113, %c0_114] : memref<2x6x8xf32, #tpu.memory_space<vmem>>, vector<2x1x8xf32>
    %177 = vector.shape_cast %176 : vector<2x1x8xf32> to vector<2x8xf32>
    %178 = tpu.concatenate %167, %169, %171, %173, %175, %177 in 1 : vector<2x8xf32>, vector<2x8xf32>, vector<2x8xf32>, vector<2x8xf32>, vector<2x8xf32>, vector<2x8xf32> -> vector<2x48xf32>
    %c0_115 = arith.constant 0 : index
    %c0_116 = arith.constant 0 : index
    %179 = vector.load %arg4[%c0_115, %c0_116] : memref<16x64xf32, #tpu.memory_space<vmem>>, vector<16x64xf32>
    %c0_117 = arith.constant 0 : index
    %c0_118 = arith.constant 0 : index
    %180 = vector.load %arg5[%c0_117, %c0_118] : memref<8x64xf32, #tpu.memory_space<vmem>>, vector<8x64xf32>
    %c0_119 = arith.constant 0 : index
    %c0_120 = arith.constant 0 : index
    %181 = vector.load %arg6[%c0_119, %c0_120] : memref<16x64xf32, #tpu.memory_space<vmem>>, vector<16x64xf32>
    %c0_121 = arith.constant 0 : index
    %c0_122 = arith.constant 0 : index
    %182 = vector.load %arg7[%c0_121, %c0_122] : memref<16x8xf32, #tpu.memory_space<vmem>>, vector<16x8xf32>
    %c0_123 = arith.constant 0 : index
    %c0_124 = arith.constant 0 : index
    %183 = vector.load %arg8[%c0_123, %c0_124] : memref<1x8xf32, #tpu.memory_space<vmem>>, vector<1x8xf32>
    %184 = tpu.concatenate %167, %169, %171, %173, %175, %177 in 0 : vector<2x8xf32>, vector<2x8xf32>, vector<2x8xf32>, vector<2x8xf32>, vector<2x8xf32>, vector<2x8xf32> -> vector<12x8xf32>
    %c0_125 = arith.constant 0 : index
    %c0_126 = arith.constant 0 : index
    %185 = vector.load %arg3[%c0_125, %c0_126] : memref<8x64xf32, #tpu.memory_space<vmem>>, vector<8x64xf32>
    %cst_127 = arith.constant dense<0.000000e+00> : vector<12x64xf32>
    %186 = tpu.matmul %184, %185, %cst_127 {dimension_numbers = #tpu.dot_dimension_numbers<[1], [0], [0], [1], [0, 0, 1, 1], [], []>} : vector<12x8xf32>, vector<8x64xf32>, vector<12x64xf32> -> vector<12x64xf32>
    %cst_128 = arith.constant 0.000000e+00 : f32
    %187 = vector.broadcast %cst_128 : f32 to vector<2x16xf32>
    %cst_129 = arith.constant 0.000000e+00 : f32
    %188 = vector.broadcast %cst_129 : f32 to vector<2x16xf32>
    %189 = vector.extract_strided_slice %186 {offsets = [0, 0], sizes = [2, 64], strides = [1, 1]} : vector<12x64xf32> to vector<2x64xf32>
    %cst_130 = arith.constant dense<0.000000e+00> : vector<2x64xf32>
    %190 = tpu.matmul %187, %179, %cst_130 {dimension_numbers = #tpu.dot_dimension_numbers<[1], [0], [0], [1], [0, 0, 1, 1], [], []>} : vector<2x16xf32>, vector<16x64xf32>, vector<2x64xf32> -> vector<2x64xf32>
    %191 = arith.addf %189, %190 : vector<2x64xf32>
    %192 = vector.extract_strided_slice %191 {offsets = [0, 0], sizes = [2, 16], strides = [1, 1]} : vector<2x64xf32> to vector<2x16xf32>
    %cst_131 = arith.constant 0.000000e+00 : f32
    %193 = vector.broadcast %cst_131 : f32 to vector<2x16xf32>
    %194 = arith.subf %193, %192 : vector<2x16xf32>
    %195 = math.exp %194 : vector<2x16xf32>
    %cst_132 = arith.constant 1.000000e+00 : f32
    %196 = vector.broadcast %cst_132 : f32 to vector<2x16xf32>
    %197 = arith.addf %196, %195 : vector<2x16xf32>
    %198 = tpu.reciprocal %197 {approx = true} : vector<2x16xf32> -> vector<2x16xf32>
    %199 = vector.extract_strided_slice %191 {offsets = [0, 16], sizes = [2, 16], strides = [1, 1]} : vector<2x64xf32> to vector<2x16xf32>
    %cst_133 = arith.constant 0.000000e+00 : f32
    %200 = vector.broadcast %cst_133 : f32 to vector<2x16xf32>
    %201 = arith.subf %200, %199 : vector<2x16xf32>
    %202 = math.exp %201 : vector<2x16xf32>
    %cst_134 = arith.constant 1.000000e+00 : f32
    %203 = vector.broadcast %cst_134 : f32 to vector<2x16xf32>
    %204 = arith.addf %203, %202 : vector<2x16xf32>
    %205 = tpu.reciprocal %204 {approx = true} : vector<2x16xf32> -> vector<2x16xf32>
    %206 = vector.extract_strided_slice %191 {offsets = [0, 32], sizes = [2, 16], strides = [1, 1]} : vector<2x64xf32> to vector<2x16xf32>
    %207 = math.tanh %206 : vector<2x16xf32>
    %208 = vector.extract_strided_slice %191 {offsets = [0, 48], sizes = [2, 16], strides = [1, 1]} : vector<2x64xf32> to vector<2x16xf32>
    %cst_135 = arith.constant 0.000000e+00 : f32
    %209 = vector.broadcast %cst_135 : f32 to vector<2x16xf32>
    %210 = arith.subf %209, %208 : vector<2x16xf32>
    %211 = math.exp %210 : vector<2x16xf32>
    %cst_136 = arith.constant 1.000000e+00 : f32
    %212 = vector.broadcast %cst_136 : f32 to vector<2x16xf32>
    %213 = arith.addf %212, %211 : vector<2x16xf32>
    %214 = tpu.reciprocal %213 {approx = true} : vector<2x16xf32> -> vector<2x16xf32>
    %215 = arith.mulf %205, %188 : vector<2x16xf32>
    %216 = arith.mulf %198, %207 : vector<2x16xf32>
    %217 = arith.addf %215, %216 : vector<2x16xf32>
    %218 = math.tanh %217 : vector<2x16xf32>
    %219 = arith.mulf %214, %218 : vector<2x16xf32>
    %220 = vector.extract_strided_slice %186 {offsets = [2, 0], sizes = [2, 64], strides = [1, 1]} : vector<12x64xf32> to vector<2x64xf32>
    %cst_137 = arith.constant dense<0.000000e+00> : vector<2x64xf32>
    %221 = tpu.matmul %219, %179, %cst_137 {dimension_numbers = #tpu.dot_dimension_numbers<[1], [0], [0], [1], [0, 0, 1, 1], [], []>} : vector<2x16xf32>, vector<16x64xf32>, vector<2x64xf32> -> vector<2x64xf32>
    %222 = arith.addf %220, %221 : vector<2x64xf32>
    %223 = vector.extract_strided_slice %222 {offsets = [0, 0], sizes = [2, 16], strides = [1, 1]} : vector<2x64xf32> to vector<2x16xf32>
    %cst_138 = arith.constant 0.000000e+00 : f32
    %224 = vector.broadcast %cst_138 : f32 to vector<2x16xf32>
    %225 = arith.subf %224, %223 : vector<2x16xf32>
    %226 = math.exp %225 : vector<2x16xf32>
    %cst_139 = arith.constant 1.000000e+00 : f32
    %227 = vector.broadcast %cst_139 : f32 to vector<2x16xf32>
    %228 = arith.addf %227, %226 : vector<2x16xf32>
    %229 = tpu.reciprocal %228 {approx = true} : vector<2x16xf32> -> vector<2x16xf32>
    %230 = vector.extract_strided_slice %222 {offsets = [0, 16], sizes = [2, 16], strides = [1, 1]} : vector<2x64xf32> to vector<2x16xf32>
    %cst_140 = arith.constant 0.000000e+00 : f32
    %231 = vector.broadcast %cst_140 : f32 to vector<2x16xf32>
    %232 = arith.subf %231, %230 : vector<2x16xf32>
    %233 = math.exp %232 : vector<2x16xf32>
    %cst_141 = arith.constant 1.000000e+00 : f32
    %234 = vector.broadcast %cst_141 : f32 to vector<2x16xf32>
    %235 = arith.addf %234, %233 : vector<2x16xf32>
    %236 = tpu.reciprocal %235 {approx = true} : vector<2x16xf32> -> vector<2x16xf32>
    %237 = vector.extract_strided_slice %222 {offsets = [0, 32], sizes = [2, 16], strides = [1, 1]} : vector<2x64xf32> to vector<2x16xf32>
    %238 = math.tanh %237 : vector<2x16xf32>
    %239 = vector.extract_strided_slice %222 {offsets = [0, 48], sizes = [2, 16], strides = [1, 1]} : vector<2x64xf32> to vector<2x16xf32>
    %cst_142 = arith.constant 0.000000e+00 : f32
    %240 = vector.broadcast %cst_142 : f32 to vector<2x16xf32>
    %241 = arith.subf %240, %239 : vector<2x16xf32>
    %242 = math.exp %241 : vector<2x16xf32>
    %cst_143 = arith.constant 1.000000e+00 : f32
    %243 = vector.broadcast %cst_143 : f32 to vector<2x16xf32>
    %244 = arith.addf %243, %242 : vector<2x16xf32>
    %245 = tpu.reciprocal %244 {approx = true} : vector<2x16xf32> -> vector<2x16xf32>
    %246 = arith.mulf %236, %217 : vector<2x16xf32>
    %247 = arith.mulf %229, %238 : vector<2x16xf32>
    %248 = arith.addf %246, %247 : vector<2x16xf32>
    %249 = math.tanh %248 : vector<2x16xf32>
    %250 = arith.mulf %245, %249 : vector<2x16xf32>
    %251 = vector.extract_strided_slice %186 {offsets = [4, 0], sizes = [2, 64], strides = [1, 1]} : vector<12x64xf32> to vector<2x64xf32>
    %cst_144 = arith.constant dense<0.000000e+00> : vector<2x64xf32>
    %252 = tpu.matmul %250, %179, %cst_144 {dimension_numbers = #tpu.dot_dimension_numbers<[1], [0], [0], [1], [0, 0, 1, 1], [], []>} : vector<2x16xf32>, vector<16x64xf32>, vector<2x64xf32> -> vector<2x64xf32>
    %253 = arith.addf %251, %252 : vector<2x64xf32>
    %254 = vector.extract_strided_slice %253 {offsets = [0, 0], sizes = [2, 16], strides = [1, 1]} : vector<2x64xf32> to vector<2x16xf32>
    %cst_145 = arith.constant 0.000000e+00 : f32
    %255 = vector.broadcast %cst_145 : f32 to vector<2x16xf32>
    %256 = arith.subf %255, %254 : vector<2x16xf32>
    %257 = math.exp %256 : vector<2x16xf32>
    %cst_146 = arith.constant 1.000000e+00 : f32
    %258 = vector.broadcast %cst_146 : f32 to vector<2x16xf32>
    %259 = arith.addf %258, %257 : vector<2x16xf32>
    %260 = tpu.reciprocal %259 {approx = true} : vector<2x16xf32> -> vector<2x16xf32>
    %261 = vector.extract_strided_slice %253 {offsets = [0, 16], sizes = [2, 16], strides = [1, 1]} : vector<2x64xf32> to vector<2x16xf32>
    %cst_147 = arith.constant 0.000000e+00 : f32
    %262 = vector.broadcast %cst_147 : f32 to vector<2x16xf32>
    %263 = arith.subf %262, %261 : vector<2x16xf32>
    %264 = math.exp %263 : vector<2x16xf32>
    %cst_148 = arith.constant 1.000000e+00 : f32
    %265 = vector.broadcast %cst_148 : f32 to vector<2x16xf32>
    %266 = arith.addf %265, %264 : vector<2x16xf32>
    %267 = tpu.reciprocal %266 {approx = true} : vector<2x16xf32> -> vector<2x16xf32>
    %268 = vector.extract_strided_slice %253 {offsets = [0, 32], sizes = [2, 16], strides = [1, 1]} : vector<2x64xf32> to vector<2x16xf32>
    %269 = math.tanh %268 : vector<2x16xf32>
    %270 = vector.extract_strided_slice %253 {offsets = [0, 48], sizes = [2, 16], strides = [1, 1]} : vector<2x64xf32> to vector<2x16xf32>
    %cst_149 = arith.constant 0.000000e+00 : f32
    %271 = vector.broadcast %cst_149 : f32 to vector<2x16xf32>
    %272 = arith.subf %271, %270 : vector<2x16xf32>
    %273 = math.exp %272 : vector<2x16xf32>
    %cst_150 = arith.constant 1.000000e+00 : f32
    %274 = vector.broadcast %cst_150 : f32 to vector<2x16xf32>
    %275 = arith.addf %274, %273 : vector<2x16xf32>
    %276 = tpu.reciprocal %275 {approx = true} : vector<2x16xf32> -> vector<2x16xf32>
    %277 = arith.mulf %267, %248 : vector<2x16xf32>
    %278 = arith.mulf %260, %269 : vector<2x16xf32>
    %279 = arith.addf %277, %278 : vector<2x16xf32>
    %280 = math.tanh %279 : vector<2x16xf32>
    %281 = arith.mulf %276, %280 : vector<2x16xf32>
    %282 = vector.extract_strided_slice %186 {offsets = [6, 0], sizes = [2, 64], strides = [1, 1]} : vector<12x64xf32> to vector<2x64xf32>
    %cst_151 = arith.constant dense<0.000000e+00> : vector<2x64xf32>
    %283 = tpu.matmul %281, %179, %cst_151 {dimension_numbers = #tpu.dot_dimension_numbers<[1], [0], [0], [1], [0, 0, 1, 1], [], []>} : vector<2x16xf32>, vector<16x64xf32>, vector<2x64xf32> -> vector<2x64xf32>
    %284 = arith.addf %282, %283 : vector<2x64xf32>
    %285 = vector.extract_strided_slice %284 {offsets = [0, 0], sizes = [2, 16], strides = [1, 1]} : vector<2x64xf32> to vector<2x16xf32>
    %cst_152 = arith.constant 0.000000e+00 : f32
    %286 = vector.broadcast %cst_152 : f32 to vector<2x16xf32>
    %287 = arith.subf %286, %285 : vector<2x16xf32>
    %288 = math.exp %287 : vector<2x16xf32>
    %cst_153 = arith.constant 1.000000e+00 : f32
    %289 = vector.broadcast %cst_153 : f32 to vector<2x16xf32>
    %290 = arith.addf %289, %288 : vector<2x16xf32>
    %291 = tpu.reciprocal %290 {approx = true} : vector<2x16xf32> -> vector<2x16xf32>
    %292 = vector.extract_strided_slice %284 {offsets = [0, 16], sizes = [2, 16], strides = [1, 1]} : vector<2x64xf32> to vector<2x16xf32>
    %cst_154 = arith.constant 0.000000e+00 : f32
    %293 = vector.broadcast %cst_154 : f32 to vector<2x16xf32>
    %294 = arith.subf %293, %292 : vector<2x16xf32>
    %295 = math.exp %294 : vector<2x16xf32>
    %cst_155 = arith.constant 1.000000e+00 : f32
    %296 = vector.broadcast %cst_155 : f32 to vector<2x16xf32>
    %297 = arith.addf %296, %295 : vector<2x16xf32>
    %298 = tpu.reciprocal %297 {approx = true} : vector<2x16xf32> -> vector<2x16xf32>
    %299 = vector.extract_strided_slice %284 {offsets = [0, 32], sizes = [2, 16], strides = [1, 1]} : vector<2x64xf32> to vector<2x16xf32>
    %300 = math.tanh %299 : vector<2x16xf32>
    %301 = vector.extract_strided_slice %284 {offsets = [0, 48], sizes = [2, 16], strides = [1, 1]} : vector<2x64xf32> to vector<2x16xf32>
    %cst_156 = arith.constant 0.000000e+00 : f32
    %302 = vector.broadcast %cst_156 : f32 to vector<2x16xf32>
    %303 = arith.subf %302, %301 : vector<2x16xf32>
    %304 = math.exp %303 : vector<2x16xf32>
    %cst_157 = arith.constant 1.000000e+00 : f32
    %305 = vector.broadcast %cst_157 : f32 to vector<2x16xf32>
    %306 = arith.addf %305, %304 : vector<2x16xf32>
    %307 = tpu.reciprocal %306 {approx = true} : vector<2x16xf32> -> vector<2x16xf32>
    %308 = arith.mulf %298, %279 : vector<2x16xf32>
    %309 = arith.mulf %291, %300 : vector<2x16xf32>
    %310 = arith.addf %308, %309 : vector<2x16xf32>
    %311 = math.tanh %310 : vector<2x16xf32>
    %312 = arith.mulf %307, %311 : vector<2x16xf32>
    %313 = vector.extract_strided_slice %186 {offsets = [8, 0], sizes = [2, 64], strides = [1, 1]} : vector<12x64xf32> to vector<2x64xf32>
    %cst_158 = arith.constant dense<0.000000e+00> : vector<2x64xf32>
    %314 = tpu.matmul %312, %179, %cst_158 {dimension_numbers = #tpu.dot_dimension_numbers<[1], [0], [0], [1], [0, 0, 1, 1], [], []>} : vector<2x16xf32>, vector<16x64xf32>, vector<2x64xf32> -> vector<2x64xf32>
    %315 = arith.addf %313, %314 : vector<2x64xf32>
    %316 = vector.extract_strided_slice %315 {offsets = [0, 0], sizes = [2, 16], strides = [1, 1]} : vector<2x64xf32> to vector<2x16xf32>
    %cst_159 = arith.constant 0.000000e+00 : f32
    %317 = vector.broadcast %cst_159 : f32 to vector<2x16xf32>
    %318 = arith.subf %317, %316 : vector<2x16xf32>
    %319 = math.exp %318 : vector<2x16xf32>
    %cst_160 = arith.constant 1.000000e+00 : f32
    %320 = vector.broadcast %cst_160 : f32 to vector<2x16xf32>
    %321 = arith.addf %320, %319 : vector<2x16xf32>
    %322 = tpu.reciprocal %321 {approx = true} : vector<2x16xf32> -> vector<2x16xf32>
    %323 = vector.extract_strided_slice %315 {offsets = [0, 16], sizes = [2, 16], strides = [1, 1]} : vector<2x64xf32> to vector<2x16xf32>
    %cst_161 = arith.constant 0.000000e+00 : f32
    %324 = vector.broadcast %cst_161 : f32 to vector<2x16xf32>
    %325 = arith.subf %324, %323 : vector<2x16xf32>
    %326 = math.exp %325 : vector<2x16xf32>
    %cst_162 = arith.constant 1.000000e+00 : f32
    %327 = vector.broadcast %cst_162 : f32 to vector<2x16xf32>
    %328 = arith.addf %327, %326 : vector<2x16xf32>
    %329 = tpu.reciprocal %328 {approx = true} : vector<2x16xf32> -> vector<2x16xf32>
    %330 = vector.extract_strided_slice %315 {offsets = [0, 32], sizes = [2, 16], strides = [1, 1]} : vector<2x64xf32> to vector<2x16xf32>
    %331 = math.tanh %330 : vector<2x16xf32>
    %332 = vector.extract_strided_slice %315 {offsets = [0, 48], sizes = [2, 16], strides = [1, 1]} : vector<2x64xf32> to vector<2x16xf32>
    %cst_163 = arith.constant 0.000000e+00 : f32
    %333 = vector.broadcast %cst_163 : f32 to vector<2x16xf32>
    %334 = arith.subf %333, %332 : vector<2x16xf32>
    %335 = math.exp %334 : vector<2x16xf32>
    %cst_164 = arith.constant 1.000000e+00 : f32
    %336 = vector.broadcast %cst_164 : f32 to vector<2x16xf32>
    %337 = arith.addf %336, %335 : vector<2x16xf32>
    %338 = tpu.reciprocal %337 {approx = true} : vector<2x16xf32> -> vector<2x16xf32>
    %339 = arith.mulf %329, %310 : vector<2x16xf32>
    %340 = arith.mulf %322, %331 : vector<2x16xf32>
    %341 = arith.addf %339, %340 : vector<2x16xf32>
    %342 = math.tanh %341 : vector<2x16xf32>
    %343 = arith.mulf %338, %342 : vector<2x16xf32>
    %344 = vector.extract_strided_slice %186 {offsets = [10, 0], sizes = [2, 64], strides = [1, 1]} : vector<12x64xf32> to vector<2x64xf32>
    %cst_165 = arith.constant dense<0.000000e+00> : vector<2x64xf32>
    %345 = tpu.matmul %343, %179, %cst_165 {dimension_numbers = #tpu.dot_dimension_numbers<[1], [0], [0], [1], [0, 0, 1, 1], [], []>} : vector<2x16xf32>, vector<16x64xf32>, vector<2x64xf32> -> vector<2x64xf32>
    %346 = arith.addf %344, %345 : vector<2x64xf32>
    %347 = vector.extract_strided_slice %346 {offsets = [0, 0], sizes = [2, 16], strides = [1, 1]} : vector<2x64xf32> to vector<2x16xf32>
    %cst_166 = arith.constant 0.000000e+00 : f32
    %348 = vector.broadcast %cst_166 : f32 to vector<2x16xf32>
    %349 = arith.subf %348, %347 : vector<2x16xf32>
    %350 = math.exp %349 : vector<2x16xf32>
    %cst_167 = arith.constant 1.000000e+00 : f32
    %351 = vector.broadcast %cst_167 : f32 to vector<2x16xf32>
    %352 = arith.addf %351, %350 : vector<2x16xf32>
    %353 = tpu.reciprocal %352 {approx = true} : vector<2x16xf32> -> vector<2x16xf32>
    %354 = vector.extract_strided_slice %346 {offsets = [0, 16], sizes = [2, 16], strides = [1, 1]} : vector<2x64xf32> to vector<2x16xf32>
    %cst_168 = arith.constant 0.000000e+00 : f32
    %355 = vector.broadcast %cst_168 : f32 to vector<2x16xf32>
    %356 = arith.subf %355, %354 : vector<2x16xf32>
    %357 = math.exp %356 : vector<2x16xf32>
    %cst_169 = arith.constant 1.000000e+00 : f32
    %358 = vector.broadcast %cst_169 : f32 to vector<2x16xf32>
    %359 = arith.addf %358, %357 : vector<2x16xf32>
    %360 = tpu.reciprocal %359 {approx = true} : vector<2x16xf32> -> vector<2x16xf32>
    %361 = vector.extract_strided_slice %346 {offsets = [0, 32], sizes = [2, 16], strides = [1, 1]} : vector<2x64xf32> to vector<2x16xf32>
    %362 = math.tanh %361 : vector<2x16xf32>
    %363 = vector.extract_strided_slice %346 {offsets = [0, 48], sizes = [2, 16], strides = [1, 1]} : vector<2x64xf32> to vector<2x16xf32>
    %cst_170 = arith.constant 0.000000e+00 : f32
    %364 = vector.broadcast %cst_170 : f32 to vector<2x16xf32>
    %365 = arith.subf %364, %363 : vector<2x16xf32>
    %366 = math.exp %365 : vector<2x16xf32>
    %cst_171 = arith.constant 1.000000e+00 : f32
    %367 = vector.broadcast %cst_171 : f32 to vector<2x16xf32>
    %368 = arith.addf %367, %366 : vector<2x16xf32>
    %369 = tpu.reciprocal %368 {approx = true} : vector<2x16xf32> -> vector<2x16xf32>
    %370 = arith.mulf %360, %341 : vector<2x16xf32>
    %371 = arith.mulf %353, %362 : vector<2x16xf32>
    %372 = arith.addf %370, %371 : vector<2x16xf32>
    %373 = math.tanh %372 : vector<2x16xf32>
    %374 = arith.mulf %369, %373 : vector<2x16xf32>
    %cst_172 = arith.constant dense<0.000000e+00> : vector<2x8xf32>
    %375 = tpu.matmul %374, %182, %cst_172 {dimension_numbers = #tpu.dot_dimension_numbers<[1], [0], [0], [1], [0, 0, 1, 1], [], []>} : vector<2x16xf32>, vector<16x8xf32>, vector<2x8xf32> -> vector<2x8xf32>
    %376 = vector.broadcast %183 : vector<1x8xf32> to vector<2x8xf32>
    %377 = arith.addf %375, %376 : vector<2x8xf32>
    %cst_173 = arith.constant dense<0.000000e+00> : vector<2x64xf32>
    %378 = tpu.matmul %377, %180, %cst_173 {dimension_numbers = #tpu.dot_dimension_numbers<[1], [0], [0], [1], [0, 0, 1, 1], [], []>} : vector<2x8xf32>, vector<8x64xf32>, vector<2x64xf32> -> vector<2x64xf32>
    %cst_174 = arith.constant dense<0.000000e+00> : vector<2x64xf32>
    %379 = tpu.matmul %374, %181, %cst_174 {dimension_numbers = #tpu.dot_dimension_numbers<[1], [0], [0], [1], [0, 0, 1, 1], [], []>} : vector<2x16xf32>, vector<16x64xf32>, vector<2x64xf32> -> vector<2x64xf32>
    %380 = arith.addf %378, %379 : vector<2x64xf32>
    %381 = vector.extract_strided_slice %380 {offsets = [0, 0], sizes = [2, 16], strides = [1, 1]} : vector<2x64xf32> to vector<2x16xf32>
    %cst_175 = arith.constant 0.000000e+00 : f32
    %382 = vector.broadcast %cst_175 : f32 to vector<2x16xf32>
    %383 = arith.subf %382, %381 : vector<2x16xf32>
    %384 = math.exp %383 : vector<2x16xf32>
    %cst_176 = arith.constant 1.000000e+00 : f32
    %385 = vector.broadcast %cst_176 : f32 to vector<2x16xf32>
    %386 = arith.addf %385, %384 : vector<2x16xf32>
    %387 = tpu.reciprocal %386 {approx = true} : vector<2x16xf32> -> vector<2x16xf32>
    %388 = vector.extract_strided_slice %380 {offsets = [0, 16], sizes = [2, 16], strides = [1, 1]} : vector<2x64xf32> to vector<2x16xf32>
    %cst_177 = arith.constant 0.000000e+00 : f32
    %389 = vector.broadcast %cst_177 : f32 to vector<2x16xf32>
    %390 = arith.subf %389, %388 : vector<2x16xf32>
    %391 = math.exp %390 : vector<2x16xf32>
    %cst_178 = arith.constant 1.000000e+00 : f32
    %392 = vector.broadcast %cst_178 : f32 to vector<2x16xf32>
    %393 = arith.addf %392, %391 : vector<2x16xf32>
    %394 = tpu.reciprocal %393 {approx = true} : vector<2x16xf32> -> vector<2x16xf32>
    %395 = vector.extract_strided_slice %380 {offsets = [0, 32], sizes = [2, 16], strides = [1, 1]} : vector<2x64xf32> to vector<2x16xf32>
    %396 = math.tanh %395 : vector<2x16xf32>
    %397 = vector.extract_strided_slice %380 {offsets = [0, 48], sizes = [2, 16], strides = [1, 1]} : vector<2x64xf32> to vector<2x16xf32>
    %cst_179 = arith.constant 0.000000e+00 : f32
    %398 = vector.broadcast %cst_179 : f32 to vector<2x16xf32>
    %399 = arith.subf %398, %397 : vector<2x16xf32>
    %400 = math.exp %399 : vector<2x16xf32>
    %cst_180 = arith.constant 1.000000e+00 : f32
    %401 = vector.broadcast %cst_180 : f32 to vector<2x16xf32>
    %402 = arith.addf %401, %400 : vector<2x16xf32>
    %403 = tpu.reciprocal %402 {approx = true} : vector<2x16xf32> -> vector<2x16xf32>
    %404 = arith.mulf %394, %372 : vector<2x16xf32>
    %405 = arith.mulf %387, %396 : vector<2x16xf32>
    %406 = arith.addf %404, %405 : vector<2x16xf32>
    %407 = math.tanh %406 : vector<2x16xf32>
    %408 = arith.mulf %403, %407 : vector<2x16xf32>
    %cst_181 = arith.constant dense<0.000000e+00> : vector<2x8xf32>
    %409 = tpu.matmul %408, %182, %cst_181 {dimension_numbers = #tpu.dot_dimension_numbers<[1], [0], [0], [1], [0, 0, 1, 1], [], []>} : vector<2x16xf32>, vector<16x8xf32>, vector<2x8xf32> -> vector<2x8xf32>
    %410 = vector.broadcast %183 : vector<1x8xf32> to vector<2x8xf32>
    %411 = arith.addf %409, %410 : vector<2x8xf32>
    %cst_182 = arith.constant dense<0.000000e+00> : vector<2x64xf32>
    %412 = tpu.matmul %411, %180, %cst_182 {dimension_numbers = #tpu.dot_dimension_numbers<[1], [0], [0], [1], [0, 0, 1, 1], [], []>} : vector<2x8xf32>, vector<8x64xf32>, vector<2x64xf32> -> vector<2x64xf32>
    %cst_183 = arith.constant dense<0.000000e+00> : vector<2x64xf32>
    %413 = tpu.matmul %408, %181, %cst_183 {dimension_numbers = #tpu.dot_dimension_numbers<[1], [0], [0], [1], [0, 0, 1, 1], [], []>} : vector<2x16xf32>, vector<16x64xf32>, vector<2x64xf32> -> vector<2x64xf32>
    %414 = arith.addf %412, %413 : vector<2x64xf32>
    %415 = vector.extract_strided_slice %414 {offsets = [0, 0], sizes = [2, 16], strides = [1, 1]} : vector<2x64xf32> to vector<2x16xf32>
    %cst_184 = arith.constant 0.000000e+00 : f32
    %416 = vector.broadcast %cst_184 : f32 to vector<2x16xf32>
    %417 = arith.subf %416, %415 : vector<2x16xf32>
    %418 = math.exp %417 : vector<2x16xf32>
    %cst_185 = arith.constant 1.000000e+00 : f32
    %419 = vector.broadcast %cst_185 : f32 to vector<2x16xf32>
    %420 = arith.addf %419, %418 : vector<2x16xf32>
    %421 = tpu.reciprocal %420 {approx = true} : vector<2x16xf32> -> vector<2x16xf32>
    %422 = vector.extract_strided_slice %414 {offsets = [0, 16], sizes = [2, 16], strides = [1, 1]} : vector<2x64xf32> to vector<2x16xf32>
    %cst_186 = arith.constant 0.000000e+00 : f32
    %423 = vector.broadcast %cst_186 : f32 to vector<2x16xf32>
    %424 = arith.subf %423, %422 : vector<2x16xf32>
    %425 = math.exp %424 : vector<2x16xf32>
    %cst_187 = arith.constant 1.000000e+00 : f32
    %426 = vector.broadcast %cst_187 : f32 to vector<2x16xf32>
    %427 = arith.addf %426, %425 : vector<2x16xf32>
    %428 = tpu.reciprocal %427 {approx = true} : vector<2x16xf32> -> vector<2x16xf32>
    %429 = vector.extract_strided_slice %414 {offsets = [0, 32], sizes = [2, 16], strides = [1, 1]} : vector<2x64xf32> to vector<2x16xf32>
    %430 = math.tanh %429 : vector<2x16xf32>
    %431 = vector.extract_strided_slice %414 {offsets = [0, 48], sizes = [2, 16], strides = [1, 1]} : vector<2x64xf32> to vector<2x16xf32>
    %cst_188 = arith.constant 0.000000e+00 : f32
    %432 = vector.broadcast %cst_188 : f32 to vector<2x16xf32>
    %433 = arith.subf %432, %431 : vector<2x16xf32>
    %434 = math.exp %433 : vector<2x16xf32>
    %cst_189 = arith.constant 1.000000e+00 : f32
    %435 = vector.broadcast %cst_189 : f32 to vector<2x16xf32>
    %436 = arith.addf %435, %434 : vector<2x16xf32>
    %437 = tpu.reciprocal %436 {approx = true} : vector<2x16xf32> -> vector<2x16xf32>
    %438 = arith.mulf %428, %406 : vector<2x16xf32>
    %439 = arith.mulf %421, %430 : vector<2x16xf32>
    %440 = arith.addf %438, %439 : vector<2x16xf32>
    %441 = math.tanh %440 : vector<2x16xf32>
    %442 = arith.mulf %437, %441 : vector<2x16xf32>
    %cst_190 = arith.constant dense<0.000000e+00> : vector<2x8xf32>
    %443 = tpu.matmul %442, %182, %cst_190 {dimension_numbers = #tpu.dot_dimension_numbers<[1], [0], [0], [1], [0, 0, 1, 1], [], []>} : vector<2x16xf32>, vector<16x8xf32>, vector<2x8xf32> -> vector<2x8xf32>
    %444 = vector.broadcast %183 : vector<1x8xf32> to vector<2x8xf32>
    %445 = arith.addf %443, %444 : vector<2x8xf32>
    %cst_191 = arith.constant dense<0.000000e+00> : vector<2x64xf32>
    %446 = tpu.matmul %445, %180, %cst_191 {dimension_numbers = #tpu.dot_dimension_numbers<[1], [0], [0], [1], [0, 0, 1, 1], [], []>} : vector<2x8xf32>, vector<8x64xf32>, vector<2x64xf32> -> vector<2x64xf32>
    %cst_192 = arith.constant dense<0.000000e+00> : vector<2x64xf32>
    %447 = tpu.matmul %442, %181, %cst_192 {dimension_numbers = #tpu.dot_dimension_numbers<[1], [0], [0], [1], [0, 0, 1, 1], [], []>} : vector<2x16xf32>, vector<16x64xf32>, vector<2x64xf32> -> vector<2x64xf32>
    %448 = arith.addf %446, %447 : vector<2x64xf32>
    %449 = vector.extract_strided_slice %448 {offsets = [0, 0], sizes = [2, 16], strides = [1, 1]} : vector<2x64xf32> to vector<2x16xf32>
    %cst_193 = arith.constant 0.000000e+00 : f32
    %450 = vector.broadcast %cst_193 : f32 to vector<2x16xf32>
    %451 = arith.subf %450, %449 : vector<2x16xf32>
    %452 = math.exp %451 : vector<2x16xf32>
    %cst_194 = arith.constant 1.000000e+00 : f32
    %453 = vector.broadcast %cst_194 : f32 to vector<2x16xf32>
    %454 = arith.addf %453, %452 : vector<2x16xf32>
    %455 = tpu.reciprocal %454 {approx = true} : vector<2x16xf32> -> vector<2x16xf32>
    %456 = vector.extract_strided_slice %448 {offsets = [0, 16], sizes = [2, 16], strides = [1, 1]} : vector<2x64xf32> to vector<2x16xf32>
    %cst_195 = arith.constant 0.000000e+00 : f32
    %457 = vector.broadcast %cst_195 : f32 to vector<2x16xf32>
    %458 = arith.subf %457, %456 : vector<2x16xf32>
    %459 = math.exp %458 : vector<2x16xf32>
    %cst_196 = arith.constant 1.000000e+00 : f32
    %460 = vector.broadcast %cst_196 : f32 to vector<2x16xf32>
    %461 = arith.addf %460, %459 : vector<2x16xf32>
    %462 = tpu.reciprocal %461 {approx = true} : vector<2x16xf32> -> vector<2x16xf32>
    %463 = vector.extract_strided_slice %448 {offsets = [0, 32], sizes = [2, 16], strides = [1, 1]} : vector<2x64xf32> to vector<2x16xf32>
    %464 = math.tanh %463 : vector<2x16xf32>
    %465 = vector.extract_strided_slice %448 {offsets = [0, 48], sizes = [2, 16], strides = [1, 1]} : vector<2x64xf32> to vector<2x16xf32>
    %cst_197 = arith.constant 0.000000e+00 : f32
    %466 = vector.broadcast %cst_197 : f32 to vector<2x16xf32>
    %467 = arith.subf %466, %465 : vector<2x16xf32>
    %468 = math.exp %467 : vector<2x16xf32>
    %cst_198 = arith.constant 1.000000e+00 : f32
    %469 = vector.broadcast %cst_198 : f32 to vector<2x16xf32>
    %470 = arith.addf %469, %468 : vector<2x16xf32>
    %471 = tpu.reciprocal %470 {approx = true} : vector<2x16xf32> -> vector<2x16xf32>
    %472 = arith.mulf %462, %440 : vector<2x16xf32>
    %473 = arith.mulf %455, %464 : vector<2x16xf32>
    %474 = arith.addf %472, %473 : vector<2x16xf32>
    %475 = math.tanh %474 : vector<2x16xf32>
    %476 = arith.mulf %471, %475 : vector<2x16xf32>
    %cst_199 = arith.constant dense<0.000000e+00> : vector<2x8xf32>
    %477 = tpu.matmul %476, %182, %cst_199 {dimension_numbers = #tpu.dot_dimension_numbers<[1], [0], [0], [1], [0, 0, 1, 1], [], []>} : vector<2x16xf32>, vector<16x8xf32>, vector<2x8xf32> -> vector<2x8xf32>
    %478 = vector.broadcast %183 : vector<1x8xf32> to vector<2x8xf32>
    %479 = arith.addf %477, %478 : vector<2x8xf32>
    %cst_200 = arith.constant dense<0.000000e+00> : vector<2x64xf32>
    %480 = tpu.matmul %479, %180, %cst_200 {dimension_numbers = #tpu.dot_dimension_numbers<[1], [0], [0], [1], [0, 0, 1, 1], [], []>} : vector<2x8xf32>, vector<8x64xf32>, vector<2x64xf32> -> vector<2x64xf32>
    %cst_201 = arith.constant dense<0.000000e+00> : vector<2x64xf32>
    %481 = tpu.matmul %476, %181, %cst_201 {dimension_numbers = #tpu.dot_dimension_numbers<[1], [0], [0], [1], [0, 0, 1, 1], [], []>} : vector<2x16xf32>, vector<16x64xf32>, vector<2x64xf32> -> vector<2x64xf32>
    %482 = arith.addf %480, %481 : vector<2x64xf32>
    %483 = vector.extract_strided_slice %482 {offsets = [0, 0], sizes = [2, 16], strides = [1, 1]} : vector<2x64xf32> to vector<2x16xf32>
    %cst_202 = arith.constant 0.000000e+00 : f32
    %484 = vector.broadcast %cst_202 : f32 to vector<2x16xf32>
    %485 = arith.subf %484, %483 : vector<2x16xf32>
    %486 = math.exp %485 : vector<2x16xf32>
    %cst_203 = arith.constant 1.000000e+00 : f32
    %487 = vector.broadcast %cst_203 : f32 to vector<2x16xf32>
    %488 = arith.addf %487, %486 : vector<2x16xf32>
    %489 = tpu.reciprocal %488 {approx = true} : vector<2x16xf32> -> vector<2x16xf32>
    %490 = vector.extract_strided_slice %482 {offsets = [0, 16], sizes = [2, 16], strides = [1, 1]} : vector<2x64xf32> to vector<2x16xf32>
    %cst_204 = arith.constant 0.000000e+00 : f32
    %491 = vector.broadcast %cst_204 : f32 to vector<2x16xf32>
    %492 = arith.subf %491, %490 : vector<2x16xf32>
    %493 = math.exp %492 : vector<2x16xf32>
    %cst_205 = arith.constant 1.000000e+00 : f32
    %494 = vector.broadcast %cst_205 : f32 to vector<2x16xf32>
    %495 = arith.addf %494, %493 : vector<2x16xf32>
    %496 = tpu.reciprocal %495 {approx = true} : vector<2x16xf32> -> vector<2x16xf32>
    %497 = vector.extract_strided_slice %482 {offsets = [0, 32], sizes = [2, 16], strides = [1, 1]} : vector<2x64xf32> to vector<2x16xf32>
    %498 = math.tanh %497 : vector<2x16xf32>
    %499 = vector.extract_strided_slice %482 {offsets = [0, 48], sizes = [2, 16], strides = [1, 1]} : vector<2x64xf32> to vector<2x16xf32>
    %cst_206 = arith.constant 0.000000e+00 : f32
    %500 = vector.broadcast %cst_206 : f32 to vector<2x16xf32>
    %501 = arith.subf %500, %499 : vector<2x16xf32>
    %502 = math.exp %501 : vector<2x16xf32>
    %cst_207 = arith.constant 1.000000e+00 : f32
    %503 = vector.broadcast %cst_207 : f32 to vector<2x16xf32>
    %504 = arith.addf %503, %502 : vector<2x16xf32>
    %505 = tpu.reciprocal %504 {approx = true} : vector<2x16xf32> -> vector<2x16xf32>
    %506 = arith.mulf %496, %474 : vector<2x16xf32>
    %507 = arith.mulf %489, %498 : vector<2x16xf32>
    %508 = arith.addf %506, %507 : vector<2x16xf32>
    %509 = math.tanh %508 : vector<2x16xf32>
    %510 = arith.mulf %505, %509 : vector<2x16xf32>
    %cst_208 = arith.constant dense<0.000000e+00> : vector<2x8xf32>
    %511 = tpu.matmul %510, %182, %cst_208 {dimension_numbers = #tpu.dot_dimension_numbers<[1], [0], [0], [1], [0, 0, 1, 1], [], []>} : vector<2x16xf32>, vector<16x8xf32>, vector<2x8xf32> -> vector<2x8xf32>
    %512 = vector.broadcast %183 : vector<1x8xf32> to vector<2x8xf32>
    %513 = arith.addf %511, %512 : vector<2x8xf32>
    %cst_209 = arith.constant dense<0.000000e+00> : vector<2x64xf32>
    %514 = tpu.matmul %513, %180, %cst_209 {dimension_numbers = #tpu.dot_dimension_numbers<[1], [0], [0], [1], [0, 0, 1, 1], [], []>} : vector<2x8xf32>, vector<8x64xf32>, vector<2x64xf32> -> vector<2x64xf32>
    %cst_210 = arith.constant dense<0.000000e+00> : vector<2x64xf32>
    %515 = tpu.matmul %510, %181, %cst_210 {dimension_numbers = #tpu.dot_dimension_numbers<[1], [0], [0], [1], [0, 0, 1, 1], [], []>} : vector<2x16xf32>, vector<16x64xf32>, vector<2x64xf32> -> vector<2x64xf32>
    %516 = arith.addf %514, %515 : vector<2x64xf32>
    %517 = vector.extract_strided_slice %516 {offsets = [0, 0], sizes = [2, 16], strides = [1, 1]} : vector<2x64xf32> to vector<2x16xf32>
    %cst_211 = arith.constant 0.000000e+00 : f32
    %518 = vector.broadcast %cst_211 : f32 to vector<2x16xf32>
    %519 = arith.subf %518, %517 : vector<2x16xf32>
    %520 = math.exp %519 : vector<2x16xf32>
    %cst_212 = arith.constant 1.000000e+00 : f32
    %521 = vector.broadcast %cst_212 : f32 to vector<2x16xf32>
    %522 = arith.addf %521, %520 : vector<2x16xf32>
    %523 = tpu.reciprocal %522 {approx = true} : vector<2x16xf32> -> vector<2x16xf32>
    %524 = vector.extract_strided_slice %516 {offsets = [0, 16], sizes = [2, 16], strides = [1, 1]} : vector<2x64xf32> to vector<2x16xf32>
    %cst_213 = arith.constant 0.000000e+00 : f32
    %525 = vector.broadcast %cst_213 : f32 to vector<2x16xf32>
    %526 = arith.subf %525, %524 : vector<2x16xf32>
    %527 = math.exp %526 : vector<2x16xf32>
    %cst_214 = arith.constant 1.000000e+00 : f32
    %528 = vector.broadcast %cst_214 : f32 to vector<2x16xf32>
    %529 = arith.addf %528, %527 : vector<2x16xf32>
    %530 = tpu.reciprocal %529 {approx = true} : vector<2x16xf32> -> vector<2x16xf32>
    %531 = vector.extract_strided_slice %516 {offsets = [0, 32], sizes = [2, 16], strides = [1, 1]} : vector<2x64xf32> to vector<2x16xf32>
    %532 = math.tanh %531 : vector<2x16xf32>
    %533 = vector.extract_strided_slice %516 {offsets = [0, 48], sizes = [2, 16], strides = [1, 1]} : vector<2x64xf32> to vector<2x16xf32>
    %cst_215 = arith.constant 0.000000e+00 : f32
    %534 = vector.broadcast %cst_215 : f32 to vector<2x16xf32>
    %535 = arith.subf %534, %533 : vector<2x16xf32>
    %536 = math.exp %535 : vector<2x16xf32>
    %cst_216 = arith.constant 1.000000e+00 : f32
    %537 = vector.broadcast %cst_216 : f32 to vector<2x16xf32>
    %538 = arith.addf %537, %536 : vector<2x16xf32>
    %539 = tpu.reciprocal %538 {approx = true} : vector<2x16xf32> -> vector<2x16xf32>
    %540 = arith.mulf %530, %508 : vector<2x16xf32>
    %541 = arith.mulf %523, %532 : vector<2x16xf32>
    %542 = arith.addf %540, %541 : vector<2x16xf32>
    %543 = math.tanh %542 : vector<2x16xf32>
    %544 = arith.mulf %539, %543 : vector<2x16xf32>
    %cst_217 = arith.constant dense<0.000000e+00> : vector<2x8xf32>
    %545 = tpu.matmul %544, %182, %cst_217 {dimension_numbers = #tpu.dot_dimension_numbers<[1], [0], [0], [1], [0, 0, 1, 1], [], []>} : vector<2x16xf32>, vector<16x8xf32>, vector<2x8xf32> -> vector<2x8xf32>
    %546 = vector.broadcast %183 : vector<1x8xf32> to vector<2x8xf32>
    %547 = arith.addf %545, %546 : vector<2x8xf32>
    %548 = tpu.concatenate %547, %513, %479, %445, %411, %377 in 1 : vector<2x8xf32>, vector<2x8xf32>, vector<2x8xf32>, vector<2x8xf32>, vector<2x8xf32>, vector<2x8xf32> -> vector<2x48xf32>
    %549 = tpu.concatenate %178, %548 in 0 : vector<2x48xf32>, vector<2x48xf32> -> vector<4x48xf32>
    %c0_218 = arith.constant 0 : index
    %c0_219 = arith.constant 0 : index
    %550 = vector.load %arg9[%c0_218, %c0_219] : memref<48x24xf32, #tpu.memory_space<vmem>>, vector<48x24xf32>
    %cst_220 = arith.constant dense<0.000000e+00> : vector<4x24xf32>
    %551 = tpu.matmul %549, %550, %cst_220 {dimension_numbers = #tpu.dot_dimension_numbers<[1], [0], [0], [1], [0, 0, 1, 1], [], []>} : vector<4x48xf32>, vector<48x24xf32>, vector<4x24xf32> -> vector<4x24xf32>
    %c0_221 = arith.constant 0 : index
    %c0_222 = arith.constant 0 : index
    %552 = vector.load %arg10[%c0_221, %c0_222] : memref<1x24xf32, #tpu.memory_space<vmem>>, vector<1x24xf32>
    %553 = vector.broadcast %552 : vector<1x24xf32> to vector<4x24xf32>
    %554 = arith.addf %551, %553 : vector<4x24xf32>
    %cst_223 = arith.constant 0.000000e+00 : f32
    %555 = vector.broadcast %cst_223 : f32 to vector<4x24xf32>
    %556 = arith.maximumf %554, %555 : vector<4x24xf32>
    %c0_224 = arith.constant 0 : index
    %c0_225 = arith.constant 0 : index
    %557 = vector.load %arg11[%c0_224, %c0_225] : memref<24x8xf32, #tpu.memory_space<vmem>>, vector<24x8xf32>
    %cst_226 = arith.constant dense<0.000000e+00> : vector<4x8xf32>
    %558 = tpu.matmul %556, %557, %cst_226 {dimension_numbers = #tpu.dot_dimension_numbers<[1], [0], [0], [1], [0, 0, 1, 1], [], []>} : vector<4x24xf32>, vector<24x8xf32>, vector<4x8xf32> -> vector<4x8xf32>
    %c0_227 = arith.constant 0 : index
    %c0_228 = arith.constant 0 : index
    %559 = vector.load %arg12[%c0_227, %c0_228] : memref<1x8xf32, #tpu.memory_space<vmem>>, vector<1x8xf32>
    %560 = vector.broadcast %559 : vector<1x8xf32> to vector<4x8xf32>
    %561 = arith.addf %558, %560 : vector<4x8xf32>
    %562 = vector.extract_strided_slice %561 {offsets = [0, 0], sizes = [2, 8], strides = [1, 1]} : vector<4x8xf32> to vector<2x8xf32>
    %c0_229 = arith.constant 0 : index
    %c0_230 = arith.constant 0 : index
    %563 = vector.load %arg13[%c0_229, %c0_230] : memref<2x8xf32, #tpu.memory_space<vmem>>, vector<2x8xf32>
    tpu.vector_store %arg13[%c0_229, %c0_230], %562 {strides = array<i32>} : memref<2x8xf32, #tpu.memory_space<vmem>>, vector<2x8xf32>,
    %564 = vector.extract_strided_slice %561 {offsets = [2, 0], sizes = [2, 8], strides = [1, 1]} : vector<4x8xf32> to vector<2x8xf32>
    %c0_231 = arith.constant 0 : index
    %c0_232 = arith.constant 0 : index
    %565 = vector.load %arg14[%c0_231, %c0_232] : memref<2x8xf32, #tpu.memory_space<vmem>>, vector<2x8xf32>
    tpu.vector_store %arg14[%c0_231, %c0_232], %564 {strides = array<i32>} : memref<2x8xf32, #tpu.memory_space<vmem>>, vector<2x8xf32>,
    return
  }
}

</mosaic_0001>

<llo_original>
// kernel: fwd.1
$region0: #{fwd.1}
  #allocation0 [shape = 'u32[]', space=smem, size = 0x4, offset = 0x4, fixed_abs, tag = 'smem constant byte address 0x4 - core index']
  #allocation1 [shape = 'u32[144,128]{1,0:T(1,128)}', space=vmem, size = 0x12000, scoped, tag = 'internal scratch']
  #allocation2 [shape = 'f32[2,20,4]{2,1,0:T(8,128)}', space=vmem, size = 0x6000, scoped, tag = 'scratch operand']
  #allocation3 [shape = 'f32[2,17,32]{2,1,0:T(8,128)}', space=vmem, size = 0x6000, scoped, tag = 'scratch operand']
  #allocation4 [shape = 'f32[2,6,8]{2,1,0:T(8,128)}', space=vmem, size = 0x2000, scoped, tag = 'scratch operand']
  %s0 = inlined_call_operand.vmem [shape: f32[2,16,4], index: 0, kind: input, shape index: {}]
  %s1 = inlined_call_operand.hbm [shape: f32[16,32], index: 1, kind: input, shape index: {}]
  %s2 = inlined_call_operand.hbm [shape: f32[256,8], index: 2, kind: input, shape index: {}]
  %s3 = inlined_call_operand.hbm [shape: f32[8,64], index: 3, kind: input, shape index: {}]
  %s4 = inlined_call_operand.hbm [shape: f32[16,64], index: 4, kind: input, shape index: {}]
  %s5 = inlined_call_operand.hbm [shape: f32[8,64], index: 5, kind: input, shape index: {}]
  %s6 = inlined_call_operand.hbm [shape: f32[16,64], index: 6, kind: input, shape index: {}]
  %s7 = inlined_call_operand.hbm [shape: f32[16,8], index: 7, kind: input, shape index: {}]
  %s8 = inlined_call_operand.vmem [shape: f32[1,8], index: 8, kind: input, shape index: {}]
  %s9 = inlined_call_operand.vmem [shape: f32[48,24], index: 9, kind: input, shape index: {}]
  %s10 = inlined_call_operand.vmem [shape: f32[1,24], index: 10, kind: input, shape index: {}]
  %s11 = inlined_call_operand.vmem [shape: f32[24,8], index: 11, kind: input, shape index: {}]
  %s12 = inlined_call_operand.vmem [shape: f32[1,8], index: 12, kind: input, shape index: {}]
  %s13 = inlined_call_operand.hbm [shape: f32[2,8], index: 13, kind: output, shape index: {0}]
  %s14 = inlined_call_operand.hbm [shape: f32[2,8], index: 14, kind: output, shape index: {1}]
  %15 = xla_tuple %s13, %s14
  %s16 = sld [smem:[#allocation0]]
  $region98: #{fwd.1} parent=0
    _
  %s18 = ssub.s32 1, %s16
  %s19 = scalar_select 0, %s18, %s16
  $region1: #{fwd.1} parent=0
    #allocation5 [shape = 'u8[8192]{0}', space=vmem, size = 0x2000, scoped, tag = 'input window, operand 1, single buffered']
    #allocation6 [shape = 's32[1]{0}', space=sflag, size = 0x4, scoped, tag = 'scoped memory for fwd.1']
    #allocation7 [shape = 's32[1]{0}', space=sflag, size = 0x4, scoped, tag = 'scoped memory for fwd.1']
    #allocation8 [shape = 'u8[131072]{0}', space=vmem, size = 0x20000, scoped, tag = 'input window, operand 2, single buffered']
    #allocation9 [shape = 's32[1]{0}', space=sflag, size = 0x4, scoped, tag = 'scoped memory for fwd.1']
    #allocation10 [shape = 'u8[4096]{0}', space=vmem, size = 0x1000, scoped, tag = 'input window, operand 3, single buffered']
    #allocation11 [shape = 'u8[8192]{0}', space=vmem, size = 0x2000, scoped, tag = 'input window, operand 4, single buffered']
    #allocation12 [shape = 's32[1]{0}', space=sflag, size = 0x4, scoped, tag = 'scoped memory for fwd.1']
    #allocation13 [shape = 'u8[4096]{0}', space=vmem, size = 0x1000, scoped, tag = 'input window, operand 5, single buffered']
    #allocation14 [shape = 'u8[8192]{0}', space=vmem, size = 0x2000, scoped, tag = 'input window, operand 6, single buffered']
    #allocation15 [shape = 's32[1]{0}', space=sflag, size = 0x4, scoped, tag = 'scoped memory for fwd.1']
    #allocation16 [shape = 'u8[8192]{0}', space=vmem, size = 0x2000, scoped, tag = 'input window, operand 7, single buffered']
    #allocation17 [shape = 'u8[1024]{0}', space=vmem, size = 0x400, scoped, tag = 'output window, operand 0, single buffered']
    #allocation18 [shape = 'u8[1024]{0}', space=vmem, size = 0x400, scoped, tag = 'output window, operand 1, single buffered']
    #allocation19 [shape = 's32[1]{0}', space=sflag, size = 0x4, scoped, tag = 'scoped memory for fwd.1']
    %20 = vsyncpa [#allocation6], 0
    %21 = vsyncpa [#allocation9], 0
    %22 = vsyncpa [#allocation12], 0
    %23 = vsyncpa [#allocation15], 0
    %24 = vsyncpa [#allocation7], 0
    %25 = vsyncpa [#allocation19], 0
    // Predicated region
    $region2: #{fwd.1} parent=1 // pred_check
      _
    $region3: #{fwd.1} parent=1 // pred_check_branch
      %27 = sbr.rel (0) target = $region5
    $region4: #{fwd.1} parent=1 // pred_region
      _
    $region5: #{fwd.1} parent=1 // pred_fallthru
      _
    // Predicated region
    $region6: #{fwd.1} parent=1 // pred_check
      _
    $region7: #{fwd.1} parent=1 // pred_check_branch
      %29 = sbr.rel (0) target = $region9
    $region8: #{fwd.1} parent=1 // pred_region
      %s31 = ssub.s32 256, 256
      %32 = vsyncadd [#allocation6], %s31
      %s33 = sshll.u32 [#allocation5], 4
      %s34 = int_to_ptr.vmem [resolvable:$true] %s33
      %39 = dma.hbm_to_vmem [thread:$0]  %s1, 256, %s34, [#allocation6], 128, 128, 8
    $region9: #{fwd.1} parent=1 // pred_fallthru
      _
    // Predicated region
    $region10: #{fwd.1} parent=1 // pred_check
      _
    $region11: #{fwd.1} parent=1 // pred_check_branch
      %41 = sbr.rel (0) target = $region13
    $region12: #{fwd.1} parent=1 // pred_region
      %s43 = ssub.s32 4096, 4096
      %44 = vsyncadd [#allocation9], %s43
      %s45 = sshll.u32 [#allocation8], 4
      %s46 = int_to_ptr.vmem [resolvable:$true] %s45
      %51 = dma.hbm_to_vmem [thread:$0]  %s2, 4096, %s46, [#allocation9], 128, 128, 8
    $region13: #{fwd.1} parent=1 // pred_fallthru
      _
    // Predicated region
    $region14: #{fwd.1} parent=1 // pred_check
      _
    $region15: #{fwd.1} parent=1 // pred_check_branch
      %53 = sbr.rel (0) target = $region17
    $region16: #{fwd.1} parent=1 // pred_region
      %s55 = ssub.s32 128, 128
      %56 = vsyncadd [#allocation9], %s55
      %s58 = sshll.u32 [#allocation10], 4
      %s59 = int_to_ptr.vmem [resolvable:$true] %s58
      %61 = dma.hbm_to_vmem [thread:$0]  %s3, 128, %s59, [#allocation9]
    $region17: #{fwd.1} parent=1 // pred_fallthru
      _
    // Predicated region
    $region18: #{fwd.1} parent=1 // pred_check
      _
    $region19: #{fwd.1} parent=1 // pred_check_branch
      %63 = sbr.rel (0) target = $region21
    $region20: #{fwd.1} parent=1 // pred_region
      %s65 = ssub.s32 256, 256
      %66 = vsyncadd [#allocation12], %s65
      %s67 = sshll.u32 [#allocation11], 4
      %s68 = int_to_ptr.vmem [resolvable:$true] %s67
      %73 = dma.hbm_to_vmem [thread:$0]  %s4, 256, %s68, [#allocation12], 128, 128, 8
    $region21: #{fwd.1} parent=1 // pred_fallthru
      _
    // Predicated region
    $region22: #{fwd.1} parent=1 // pred_check
      _
    $region23: #{fwd.1} parent=1 // pred_check_branch
      %75 = sbr.rel (0) target = $region25
    $region24: #{fwd.1} parent=1 // pred_region
      %s77 = ssub.s32 128, 128
      %78 = vsyncadd [#allocation12], %s77
      %s80 = sshll.u32 [#allocation13], 4
      %s81 = int_to_ptr.vmem [resolvable:$true] %s80
      %83 = dma.hbm_to_vmem [thread:$0]  %s5, 128, %s81, [#allocation12]
    $region25: #{fwd.1} parent=1 // pred_fallthru
      _
    // Predicated region
    $region26: #{fwd.1} parent=1 // pred_check
      _
    $region27: #{fwd.1} parent=1 // pred_check_branch
      %85 = sbr.rel (0) target = $region29
    $region28: #{fwd.1} parent=1 // pred_region
      %s87 = ssub.s32 256, 256
      %88 = vsyncadd [#allocation15], %s87
      %s89 = sshll.u32 [#allocation14], 4
      %s90 = int_to_ptr.vmem [resolvable:$true] %s89
      %95 = dma.hbm_to_vmem [thread:$0]  %s6, 256, %s90, [#allocation15], 128, 128, 8
    $region29: #{fwd.1} parent=1 // pred_fallthru
      _
    // Predicated region
    $region30: #{fwd.1} parent=1 // pred_check
      _
    $region31: #{fwd.1} parent=1 // pred_check_branch
      %97 = sbr.rel (0) target = $region33
    $region32: #{fwd.1} parent=1 // pred_region
      %s99 = ssub.s32 256, 256
      %100 = vsyncadd [#allocation15], %s99
      %s101 = sshll.u32 [#allocation16], 4
      %s102 = int_to_ptr.vmem [resolvable:$true] %s101
      %107 = dma.hbm_to_vmem [thread:$0]  %s7, 256, %s102, [#allocation15], 128, 128, 8
    $region33: #{fwd.1} parent=1 // pred_fallthru
      _
    // Predicated region
    $region34: #{fwd.1} parent=1 // pred_check
      _
    $region35: #{fwd.1} parent=1 // pred_check_branch
      %109 = sbr.rel (0) target = $region37
    $region36: #{fwd.1} parent=1 // pred_region
      _
    $region37: #{fwd.1} parent=1 // pred_fallthru
      _
    // Predicated region
    $region38: #{fwd.1} parent=1 // pred_check
      _
    $region39: #{fwd.1} parent=1 // pred_check_branch
      %111 = sbr.rel (0) target = $region41
    $region40: #{fwd.1} parent=1 // pred_region
      _
    $region41: #{fwd.1} parent=1 // pred_fallthru
      _
    // Predicated region
    $region42: #{fwd.1} parent=1 // pred_check
      _
    $region43: #{fwd.1} parent=1 // pred_check_branch
      %113 = sbr.rel (0) target = $region45
    $region44: #{fwd.1} parent=1 // pred_region
      _
    $region45: #{fwd.1} parent=1 // pred_fallthru
      _
    // Predicated region
    $region46: #{fwd.1} parent=1 // pred_check
      _
    $region47: #{fwd.1} parent=1 // pred_check_branch
      %115 = sbr.rel (0) target = $region49
    $region48: #{fwd.1} parent=1 // pred_region
      _
    $region49: #{fwd.1} parent=1 // pred_fallthru
      _
    // Predicated region
    $region50: #{fwd.1} parent=1 // pred_check
      _
    $region51: #{fwd.1} parent=1 // pred_check_branch
      %117 = sbr.rel (0) target = $region53
    $region52: #{fwd.1} parent=1 // pred_region
      _
    $region53: #{fwd.1} parent=1 // pred_fallthru
      _
    // Predicated region
    $region54: #{fwd.1} parent=1 // pred_check
      _
    $region55: #{fwd.1} parent=1 // pred_check_branch
      %119 = sbr.rel (0) target = $region57
    $region56: #{fwd.1} parent=1 // pred_region
      %120 = dma.done [#allocation6], 256
    $region57: #{fwd.1} parent=1 // pred_fallthru
      _
    // Predicated region
    $region58: #{fwd.1} parent=1 // pred_check
      _
    $region59: #{fwd.1} parent=1 // pred_check_branch
      %122 = sbr.rel (0) target = $region61
    $region60: #{fwd.1} parent=1 // pred_region
      %123 = dma.done [#allocation9], 4096
    $region61: #{fwd.1} parent=1 // pred_fallthru
      _
    // Predicated region
    $region62: #{fwd.1} parent=1 // pred_check
      _
    $region63: #{fwd.1} parent=1 // pred_check_branch
      %125 = sbr.rel (0) target = $region65
    $region64: #{fwd.1} parent=1 // pred_region
      %126 = dma.done [#allocation9], 128
    $region65: #{fwd.1} parent=1 // pred_fallthru
      _
    // Predicated region
    $region66: #{fwd.1} parent=1 // pred_check
      _
    $region67: #{fwd.1} parent=1 // pred_check_branch
      %128 = sbr.rel (0) target = $region69
    $region68: #{fwd.1} parent=1 // pred_region
      %129 = dma.done [#allocation12], 256
    $region69: #{fwd.1} parent=1 // pred_fallthru
      _
    // Predicated region
    $region70: #{fwd.1} parent=1 // pred_check
      _
    $region71: #{fwd.1} parent=1 // pred_check_branch
      %131 = sbr.rel (0) target = $region73
    $region72: #{fwd.1} parent=1 // pred_region
      %132 = dma.done [#allocation12], 128
    $region73: #{fwd.1} parent=1 // pred_fallthru
      _
    // Predicated region
    $region74: #{fwd.1} parent=1 // pred_check
      _
    $region75: #{fwd.1} parent=1 // pred_check_branch
      %134 = sbr.rel (0) target = $region77
    $region76: #{fwd.1} parent=1 // pred_region
      %135 = dma.done [#allocation15], 256
    $region77: #{fwd.1} parent=1 // pred_fallthru
      _
    // Predicated region
    $region78: #{fwd.1} parent=1 // pred_check
      _
    $region79: #{fwd.1} parent=1 // pred_check_branch
      %137 = sbr.rel (0) target = $region81
    $region80: #{fwd.1} parent=1 // pred_region
      %138 = dma.done [#allocation15], 256
    $region81: #{fwd.1} parent=1 // pred_fallthru
      _
    %vm139 = vcmask 31744
    %140 = vst.msk [vmem:[#allocation2] sm:$0xff] %vm139, 0.0
    %141 = vst.msk [vmem:[#allocation2 + $0x8] sm:$0xff] %vm139, 0.0
    %vm142 = vcmask 27648
    %143 = vst.msk [vmem:[#allocation2 + $0x10] sm:$0xf] %vm142, 0.0
    %144 = vst.msk [vmem:[#allocation2 + $0x18] sm:$0xff] %vm139, 0.0
    %145 = vst.msk [vmem:[#allocation2 + $0x20] sm:$0xff] %vm139, 0.0
    %146 = vst.msk [vmem:[#allocation2 + $0x28] sm:$0xf] %vm142, 0.0
    %v147 = vld [vmem:[%s0] sm:$0xff]
    %v148 = vld [vmem:[%s0 + $0x8] sm:$0xff]
    %v149 = vld [vmem:[%s0 + $0x10] sm:$0xff]
    %v150 = vld [vmem:[%s0 + $0x18] sm:$0xff]
    %151 = vst.msk [vmem:[#allocation2 + $0x2] sm:$0xff] %vm139, %v147
    %152 = vst.msk [vmem:[#allocation2 + $0xa] sm:$0xff] %vm139, %v148
    %153 = vst.msk [vmem:[#allocation2 + $0x1a] sm:$0xff] %vm139, %v149
    %154 = vst.msk [vmem:[#allocation2 + $0x22] sm:$0xff] %vm139, %v150
    %vm155 = vcmask 261120
    %156 = vst.msk [vmem:[#allocation3] sm:$0xff] %vm155, 0.0
    %157 = vst.msk [vmem:[#allocation3 + $0x8] sm:$0xff] %vm155, 0.0
    %vm158 = vcmask 253952
    %159 = vst.msk [vmem:[#allocation3 + $0x10] sm:$0x1] %vm158, 0.0
    %160 = vst.msk [vmem:[#allocation3 + $0x18] sm:$0xff] %vm155, 0.0
    %161 = vst.msk [vmem:[#allocation3 + $0x20] sm:$0xff] %vm155, 0.0
    %162 = vst.msk [vmem:[#allocation3 + $0x28] sm:$0x1] %vm158, 0.0
    %v163 = vld [vmem:[#allocation2] sm:$0xff]
    %v164 = vld [vmem:[#allocation2 + $0x8] sm:$0xff]
    %v165 = vld [vmem:[#allocation2 + $0x10] sm:$0x1]
    %v166 = vld [vmem:[#allocation2 + $0x1] sm:$0xff]
    %v167 = vld [vmem:[#allocation2 + $0x9] sm:$0xff]
    %v168 = vld [vmem:[#allocation2 + $0x11] sm:$0x1]
    %v169 = vld [vmem:[#allocation2 + $0x2] sm:$0xff]
    %v170 = vld [vmem:[#allocation2 + $0xa] sm:$0xff]
    %v171 = vld [vmem:[#allocation2 + $0x12] sm:$0x1]
    %v172 = vld [vmem:[#allocation2 + $0x3] sm:$0xff]
    %v173 = vld [vmem:[#allocation2 + $0xb] sm:$0xff]
    %v174 = vld [vmem:[#allocation2 + $0x13] sm:$0x1]
    %178 = vrot.lane.b32.xlu0 %v166, 4
    %v179 = vpop.permute.xlu0 %178
    %180 = vrot.lane.b32.xlu0 %v167, 4
    %v181 = vpop.permute.xlu0 %180
    %182 = vrot.lane.b32.xlu0 %v168, 4
    %v183 = vpop.permute.xlu0 %182
    %190 = vrot.lane.b32.xlu0 %v169, 8
    %v191 = vpop.permute.xlu0 %190
    %192 = vrot.lane.b32.xlu0 %v170, 8
    %v193 = vpop.permute.xlu0 %192
    %194 = vrot.lane.b32.xlu0 %v171, 8
    %v195 = vpop.permute.xlu0 %194
    %202 = vrot.lane.b32.xlu0 %v172, 12
    %v203 = vpop.permute.xlu0 %202
    %204 = vrot.lane.b32.xlu0 %v173, 12
    %v205 = vpop.permute.xlu0 %204
    %206 = vrot.lane.b32.xlu0 %v174, 12
    %v207 = vpop.permute.xlu0 %206
    %v211 = vsel %vm139, %v163, %v179
    %v212 = vsel %vm139, %v164, %v181
    %v213 = vsel %vm139, %v165, %v183
    %vm214 = vcmask 64512
    %v215 = vsel %vm214, %v211, %v191
    %v216 = vsel %vm214, %v212, %v193
    %v217 = vsel %vm214, %v213, %v195
    %vm218 = vcmask 97280
    %v219 = vsel %vm218, %v215, %v203
    %v220 = vsel %vm218, %v216, %v205
    %v221 = vsel %vm218, %v217, %v207
    %s222 = scalar_lea.vmem [#allocation2], 24
    %v223 = vld [vmem:[%s222] sm:$0xff]
    %v224 = vld [vmem:[%s222 + $0x8] sm:$0xff]
    %v225 = vld [vmem:[%s222 + $0x10] sm:$0x1]
    %v226 = vld [vmem:[%s222 + $0x1] sm:$0xff]
    %v227 = vld [vmem:[%s222 + $0x9] sm:$0xff]
    %v228 = vld [vmem:[%s222 + $0x11] sm:$0x1]
    %v229 = vld [vmem:[%s222 + $0x2] sm:$0xff]
    %v230 = vld [vmem:[%s222 + $0xa] sm:$0xff]
    %v231 = vld [vmem:[%s222 + $0x12] sm:$0x1]
    %v232 = vld [vmem:[%s222 + $0x3] sm:$0xff]
    %v233 = vld [vmem:[%s222 + $0xb] sm:$0xff]
    %v234 = vld [vmem:[%s222 + $0x13] sm:$0x1]
    %238 = vrot.lane.b32.xlu0 %v226, 4
    %v239 = vpop.permute.xlu0 %238
    %240 = vrot.lane.b32.xlu0 %v227, 4
    %v241 = vpop.permute.xlu0 %240
    %242 = vrot.lane.b32.xlu0 %v228, 4
    %v243 = vpop.permute.xlu0 %242
    %250 = vrot.lane.b32.xlu0 %v229, 8
    %v251 = vpop.permute.xlu0 %250
    %252 = vrot.lane.b32.xlu0 %v230, 8
    %v253 = vpop.permute.xlu0 %252
    %254 = vrot.lane.b32.xlu0 %v231, 8
    %v255 = vpop.permute.xlu0 %254
    %262 = vrot.lane.b32.xlu0 %v232, 12
    %v263 = vpop.permute.xlu0 %262
    %264 = vrot.lane.b32.xlu0 %v233, 12
    %v265 = vpop.permute.xlu0 %264
    %266 = vrot.lane.b32.xlu0 %v234, 12
    %v267 = vpop.permute.xlu0 %266
    %v271 = vsel %vm139, %v223, %v239
    %v272 = vsel %vm139, %v224, %v241
    %v273 = vsel %vm139, %v225, %v243
    %v274 = vsel %vm214, %v271, %v251
    %v275 = vsel %vm214, %v272, %v253
    %v276 = vsel %vm214, %v273, %v255
    %v277 = vsel %vm218, %v274, %v263
    %v278 = vsel %vm218, %v275, %v265
    %v279 = vsel %vm218, %v276, %v267
    %vm283 = vcmask 1040384
    %v284 = vrot.slane %v277, 7
    %v285 = vrot.slane %v278, 7
    %v286 = vsel %vm283, %v284, %v285
    %v287 = vrot.slane %v279, 7
    %v288 = vsel %vm283, %v285, %v287
    %v290 = vsel %vm283, %v221, %v284
    %v291 = vld [vmem:[#allocation5] sm:$0xff]
    %v292 = vld [vmem:[#allocation5 + $0x8] sm:$0xff]
    %vm293 = vcmask 130048
    %v295 = vsel %vm293, %v219, 0
    %v298 = vsel %vm293, %v220, 0
    %v301 = vsel %vm293, %v290, 0
    %v303 = vsel %vm293, %v286, 0
    %v305 = vsel %vm293, %v288, 0
    %307 = vmatprep.subr.mxu0 0.0
    %308 = vmatpush1.msra.mxu0 %v291
    %309 = vmatprep.subr.mxu0 0.0
    %310 = vmatpush1.msra.mxu0 %v292
    %311 = vmatprep.subr.mxu0 0.0
    %312 = vmatpush1.msra.mxu0 0.0
    %313 = vmatprep.subr.mxu0 0.0
    %314 = vmatpush1.msra.mxu0 0.0
    %315 = vmatprep.subr.mxu0 0.0
    %316 = vmatpush1.msra.mxu0 0.0
    %317 = vmatprep.subr.mxu0 0.0
    %318 = vmatpush1.msra.mxu0 0.0
    %319 = vmatprep.subr.mxu0 0.0
    %320 = vmatpush1.msra.mxu0 0.0
    %321 = vmatprep.subr.mxu0 0.0
    %322 = vmatpush1.msra.mxu0 0.0
    %323 = vmatprep.subr.mxu0 0.0
    %324 = vmatpush1.msra.mxu0 0.0
    %325 = vmatprep.subr.mxu0 0.0
    %326 = vmatpush1.msra.mxu0 0.0
    %327 = vmatprep.subr.mxu0 0.0
    %328 = vmatpush1.msra.mxu0 0.0
    %329 = vmatprep.subr.mxu0 0.0
    %330 = vmatpush1.msra.mxu0 0.0
    %331 = vmatprep.subr.mxu0 0.0
    %332 = vmatpush1.msra.mxu0 0.0
    %333 = vmatprep.subr.mxu0 0.0
    %334 = vmatpush1.msra.mxu0 0.0
    %335 = vmatprep.subr.mxu0 0.0
    %336 = vmatpush1.msra.mxu0 0.0
    %337 = vmatprep.subr.mxu0 0.0
    %338 = vmatpush1.msra.mxu0 0.0
    %339 = vmatprep.subr.mxu0 0.0
    %340 = vmatpush1.msra.mxu0 0.0
    %341 = vmatprep.subr.mxu0 0.0
    %342 = vmatpush1.msra.mxu0 0.0
    %343 = vmatprep.subr.mxu0 0.0
    %344 = vmatpush1.msra.mxu0 0.0
    %345 = vmatprep.subr.mxu0 0.0
    %346 = vmatpush1.msra.mxu0 0.0
    %347 = vmatprep.subr.mxu0 0.0
    %348 = vmatpush1.msra.mxu0 0.0
    %349 = vmatprep.subr.mxu0 0.0
    %350 = vmatpush1.msra.mxu0 0.0
    %351 = vmatprep.subr.mxu0 0.0
    %352 = vmatpush1.msra.mxu0 0.0
    %353 = vmatprep.subr.mxu0 0.0
    %354 = vmatpush1.msra.mxu0 0.0
    %355 = vmatprep.subr.mxu0 0.0
    %356 = vmatpush1.msra.mxu0 0.0
    %357 = vmatprep.subr.mxu0 0.0
    %358 = vmatpush1.msra.mxu0 0.0
    %359 = vmatprep.subr.mxu0 0.0
    %360 = vmatpush1.msra.mxu0 0.0
    %361 = vmatprep.subr.mxu0 0.0
    %362 = vmatpush1.msra.mxu0 0.0
    %363 = vmatprep.subr.mxu0 0.0
    %364 = vmatpush1.msra.mxu0 0.0
    %365 = vmatprep.subr.mxu0 0.0
    %366 = vmatpush1.msra.mxu0 0.0
    %367 = vmatprep.subr.mxu0 0.0
    %368 = vmatpush1.msra.mxu0 0.0
    %369 = vmatprep.subr.mxu0 0.0
    %370 = vmatpush1.msra.mxu0 0.0
    %371 = vmatprep.mubr.f32.mxu0 0.0
    %372 = vmatmul.mubr.f32.gmra.mrb[0].mxu0 %v295
    %v373 = vpop.f32.mrb[0].mxu0
    %v374 = vadd.f32 0.0, %v373
    %v375 = vpop.f32.mrb[0].mxu0
    %376 = vmatprep.mubr.f32.mxu0 0.0
    %377 = vmatmul.mubr.f32.gmra.mrb[0].mxu0 %v298
    %v378 = vpop.f32.mrb[0].mxu0
    %v379 = vadd.f32 0.0, %v378
    %v380 = vpop.f32.mrb[0].mxu0
    %381 = vmatprep.mubr.f32.mxu0 0.0
    %382 = vmatmul.mubr.f32.gmra.mrb[0].mxu0 %v301
    %v383 = vpop.f32.mrb[0].mxu0
    %v384 = vadd.f32 0.0, %v383
    %v385 = vpop.f32.mrb[0].mxu0
    %386 = vmatprep.mubr.f32.mxu0 0.0
    %387 = vmatmul.mubr.f32.gmra.mrb[0].mxu0 %v303
    %v388 = vpop.f32.mrb[0].mxu0
    %v389 = vadd.f32 0.0, %v388
    %v390 = vpop.f32.mrb[0].mxu0
    %391 = vmatprep.mubr.f32.mxu0 0.0
    %392 = vmatmul.mubr.f32.gmra.mrb[0].mxu0 %v305
    %v393 = vpop.f32.mrb[0].mxu0
    %v394 = vadd.f32 0.0, %v393
    %v395 = vpop.f32.mrb[0].mxu0
    %396 = vdwg.mxu0
    %v397 = vmax.f32 %v374, 0.0
    %v398 = vmax.f32 %v379, 0.0
    %v399 = vmax.f32 %v384, 0.0
    %v400 = vmax.f32 %v389, 0.0
    %v401 = vmax.f32 %v394, 0.0
    %v403 = vrot.slane %v397, 1
    %v405 = vmax.f32 %v397, %v403
    %v407 = vrot.slane %v398, 1
    %v409 = vmax.f32 %v397, %v407
    %v410 = vmax.f32 %v398, %v407
    %v412 = vrot.slane %v399, 1
    %v414 = vmax.f32 %v398, %v412
    %v416 = vrot.slane %v405, 1
    %v418 = vrot.slane %v405, 2
    %v421 = vrot.slane %v409, 3
    %v424 = vrot.slane %v410, 4
    %v426 = vrot.slane %v410, 5
    %v428 = vrot.slane %v410, 6
    %v431 = vrot.slane %v414, 7
    %v433 = vsel %vm283, %v397, %v405
    %vm434 = vcmask 1041408
    %v435 = vsel %vm434, %v433, %v416
    %vm436 = vcmask 1042432
    %v437 = vsel %vm436, %v435, %v418
    %vm438 = vcmask 1043456
    %v439 = vsel %vm438, %v437, %v421
    %vm440 = vcmask 1044480
    %v441 = vsel %vm440, %v439, %v424
    %vm442 = vcmask 1045504
    %v443 = vsel %vm442, %v441, %v426
    %vm444 = vcmask 1046528
    %v445 = vsel %vm444, %v443, %v428
    %446 = vst.msk [vmem:[#allocation3 + $0x4] sm:$0xff] %vm155, %v445
    %447 = vst.msk [vmem:[#allocation3 + $0xc] sm:$0x1] %vm158, %v431
    %v448 = vmax.f32 %v399, %v412
    %v450 = vrot.slane %v400, 1
    %v452 = vmax.f32 %v400, %v450
    %v454 = vrot.slane %v401, 1
    %v456 = vmax.f32 %v401, %v454
    %v458 = vrot.slane %v448, 1
    %v460 = vrot.slane %v448, 2
    %v462 = vrot.slane %v448, 3
    %v465 = vrot.slane %v452, 4
    %v467 = vrot.slane %v452, 5
    %v469 = vrot.slane %v452, 6
    %v471 = vrot.slane %v452, 7
    %v473 = vsel %vm283, %v412, %v458
    %v474 = vsel %vm434, %v473, %v460
    %v475 = vsel %vm436, %v474, %v462
    %v476 = vsel %vm438, %v475, %v465
    %v477 = vsel %vm440, %v476, %v467
    %v478 = vsel %vm442, %v477, %v469
    %v479 = vsel %vm444, %v478, %v471
    %s480 = scalar_lea.vmem [#allocation3], 24
    %481 = vst.msk [vmem:[%s480 + $0x4] sm:$0xff] %vm155, %v479
    %482 = vst.msk [vmem:[%s480 + $0xc] sm:$0x1] %vm158, %v456
    %v483 = vld [vmem:[#allocation3] sm:$0xff]
    %v484 = vld [vmem:[#allocation3 + $0x8] sm:$0x3]
    %v485 = vld [vmem:[#allocation3 + $0x1] sm:$0xff]
    %v486 = vld [vmem:[#allocation3 + $0x9] sm:$0x3]
    %v487 = vld [vmem:[#allocation3 + $0x2] sm:$0xff]
    %v488 = vld [vmem:[#allocation3 + $0xa] sm:$0x3]
    %v489 = vld [vmem:[#allocation3 + $0x3] sm:$0xff]
    %v490 = vld [vmem:[#allocation3 + $0xb] sm:$0x3]
    %v491 = vld [vmem:[#allocation3 + $0x4] sm:$0xff]
    %v492 = vld [vmem:[#allocation3 + $0xc] sm:$0x3]
    %v493 = vld [vmem:[#allocation3 + $0x5] sm:$0xff]
    %v494 = vld [vmem:[#allocation3 + $0xd] sm:$0x3]
    %v495 = vld [vmem:[#allocation3 + $0x6] sm:$0xff]
    %v496 = vld [vmem:[#allocation3 + $0xe] sm:$0x3]
    %v497 = vld [vmem:[#allocation3 + $0x7] sm:$0xff]
    %v498 = vld [vmem:[#allocation3 + $0xf] sm:$0x3]
    %501 = vrot.lane.b32.xlu0 %v485, 32
    %v502 = vpop.permute.xlu0 %501
    %503 = vrot.lane.b32.xlu0 %v486, 32
    %v504 = vpop.permute.xlu0 %503
    %509 = vrot.lane.b32.xlu0 %v487, 64
    %v510 = vpop.permute.xlu0 %509
    %511 = vrot.lane.b32.xlu0 %v488, 64
    %v512 = vpop.permute.xlu0 %511
    %517 = vrot.lane.b32.xlu0 %v489, 96
    %v518 = vpop.permute.xlu0 %517
    %519 = vrot.lane.b32.xlu0 %v490, 96
    %v520 = vpop.permute.xlu0 %519
    %525 = vrot.lane.b32.xlu0 %v493, 32
    %v526 = vpop.permute.xlu0 %525
    %527 = vrot.lane.b32.xlu0 %v494, 32
    %v528 = vpop.permute.xlu0 %527
    %533 = vrot.lane.b32.xlu0 %v495, 64
    %v534 = vpop.permute.xlu0 %533
    %535 = vrot.lane.b32.xlu0 %v496, 64
    %v536 = vpop.permute.xlu0 %535
    %541 = vrot.lane.b32.xlu0 %v497, 96
    %v542 = vpop.permute.xlu0 %541
    %543 = vrot.lane.b32.xlu0 %v498, 96
    %v544 = vpop.permute.xlu0 %543
    %v547 = vsel %vm155, %v483, %v502
    %v548 = vsel %vm155, %v484, %v504
    %vm549 = vcmask 523264
    %v550 = vsel %vm549, %v547, %v510
    %v551 = vsel %vm549, %v548, %v512
    %vm552 = vcmask 785408
    %v553 = vsel %vm552, %v550, %v518
    %v554 = vsel %vm552, %v551, %v520
    %v555 = vsel %vm155, %v491, %v526
    %v556 = vsel %vm155, %v492, %v528
    %v557 = vsel %vm549, %v555, %v534
    %v558 = vsel %vm549, %v556, %v536
    %v559 = vsel %vm552, %v557, %v542
    %v560 = vsel %vm552, %v558, %v544
    %v561 = vld [vmem:[%s480] sm:$0xff]
    %v562 = vld [vmem:[%s480 + $0x8] sm:$0x3]
    %v563 = vld [vmem:[%s480 + $0x1] sm:$0xff]
    %v564 = vld [vmem:[%s480 + $0x9] sm:$0x3]
    %v565 = vld [vmem:[%s480 + $0x2] sm:$0xff]
    %v566 = vld [vmem:[%s480 + $0xa] sm:$0x3]
    %v567 = vld [vmem:[%s480 + $0x3] sm:$0xff]
    %v568 = vld [vmem:[%s480 + $0xb] sm:$0x3]
    %v569 = vld [vmem:[%s480 + $0x4] sm:$0xff]
    %v570 = vld [vmem:[%s480 + $0xc] sm:$0x3]
    %v571 = vld [vmem:[%s480 + $0x5] sm:$0xff]
    %v572 = vld [vmem:[%s480 + $0xd] sm:$0x3]
    %v573 = vld [vmem:[%s480 + $0x6] sm:$0xff]
    %v574 = vld [vmem:[%s480 + $0xe] sm:$0x3]
    %v575 = vld [vmem:[%s480 + $0x7] sm:$0xff]
    %v576 = vld [vmem:[%s480 + $0xf] sm:$0x3]
    %579 = vrot.lane.b32.xlu0 %v563, 32
    %v580 = vpop.permute.xlu0 %579
    %581 = vrot.lane.b32.xlu0 %v564, 32
    %v582 = vpop.permute.xlu0 %581
    %587 = vrot.lane.b32.xlu0 %v565, 64
    %v588 = vpop.permute.xlu0 %587
    %589 = vrot.lane.b32.xlu0 %v566, 64
    %v590 = vpop.permute.xlu0 %589
    %595 = vrot.lane.b32.xlu0 %v567, 96
    %v596 = vpop.permute.xlu0 %595
    %597 = vrot.lane.b32.xlu0 %v568, 96
    %v598 = vpop.permute.xlu0 %597
    %603 = vrot.lane.b32.xlu0 %v571, 32
    %v604 = vpop.permute.xlu0 %603
    %605 = vrot.lane.b32.xlu0 %v572, 32
    %v606 = vpop.permute.xlu0 %605
    %611 = vrot.lane.b32.xlu0 %v573, 64
    %v612 = vpop.permute.xlu0 %611
    %613 = vrot.lane.b32.xlu0 %v574, 64
    %v614 = vpop.permute.xlu0 %613
    %619 = vrot.lane.b32.xlu0 %v575, 96
    %v620 = vpop.permute.xlu0 %619
    %621 = vrot.lane.b32.xlu0 %v576, 96
    %v622 = vpop.permute.xlu0 %621
    %v625 = vsel %vm155, %v561, %v580
    %v626 = vsel %vm155, %v562, %v582
    %v627 = vsel %vm549, %v625, %v588
    %v628 = vsel %vm549, %v626, %v590
    %v629 = vsel %vm552, %v627, %v596
    %v630 = vsel %vm552, %v628, %v598
    %v631 = vsel %vm155, %v569, %v604
    %v632 = vsel %vm155, %v570, %v606
    %v633 = vsel %vm549, %v631, %v612
    %v634 = vsel %vm549, %v632, %v614
    %v635 = vsel %vm552, %v633, %v620
    %v636 = vsel %vm552, %v634, %v622
    %v641 = vrot.slane %v629, 6
    %v642 = vrot.slane %v635, 6
    %v643 = vrot.slane %v630, 6
    %v644 = vsel %vm434, %v641, %v643
    %v645 = vrot.slane %v636, 6
    %v646 = vsel %vm434, %v642, %v645
    %v651 = vsel %vm434, %v554, %v641
    %v652 = vsel %vm434, %v560, %v642
    %v653 = vld [vmem:[#allocation8] sm:$0xff]
    %v654 = vld [vmem:[#allocation8 + $0x8] sm:$0xff]
    %v655 = vld [vmem:[#allocation8 + $0x10] sm:$0xff]
    %v656 = vld [vmem:[#allocation8 + $0x18] sm:$0xff]
    %v657 = vld [vmem:[#allocation8 + $0x20] sm:$0xff]
    %v658 = vld [vmem:[#allocation8 + $0x28] sm:$0xff]
    %v659 = vld [vmem:[#allocation8 + $0x30] sm:$0xff]
    %v660 = vld [vmem:[#allocation8 + $0x38] sm:$0xff]
    %v661 = vld [vmem:[#allocation8 + $0x40] sm:$0xff]
    %v662 = vld [vmem:[#allocation8 + $0x48] sm:$0xff]
    %v663 = vld [vmem:[#allocation8 + $0x50] sm:$0xff]
    %v664 = vld [vmem:[#allocation8 + $0x58] sm:$0xff]
    %v665 = vld [vmem:[#allocation8 + $0x60] sm:$0xff]
    %v666 = vld [vmem:[#allocation8 + $0x68] sm:$0xff]
    %v667 = vld [vmem:[#allocation8 + $0x70] sm:$0xff]
    %v668 = vld [vmem:[#allocation8 + $0x78] sm:$0xff]
    %v669 = vld [vmem:[#allocation8 + $0x80] sm:$0xff]
    %v670 = vld [vmem:[#allocation8 + $0x88] sm:$0xff]
    %v671 = vld [vmem:[#allocation8 + $0x90] sm:$0xff]
    %v672 = vld [vmem:[#allocation8 + $0x98] sm:$0xff]
    %v673 = vld [vmem:[#allocation8 + $0xa0] sm:$0xff]
    %v674 = vld [vmem:[#allocation8 + $0xa8] sm:$0xff]
    %v675 = vld [vmem:[#allocation8 + $0xb0] sm:$0xff]
    %v676 = vld [vmem:[#allocation8 + $0xb8] sm:$0xff]
    %v677 = vld [vmem:[#allocation8 + $0xc0] sm:$0xff]
    %v678 = vld [vmem:[#allocation8 + $0xc8] sm:$0xff]
    %v679 = vld [vmem:[#allocation8 + $0xd0] sm:$0xff]
    %v680 = vld [vmem:[#allocation8 + $0xd8] sm:$0xff]
    %v681 = vld [vmem:[#allocation8 + $0xe0] sm:$0xff]
    %v682 = vld [vmem:[#allocation8 + $0xe8] sm:$0xff]
    %v683 = vld [vmem:[#allocation8 + $0xf0] sm:$0xff]
    %v684 = vld [vmem:[#allocation8 + $0xf8] sm:$0xff]
    %685 = vmatprep.subr.mxu0 0.0
    %686 = vmatpush1.msra.mxu0 %v653
    %687 = vmatprep.subr.mxu0 0.0
    %688 = vmatpush1.msra.mxu0 %v654
    %689 = vmatprep.subr.mxu0 0.0
    %690 = vmatpush1.msra.mxu0 %v655
    %691 = vmatprep.subr.mxu0 0.0
    %692 = vmatpush1.msra.mxu0 %v656
    %693 = vmatprep.subr.mxu0 0.0
    %694 = vmatpush1.msra.mxu0 %v657
    %695 = vmatprep.subr.mxu0 0.0
    %696 = vmatpush1.msra.mxu0 %v658
    %697 = vmatprep.subr.mxu0 0.0
    %698 = vmatpush1.msra.mxu0 %v659
    %699 = vmatprep.subr.mxu0 0.0
    %700 = vmatpush1.msra.mxu0 %v660
    %701 = vmatprep.subr.mxu0 0.0
    %702 = vmatpush1.msra.mxu0 %v661
    %703 = vmatprep.subr.mxu0 0.0
    %704 = vmatpush1.msra.mxu0 %v662
    %705 = vmatprep.subr.mxu0 0.0
    %706 = vmatpush1.msra.mxu0 %v663
    %707 = vmatprep.subr.mxu0 0.0
    %708 = vmatpush1.msra.mxu0 %v664
    %709 = vmatprep.subr.mxu0 0.0
    %710 = vmatpush1.msra.mxu0 %v665
    %711 = vmatprep.subr.mxu0 0.0
    %712 = vmatpush1.msra.mxu0 %v666
    %713 = vmatprep.subr.mxu0 0.0
    %714 = vmatpush1.msra.mxu0 %v667
    %715 = vmatprep.subr.mxu0 0.0
    %716 = vmatpush1.msra.mxu0 %v668
    %717 = vmatprep.subr.mxu0 0.0
    %718 = vmatpush1.msra.mxu0 %v669
    %719 = vmatprep.subr.mxu0 0.0
    %720 = vmatpush1.msra.mxu0 %v670
    %721 = vmatprep.subr.mxu0 0.0
    %722 = vmatpush1.msra.mxu0 %v671
    %723 = vmatprep.subr.mxu0 0.0
    %724 = vmatpush1.msra.mxu0 %v672
    %725 = vmatprep.subr.mxu0 0.0
    %726 = vmatpush1.msra.mxu0 %v673
    %727 = vmatprep.subr.mxu0 0.0
    %728 = vmatpush1.msra.mxu0 %v674
    %729 = vmatprep.subr.mxu0 0.0
    %730 = vmatpush1.msra.mxu0 %v675
    %731 = vmatprep.subr.mxu0 0.0
    %732 = vmatpush1.msra.mxu0 %v676
    %733 = vmatprep.subr.mxu0 0.0
    %734 = vmatpush1.msra.mxu0 %v677
    %735 = vmatprep.subr.mxu0 0.0
    %736 = vmatpush1.msra.mxu0 %v678
    %737 = vmatprep.subr.mxu0 0.0
    %738 = vmatpush1.msra.mxu0 %v679
    %739 = vmatprep.subr.mxu0 0.0
    %740 = vmatpush1.msra.mxu0 %v680
    %741 = vmatprep.subr.mxu0 0.0
    %742 = vmatpush1.msra.mxu0 %v681
    %743 = vmatprep.subr.mxu0 0.0
    %744 = vmatpush1.msra.mxu0 %v682
    %745 = vmatprep.subr.mxu0 0.0
    %746 = vmatpush1.msra.mxu0 %v683
    %747 = vmatprep.subr.mxu0 0.0
    %748 = vmatpush1.msra.mxu0 %v684
    %749 = vmatprep.mubr.f32.mxu0 %v559
    %750 = vmatmul.mubr.f32.gmra.mrb[0].mxu0 %v553
    %v751 = vpop.f32.mrb[0].mxu0
    %v752 = vadd.f32 0.0, %v751
    %v753 = vpop.f32.mrb[0].mxu0
    %754 = vmatprep.mubr.f32.mxu0 %v652
    %755 = vmatmul.mubr.f32.gmra.mrb[0].mxu0 %v651
    %v756 = vpop.f32.mrb[0].mxu0
    %v757 = vadd.f32 0.0, %v756
    %v758 = vpop.f32.mrb[0].mxu0
    %759 = vmatprep.mubr.f32.mxu0 %v646
    %760 = vmatmul.mubr.f32.gmra.mrb[0].mxu0 %v644
    %v761 = vpop.f32.mrb[0].mxu0
    %v762 = vadd.f32 0.0, %v761
    %v763 = vpop.f32.mrb[0].mxu0
    %764 = vdwg.mxu0
    %v765 = vmax.f32 %v752, 0.0
    %v766 = vmax.f32 %v757, 0.0
    %v767 = vmax.f32 %v762, 0.0
    %v769 = vrot.slane %v765, 1
    %v771 = vmax.f32 %v765, %v769
    %v773 = vrot.slane %v766, 1
    %v775 = vmax.f32 %v765, %v773
    %v777 = vrot.slane %v771, 1
    %v779 = vrot.slane %v771, 2
    %v782 = vrot.slane %v775, 3
    %v784 = vrot.slane %v766, 4
    %v786 = vsel %vm283, %v765, %v771
    %v787 = vsel %vm434, %v786, %v777
    %v788 = vsel %vm436, %v787, %v779
    %v789 = vsel %vm438, %v788, %v782
    %v790 = vsel %vm440, %v789, %v784
    %vm791 = vcmask 62464
    %792 = vst.msk [vmem:[#allocation4] sm:$0x3f] %vm791, %v790
    %v793 = vmax.f32 %v766, %v773
    %v795 = vrot.slane %v767, 1
    %v797 = vmax.f32 %v766, %v795
    %v798 = vmax.f32 %v767, %v795
    %v799 = vrot.slane %v766, 2
    %v802 = vrot.slane %v793, 2
    %v804 = vrot.slane %v793, 3
    %v807 = vrot.slane %v797, 4
    %v810 = vrot.slane %v798, 5
    %v812 = vrot.slane %v767, 6
    %v814 = vsel %vm283, %v799, %v802
    %v815 = vsel %vm434, %v814, %v804
    %v816 = vsel %vm436, %v815, %v807
    %v817 = vsel %vm438, %v816, %v810
    %v818 = vsel %vm440, %v817, %v812
    %s819 = scalar_lea.vmem [#allocation4], 8
    %820 = vst.msk [vmem:[%s819] sm:$0x3f] %vm791, %v818
    %v821 = vld [vmem:[#allocation4] sm:$0x1]
    %v822 = vld [vmem:[#allocation4 + $0x8] sm:$0x1]
    %v823 = vld [vmem:[#allocation4 + $0x1] sm:$0x1]
    %v824 = vld [vmem:[#allocation4 + $0x9] sm:$0x1]
    %v825 = vld [vmem:[#allocation4 + $0x2] sm:$0x1]
    %v826 = vld [vmem:[#allocation4 + $0xa] sm:$0x1]
    %v827 = vld [vmem:[#allocation4 + $0x3] sm:$0x1]
    %v828 = vld [vmem:[#allocation4 + $0xb] sm:$0x1]
    %v829 = vld [vmem:[#allocation4 + $0x4] sm:$0x1]
    %v830 = vld [vmem:[#allocation4 + $0xc] sm:$0x1]
    %v831 = vld [vmem:[#allocation4 + $0x5] sm:$0x1]
    %v832 = vld [vmem:[#allocation4 + $0xd] sm:$0x1]
    %v835 = vrot.slane %v822, 7
    %vm836 = vcmask 1041409
    %v837 = vsel %vm836, %v835, %v821
    %v841 = vrot.slane %v824, 7
    %v842 = vsel %vm836, %v841, %v823
    %843 = vrot.lane.b32.xlu0 %v842, 8
    %v844 = vpop.permute.xlu0 %843
    %v848 = vrot.slane %v826, 7
    %v849 = vsel %vm836, %v848, %v825
    %850 = vrot.lane.b32.xlu0 %v849, 16
    %v851 = vpop.permute.xlu0 %850
    %v855 = vrot.slane %v828, 7
    %v856 = vsel %vm836, %v855, %v827
    %857 = vrot.lane.b32.xlu0 %v856, 24
    %v858 = vpop.permute.xlu0 %857
    %v862 = vrot.slane %v830, 7
    %v863 = vsel %vm836, %v862, %v829
    %864 = vrot.lane.b32.xlu0 %v863, 32
    %v865 = vpop.permute.xlu0 %864
    %v869 = vrot.slane %v832, 7
    %v870 = vsel %vm836, %v869, %v831
    %871 = vrot.lane.b32.xlu0 %v870, 40
    %v872 = vpop.permute.xlu0 %871
    %v874 = vsel %vm214, %v837, %v844
    %v875 = vsel %vm293, %v874, %v851
    %vm876 = vcmask 195584
    %v877 = vsel %vm876, %v875, %v858
    %v878 = vsel %vm155, %v877, %v865
    %vm879 = vcmask 326656
    %v880 = vsel %vm879, %v878, %v872
    %v881 = vld [vmem:[#allocation11] sm:$0xff]
    %v882 = vld [vmem:[#allocation11 + $0x8] sm:$0xff]
    %v883 = vld [vmem:[#allocation13] sm:$0xff]
    %v884 = vld [vmem:[#allocation14] sm:$0xff]
    %v885 = vld [vmem:[#allocation14 + $0x8] sm:$0xff]
    %v886 = vld [vmem:[#allocation16] sm:$0xff]
    %v887 = vld [vmem:[#allocation16 + $0x8] sm:$0xff]
    %v888 = vld [vmem:[%s8] sm:$0x1]
    %v889 = vrot.slane %v823, 6
    %v890 = vrot.slane %v824, 5
    %vm891 = vcmask 1043459
    %v892 = vsel %vm891, %v890, %v889
    %v894 = vrot.slane %v825, 4
    %v895 = vrot.slane %v826, 3
    %vm896 = vcmask 1045509
    %v897 = vsel %vm896, %v895, %v894
    %v899 = vrot.slane %v827, 2
    %v900 = vrot.slane %v828, 1
    %vm901 = vcmask 1047559
    %v902 = vsel %vm901, %v900, %v899
    %v905 = vrot.slane %v831, 6
    %v906 = vrot.slane %v832, 5
    %v907 = vsel %vm891, %v906, %v905
    %v909 = vsel %vm434, %v837, %v892
    %v910 = vsel %vm438, %v909, %v897
    %v911 = vsel %vm442, %v910, %v902
    %v912 = vsel %vm434, %v863, %v907
    %v913 = vld [vmem:[#allocation10] sm:$0xff]
    %v915 = vsel %vm214, %v911, 0
    %v918 = vsel %vm214, %v912, 0
    %920 = vmatprep.subr.mxu0 0.0
    %921 = vmatpush1.msra.mxu0 %v913
    %922 = vmatprep.subr.mxu0 0.0
    %923 = vmatpush1.msra.mxu0 0.0
    %924 = vmatprep.subr.mxu0 0.0
    %925 = vmatpush1.msra.mxu0 0.0
    %926 = vmatprep.subr.mxu0 0.0
    %927 = vmatpush1.msra.mxu0 0.0
    %928 = vmatprep.subr.mxu0 0.0
    %929 = vmatpush1.msra.mxu0 0.0
    %930 = vmatprep.subr.mxu0 0.0
    %931 = vmatpush1.msra.mxu0 0.0
    %932 = vmatprep.subr.mxu0 0.0
    %933 = vmatpush1.msra.mxu0 0.0
    %934 = vmatprep.subr.mxu0 0.0
    %935 = vmatpush1.msra.mxu0 0.0
    %936 = vmatprep.subr.mxu0 0.0
    %937 = vmatpush1.msra.mxu0 0.0
    %938 = vmatprep.subr.mxu0 0.0
    %939 = vmatpush1.msra.mxu0 0.0
    %940 = vmatprep.subr.mxu0 0.0
    %941 = vmatpush1.msra.mxu0 0.0
    %942 = vmatprep.subr.mxu0 0.0
    %943 = vmatpush1.msra.mxu0 0.0
    %944 = vmatprep.subr.mxu0 0.0
    %945 = vmatpush1.msra.mxu0 0.0
    %946 = vmatprep.subr.mxu0 0.0
    %947 = vmatpush1.msra.mxu0 0.0
    %948 = vmatprep.subr.mxu0 0.0
    %949 = vmatpush1.msra.mxu0 0.0
    %950 = vmatprep.subr.mxu0 0.0
    %951 = vmatpush1.msra.mxu0 0.0
    %952 = vmatprep.subr.mxu0 0.0
    %953 = vmatpush1.msra.mxu0 0.0
    %954 = vmatprep.subr.mxu0 0.0
    %955 = vmatpush1.msra.mxu0 0.0
    %956 = vmatprep.subr.mxu0 0.0
    %957 = vmatpush1.msra.mxu0 0.0
    %958 = vmatprep.subr.mxu0 0.0
    %959 = vmatpush1.msra.mxu0 0.0
    %960 = vmatprep.subr.mxu0 0.0
    %961 = vmatpush1.msra.mxu0 0.0
    %962 = vmatprep.subr.mxu0 0.0
    %963 = vmatpush1.msra.mxu0 0.0
    %964 = vmatprep.subr.mxu0 0.0
    %965 = vmatpush1.msra.mxu0 0.0
    %966 = vmatprep.subr.mxu0 0.0
    %967 = vmatpush1.msra.mxu0 0.0
    %968 = vmatprep.subr.mxu0 0.0
    %969 = vmatpush1.msra.mxu0 0.0
    %970 = vmatprep.subr.mxu0 0.0
    %971 = vmatpush1.msra.mxu0 0.0
    %972 = vmatprep.subr.mxu0 0.0
    %973 = vmatpush1.msra.mxu0 0.0
    %974 = vmatprep.subr.mxu0 0.0
    %975 = vmatpush1.msra.mxu0 0.0
    %976 = vmatprep.subr.mxu0 0.0
    %977 = vmatpush1.msra.mxu0 0.0
    %978 = vmatprep.subr.mxu0 0.0
    %979 = vmatpush1.msra.mxu0 0.0
    %980 = vmatprep.subr.mxu0 0.0
    %981 = vmatpush1.msra.mxu0 0.0
    %982 = vmatprep.subr.mxu0 0.0
    %983 = vmatpush1.msra.mxu0 0.0
    %984 = vmatprep.mubr.f32.mxu0 0.0
    %985 = vmatmul.mubr.f32.gmra.mrb[0].mxu0 %v915
    %v986 = vpop.f32.mrb[0].mxu0
    %v987 = vadd.f32 0.0, %v986
    %v988 = vpop.f32.mrb[0].mxu0
    %989 = vmatprep.mubr.f32.mxu0 0.0
    %990 = vmatmul.mubr.f32.gmra.mrb[0].mxu0 %v918
    %v991 = vpop.f32.mrb[0].mxu0
    %v992 = vadd.f32 0.0, %v991
    %v993 = vpop.f32.mrb[0].mxu0
    %994 = vdwg.mxu0
    %v996 = vsel %vm293, 0.0, 0
    %998 = vmatprep.subr.mxu0 0.0
    %999 = vmatpush1.msra.mxu0 %v881
    %1000 = vmatprep.subr.mxu0 0.0
    %1001 = vmatpush1.msra.mxu0 %v882
    %1002 = vmatprep.subr.mxu0 0.0
    %1003 = vmatpush1.msra.mxu0 0.0
    %1004 = vmatprep.subr.mxu0 0.0
    %1005 = vmatpush1.msra.mxu0 0.0
    %1006 = vmatprep.subr.mxu0 0.0
    %1007 = vmatpush1.msra.mxu0 0.0
    %1008 = vmatprep.subr.mxu0 0.0
    %1009 = vmatpush1.msra.mxu0 0.0
    %1010 = vmatprep.subr.mxu0 0.0
    %1011 = vmatpush1.msra.mxu0 0.0
    %1012 = vmatprep.subr.mxu0 0.0
    %1013 = vmatpush1.msra.mxu0 0.0
    %1014 = vmatprep.subr.mxu0 0.0
    %1015 = vmatpush1.msra.mxu0 0.0
    %1016 = vmatprep.subr.mxu0 0.0
    %1017 = vmatpush1.msra.mxu0 0.0
    %1018 = vmatprep.subr.mxu0 0.0
    %1019 = vmatpush1.msra.mxu0 0.0
    %1020 = vmatprep.subr.mxu0 0.0
    %1021 = vmatpush1.msra.mxu0 0.0
    %1022 = vmatprep.subr.mxu0 0.0
    %1023 = vmatpush1.msra.mxu0 0.0
    %1024 = vmatprep.subr.mxu0 0.0
    %1025 = vmatpush1.msra.mxu0 0.0
    %1026 = vmatprep.subr.mxu0 0.0
    %1027 = vmatpush1.msra.mxu0 0.0
    %1028 = vmatprep.subr.mxu0 0.0
    %1029 = vmatpush1.msra.mxu0 0.0
    %1030 = vmatprep.subr.mxu0 0.0
    %1031 = vmatpush1.msra.mxu0 0.0
    %1032 = vmatprep.subr.mxu0 0.0
    %1033 = vmatpush1.msra.mxu0 0.0
    %1034 = vmatprep.subr.mxu0 0.0
    %1035 = vmatpush1.msra.mxu0 0.0
    %1036 = vmatprep.subr.mxu0 0.0
    %1037 = vmatpush1.msra.mxu0 0.0
    %1038 = vmatprep.subr.mxu0 0.0
    %1039 = vmatpush1.msra.mxu0 0.0
    %1040 = vmatprep.subr.mxu0 0.0
    %1041 = vmatpush1.msra.mxu0 0.0
    %1042 = vmatprep.subr.mxu0 0.0
    %1043 = vmatpush1.msra.mxu0 0.0
    %1044 = vmatprep.subr.mxu0 0.0
    %1045 = vmatpush1.msra.mxu0 0.0
    %1046 = vmatprep.subr.mxu0 0.0
    %1047 = vmatpush1.msra.mxu0 0.0
    %1048 = vmatprep.subr.mxu0 0.0
    %1049 = vmatpush1.msra.mxu0 0.0
    %1050 = vmatprep.subr.mxu0 0.0
    %1051 = vmatpush1.msra.mxu0 0.0
    %1052 = vmatprep.subr.mxu0 0.0
    %1053 = vmatpush1.msra.mxu0 0.0
    %1054 = vmatprep.subr.mxu0 0.0
    %1055 = vmatpush1.msra.mxu0 0.0
    %1056 = vmatprep.subr.mxu0 0.0
    %1057 = vmatpush1.msra.mxu0 0.0
    %1058 = vmatprep.subr.mxu0 0.0
    %1059 = vmatpush1.msra.mxu0 0.0
    %1060 = vmatprep.subr.mxu0 0.0
    %1061 = vmatpush1.msra.mxu0 0.0
    %1062 = vmatprep.mubr.f32.mxu0 0.0
    %1063 = vmatmul.mubr.f32.gmra.mrb[0].mxu0 %v996
    %v1064 = vpop.f32.mrb[0].mxu0
    %v1065 = vadd.f32 0.0, %v1064
    %v1066 = vpop.f32.mrb[0].mxu0
    %1067 = vdwg.mxu0
    %v1068 = vadd.f32 %v987, %v1065
    %v1069 = vsub.f32 0.0, %v1068
    %v1070 = vmul.f32 %v1069, 1.442695
    %v1071 = vpow.pop %v1070
    %v1072 = vadd.f32 %v1071, 1.0
    %v1073 = vrcp.pop %v1072
    %v1074 = vtanh.pop %v1068
    %v1075 = vmul.f32 %v1073, 0.0
    %1077 = vrot.lane.b32.xlu0 %v1074, 96
    %v1078 = vpop.permute.xlu0 %1077
    %v1080 = vmul.f32 %v1073, %v1078
    %1082 = vrot.lane.b32.xlu0 %v1080, 16
    %v1083 = vpop.permute.xlu0 %1082
    %v1085 = vadd.f32 %v1075, %v1083
    %v1086 = vtanh.pop %v1085
    %1088 = vrot.lane.b32.xlu0 %v1086, 32
    %v1089 = vpop.permute.xlu0 %1088
    %v1091 = vmul.f32 %v1073, %v1089
    %1093 = vrot.lane.b32.xlu0 %v1091, 80
    %v1094 = vpop.permute.xlu0 %1093
    %v1095 = vsel %vm293, %v1094, 0
    %1097 = vmatprep.subr.mxu0 0.0
    %1098 = vmatpush1.msra.mxu0 %v881
    %1099 = vmatprep.subr.mxu0 0.0
    %1100 = vmatpush1.msra.mxu0 %v882
    %1101 = vmatprep.subr.mxu0 0.0
    %1102 = vmatpush1.msra.mxu0 0.0
    %1103 = vmatprep.subr.mxu0 0.0
    %1104 = vmatpush1.msra.mxu0 0.0
    %1105 = vmatprep.subr.mxu0 0.0
    %1106 = vmatpush1.msra.mxu0 0.0
    %1107 = vmatprep.subr.mxu0 0.0
    %1108 = vmatpush1.msra.mxu0 0.0
    %1109 = vmatprep.subr.mxu0 0.0
    %1110 = vmatpush1.msra.mxu0 0.0
    %1111 = vmatprep.subr.mxu0 0.0
    %1112 = vmatpush1.msra.mxu0 0.0
    %1113 = vmatprep.subr.mxu0 0.0
    %1114 = vmatpush1.msra.mxu0 0.0
    %1115 = vmatprep.subr.mxu0 0.0
    %1116 = vmatpush1.msra.mxu0 0.0
    %1117 = vmatprep.subr.mxu0 0.0
    %1118 = vmatpush1.msra.mxu0 0.0
    %1119 = vmatprep.subr.mxu0 0.0
    %1120 = vmatpush1.msra.mxu0 0.0
    %1121 = vmatprep.subr.mxu0 0.0
    %1122 = vmatpush1.msra.mxu0 0.0
    %1123 = vmatprep.subr.mxu0 0.0
    %1124 = vmatpush1.msra.mxu0 0.0
    %1125 = vmatprep.subr.mxu0 0.0
    %1126 = vmatpush1.msra.mxu0 0.0
    %1127 = vmatprep.subr.mxu0 0.0
    %1128 = vmatpush1.msra.mxu0 0.0
    %1129 = vmatprep.subr.mxu0 0.0
    %1130 = vmatpush1.msra.mxu0 0.0
    %1131 = vmatprep.subr.mxu0 0.0
    %1132 = vmatpush1.msra.mxu0 0.0
    %1133 = vmatprep.subr.mxu0 0.0
    %1134 = vmatpush1.msra.mxu0 0.0
    %1135 = vmatprep.subr.mxu0 0.0
    %1136 = vmatpush1.msra.mxu0 0.0
    %1137 = vmatprep.subr.mxu0 0.0
    %1138 = vmatpush1.msra.mxu0 0.0
    %1139 = vmatprep.subr.mxu0 0.0
    %1140 = vmatpush1.msra.mxu0 0.0
    %1141 = vmatprep.subr.mxu0 0.0
    %1142 = vmatpush1.msra.mxu0 0.0
    %1143 = vmatprep.subr.mxu0 0.0
    %1144 = vmatpush1.msra.mxu0 0.0
    %1145 = vmatprep.subr.mxu0 0.0
    %1146 = vmatpush1.msra.mxu0 0.0
    %1147 = vmatprep.subr.mxu0 0.0
    %1148 = vmatpush1.msra.mxu0 0.0
    %1149 = vmatprep.subr.mxu0 0.0
    %1150 = vmatpush1.msra.mxu0 0.0
    %1151 = vmatprep.subr.mxu0 0.0
    %1152 = vmatpush1.msra.mxu0 0.0
    %1153 = vmatprep.subr.mxu0 0.0
    %1154 = vmatpush1.msra.mxu0 0.0
    %1155 = vmatprep.subr.mxu0 0.0
    %1156 = vmatpush1.msra.mxu0 0.0
    %1157 = vmatprep.subr.mxu0 0.0
    %1158 = vmatpush1.msra.mxu0 0.0
    %1159 = vmatprep.subr.mxu0 0.0
    %1160 = vmatpush1.msra.mxu0 0.0
    %1161 = vmatprep.mubr.f32.mxu0 0.0
    %1162 = vmatmul.mubr.f32.gmra.mrb[0].mxu0 %v1095
    %v1163 = vpop.f32.mrb[0].mxu0
    %v1164 = vadd.f32 0.0, %v1163
    %v1165 = vpop.f32.mrb[0].mxu0
    %1166 = vdwg.mxu0
    %v1168 = vrot.slane %v1164, 6
    %v1170 = vadd.f32 %v987, %v1168
    %v1171 = vsub.f32 0.0, %v1170
    %v1172 = vmul.f32 %v1171, 1.442695
    %v1173 = vpow.pop %v1172
    %v1174 = vadd.f32 %v1173, 1.0
    %v1175 = vrcp.pop %v1174
    %v1176 = vtanh.pop %v1170
    %v1178 = vrot.slane %v1085, 6
    %v1180 = vmul.f32 %v1175, %v1178
    %1182 = vrot.lane.b32.xlu0 %v1176, 96
    %v1183 = vpop.permute.xlu0 %1182
    %v1185 = vmul.f32 %v1175, %v1183
    %1187 = vrot.lane.b32.xlu0 %v1185, 16
    %v1188 = vpop.permute.xlu0 %1187
    %v1190 = vadd.f32 %v1180, %v1188
    %v1191 = vtanh.pop %v1190
    %1193 = vrot.lane.b32.xlu0 %v1191, 32
    %v1194 = vpop.permute.xlu0 %1193
    %v1196 = vmul.f32 %v1175, %v1194
    %v1198 = vrot.slane %v1196, 2
    %1199 = vrot.lane.b32.xlu0 %v1198, 80
    %v1200 = vpop.permute.xlu0 %1199
    %v1201 = vsel %vm293, %v1200, 0
    %1203 = vmatprep.subr.mxu0 0.0
    %1204 = vmatpush1.msra.mxu0 %v881
    %1205 = vmatprep.subr.mxu0 0.0
    %1206 = vmatpush1.msra.mxu0 %v882
    %1207 = vmatprep.subr.mxu0 0.0
    %1208 = vmatpush1.msra.mxu0 0.0
    %1209 = vmatprep.subr.mxu0 0.0
    %1210 = vmatpush1.msra.mxu0 0.0
    %1211 = vmatprep.subr.mxu0 0.0
    %1212 = vmatpush1.msra.mxu0 0.0
    %1213 = vmatprep.subr.mxu0 0.0
    %1214 = vmatpush1.msra.mxu0 0.0
    %1215 = vmatprep.subr.mxu0 0.0
    %1216 = vmatpush1.msra.mxu0 0.0
    %1217 = vmatprep.subr.mxu0 0.0
    %1218 = vmatpush1.msra.mxu0 0.0
    %1219 = vmatprep.subr.mxu0 0.0
    %1220 = vmatpush1.msra.mxu0 0.0
    %1221 = vmatprep.subr.mxu0 0.0
    %1222 = vmatpush1.msra.mxu0 0.0
    %1223 = vmatprep.subr.mxu0 0.0
    %1224 = vmatpush1.msra.mxu0 0.0
    %1225 = vmatprep.subr.mxu0 0.0
    %1226 = vmatpush1.msra.mxu0 0.0
    %1227 = vmatprep.subr.mxu0 0.0
    %1228 = vmatpush1.msra.mxu0 0.0
    %1229 = vmatprep.subr.mxu0 0.0
    %1230 = vmatpush1.msra.mxu0 0.0
    %1231 = vmatprep.subr.mxu0 0.0
    %1232 = vmatpush1.msra.mxu0 0.0
    %1233 = vmatprep.subr.mxu0 0.0
    %1234 = vmatpush1.msra.mxu0 0.0
    %1235 = vmatprep.subr.mxu0 0.0
    %1236 = vmatpush1.msra.mxu0 0.0
    %1237 = vmatprep.subr.mxu0 0.0
    %1238 = vmatpush1.msra.mxu0 0.0
    %1239 = vmatprep.subr.mxu0 0.0
    %1240 = vmatpush1.msra.mxu0 0.0
    %1241 = vmatprep.subr.mxu0 0.0
    %1242 = vmatpush1.msra.mxu0 0.0
    %1243 = vmatprep.subr.mxu0 0.0
    %1244 = vmatpush1.msra.mxu0 0.0
    %1245 = vmatprep.subr.mxu0 0.0
    %1246 = vmatpush1.msra.mxu0 0.0
    %1247 = vmatprep.subr.mxu0 0.0
    %1248 = vmatpush1.msra.mxu0 0.0
    %1249 = vmatprep.subr.mxu0 0.0
    %1250 = vmatpush1.msra.mxu0 0.0
    %1251 = vmatprep.subr.mxu0 0.0
    %1252 = vmatpush1.msra.mxu0 0.0
    %1253 = vmatprep.subr.mxu0 0.0
    %1254 = vmatpush1.msra.mxu0 0.0
    %1255 = vmatprep.subr.mxu0 0.0
    %1256 = vmatpush1.msra.mxu0 0.0
    %1257 = vmatprep.subr.mxu0 0.0
    %1258 = vmatpush1.msra.mxu0 0.0
    %1259 = vmatprep.subr.mxu0 0.0
    %1260 = vmatpush1.msra.mxu0 0.0
    %1261 = vmatprep.subr.mxu0 0.0
    %1262 = vmatpush1.msra.mxu0 0.0
    %1263 = vmatprep.subr.mxu0 0.0
    %1264 = vmatpush1.msra.mxu0 0.0
    %1265 = vmatprep.subr.mxu0 0.0
    %1266 = vmatpush1.msra.mxu0 0.0
    %1267 = vmatprep.mubr.f32.mxu0 0.0
    %1268 = vmatmul.mubr.f32.gmra.mrb[0].mxu0 %v1201
    %v1269 = vpop.f32.mrb[0].mxu0
    %v1270 = vadd.f32 0.0, %v1269
    %v1271 = vpop.f32.mrb[0].mxu0
    %1272 = vdwg.mxu0
    %v1274 = vrot.slane %v1270, 4
    %v1276 = vadd.f32 %v987, %v1274
    %v1277 = vsub.f32 0.0, %v1276
    %v1278 = vmul.f32 %v1277, 1.442695
    %v1279 = vpow.pop %v1278
    %v1280 = vadd.f32 %v1279, 1.0
    %v1281 = vrcp.pop %v1280
    %v1282 = vtanh.pop %v1276
    %v1284 = vrot.slane %v1190, 6
    %v1286 = vmul.f32 %v1281, %v1284
    %1288 = vrot.lane.b32.xlu0 %v1282, 96
    %v1289 = vpop.permute.xlu0 %1288
    %v1291 = vmul.f32 %v1281, %v1289
    %1293 = vrot.lane.b32.xlu0 %v1291, 16
    %v1294 = vpop.permute.xlu0 %1293
    %v1296 = vadd.f32 %v1286, %v1294
    %v1297 = vtanh.pop %v1296
    %1299 = vrot.lane.b32.xlu0 %v1297, 32
    %v1300 = vpop.permute.xlu0 %1299
    %v1302 = vmul.f32 %v1281, %v1300
    %v1304 = vrot.slane %v1302, 4
    %1305 = vrot.lane.b32.xlu0 %v1304, 80
    %v1306 = vpop.permute.xlu0 %1305
    %v1307 = vsel %vm293, %v1306, 0
    %1309 = vmatprep.subr.mxu0 0.0
    %1310 = vmatpush1.msra.mxu0 %v881
    %1311 = vmatprep.subr.mxu0 0.0
    %1312 = vmatpush1.msra.mxu0 %v882
    %1313 = vmatprep.subr.mxu0 0.0
    %1314 = vmatpush1.msra.mxu0 0.0
    %1315 = vmatprep.subr.mxu0 0.0
    %1316 = vmatpush1.msra.mxu0 0.0
    %1317 = vmatprep.subr.mxu0 0.0
    %1318 = vmatpush1.msra.mxu0 0.0
    %1319 = vmatprep.subr.mxu0 0.0
    %1320 = vmatpush1.msra.mxu0 0.0
    %1321 = vmatprep.subr.mxu0 0.0
    %1322 = vmatpush1.msra.mxu0 0.0
    %1323 = vmatprep.subr.mxu0 0.0
    %1324 = vmatpush1.msra.mxu0 0.0
    %1325 = vmatprep.subr.mxu0 0.0
    %1326 = vmatpush1.msra.mxu0 0.0
    %1327 = vmatprep.subr.mxu0 0.0
    %1328 = vmatpush1.msra.mxu0 0.0
    %1329 = vmatprep.subr.mxu0 0.0
    %1330 = vmatpush1.msra.mxu0 0.0
    %1331 = vmatprep.subr.mxu0 0.0
    %1332 = vmatpush1.msra.mxu0 0.0
    %1333 = vmatprep.subr.mxu0 0.0
    %1334 = vmatpush1.msra.mxu0 0.0
    %1335 = vmatprep.subr.mxu0 0.0
    %1336 = vmatpush1.msra.mxu0 0.0
    %1337 = vmatprep.subr.mxu0 0.0
    %1338 = vmatpush1.msra.mxu0 0.0
    %1339 = vmatprep.subr.mxu0 0.0
    %1340 = vmatpush1.msra.mxu0 0.0
    %1341 = vmatprep.subr.mxu0 0.0
    %1342 = vmatpush1.msra.mxu0 0.0
    %1343 = vmatprep.subr.mxu0 0.0
    %1344 = vmatpush1.msra.mxu0 0.0
    %1345 = vmatprep.subr.mxu0 0.0
    %1346 = vmatpush1.msra.mxu0 0.0
    %1347 = vmatprep.subr.mxu0 0.0
    %1348 = vmatpush1.msra.mxu0 0.0
    %1349 = vmatprep.subr.mxu0 0.0
    %1350 = vmatpush1.msra.mxu0 0.0
    %1351 = vmatprep.subr.mxu0 0.0
    %1352 = vmatpush1.msra.mxu0 0.0
    %1353 = vmatprep.subr.mxu0 0.0
    %1354 = vmatpush1.msra.mxu0 0.0
    %1355 = vmatprep.subr.mxu0 0.0
    %1356 = vmatpush1.msra.mxu0 0.0
    %1357 = vmatprep.subr.mxu0 0.0
    %1358 = vmatpush1.msra.mxu0 0.0
    %1359 = vmatprep.subr.mxu0 0.0
    %1360 = vmatpush1.msra.mxu0 0.0
    %1361 = vmatprep.subr.mxu0 0.0
    %1362 = vmatpush1.msra.mxu0 0.0
    %1363 = vmatprep.subr.mxu0 0.0
    %1364 = vmatpush1.msra.mxu0 0.0
    %1365 = vmatprep.subr.mxu0 0.0
    %1366 = vmatpush1.msra.mxu0 0.0
    %1367 = vmatprep.subr.mxu0 0.0
    %1368 = vmatpush1.msra.mxu0 0.0
    %1369 = vmatprep.subr.mxu0 0.0
    %1370 = vmatpush1.msra.mxu0 0.0
    %1371 = vmatprep.subr.mxu0 0.0
    %1372 = vmatpush1.msra.mxu0 0.0
    %1373 = vmatprep.mubr.f32.mxu0 0.0
    %1374 = vmatmul.mubr.f32.gmra.mrb[0].mxu0 %v1307
    %v1375 = vpop.f32.mrb[0].mxu0
    %v1376 = vadd.f32 0.0, %v1375
    %v1377 = vpop.f32.mrb[0].mxu0
    %1378 = vdwg.mxu0
    %v1380 = vrot.slane %v1376, 2
    %v1382 = vadd.f32 %v987, %v1380
    %v1383 = vsub.f32 0.0, %v1382
    %v1384 = vmul.f32 %v1383, 1.442695
    %v1385 = vpow.pop %v1384
    %v1386 = vadd.f32 %v1385, 1.0
    %v1387 = vrcp.pop %v1386
    %v1388 = vtanh.pop %v1382
    %v1390 = vrot.slane %v1296, 6
    %v1392 = vmul.f32 %v1387, %v1390
    %1394 = vrot.lane.b32.xlu0 %v1388, 96
    %v1395 = vpop.permute.xlu0 %1394
    %v1397 = vmul.f32 %v1387, %v1395
    %1399 = vrot.lane.b32.xlu0 %v1397, 16
    %v1400 = vpop.permute.xlu0 %1399
    %v1402 = vadd.f32 %v1392, %v1400
    %v1403 = vtanh.pop %v1402
    %1405 = vrot.lane.b32.xlu0 %v1403, 32
    %v1406 = vpop.permute.xlu0 %1405
    %v1408 = vmul.f32 %v1387, %v1406
    %v1410 = vrot.slane %v1408, 6
    %1411 = vrot.lane.b32.xlu0 %v1410, 80
    %v1412 = vpop.permute.xlu0 %1411
    %v1413 = vsel %vm293, %v1412, 0
    %1415 = vmatprep.subr.mxu0 0.0
    %1416 = vmatpush1.msra.mxu0 %v881
    %1417 = vmatprep.subr.mxu0 0.0
    %1418 = vmatpush1.msra.mxu0 %v882
    %1419 = vmatprep.subr.mxu0 0.0
    %1420 = vmatpush1.msra.mxu0 0.0
    %1421 = vmatprep.subr.mxu0 0.0
    %1422 = vmatpush1.msra.mxu0 0.0
    %1423 = vmatprep.subr.mxu0 0.0
    %1424 = vmatpush1.msra.mxu0 0.0
    %1425 = vmatprep.subr.mxu0 0.0
    %1426 = vmatpush1.msra.mxu0 0.0
    %1427 = vmatprep.subr.mxu0 0.0
    %1428 = vmatpush1.msra.mxu0 0.0
    %1429 = vmatprep.subr.mxu0 0.0
    %1430 = vmatpush1.msra.mxu0 0.0
    %1431 = vmatprep.subr.mxu0 0.0
    %1432 = vmatpush1.msra.mxu0 0.0
    %1433 = vmatprep.subr.mxu0 0.0
    %1434 = vmatpush1.msra.mxu0 0.0
    %1435 = vmatprep.subr.mxu0 0.0
    %1436 = vmatpush1.msra.mxu0 0.0
    %1437 = vmatprep.subr.mxu0 0.0
    %1438 = vmatpush1.msra.mxu0 0.0
    %1439 = vmatprep.subr.mxu0 0.0
    %1440 = vmatpush1.msra.mxu0 0.0
    %1441 = vmatprep.subr.mxu0 0.0
    %1442 = vmatpush1.msra.mxu0 0.0
    %1443 = vmatprep.subr.mxu0 0.0
    %1444 = vmatpush1.msra.mxu0 0.0
    %1445 = vmatprep.subr.mxu0 0.0
    %1446 = vmatpush1.msra.mxu0 0.0
    %1447 = vmatprep.subr.mxu0 0.0
    %1448 = vmatpush1.msra.mxu0 0.0
    %1449 = vmatprep.subr.mxu0 0.0
    %1450 = vmatpush1.msra.mxu0 0.0
    %1451 = vmatprep.subr.mxu0 0.0
    %1452 = vmatpush1.msra.mxu0 0.0
    %1453 = vmatprep.subr.mxu0 0.0
    %1454 = vmatpush1.msra.mxu0 0.0
    %1455 = vmatprep.subr.mxu0 0.0
    %1456 = vmatpush1.msra.mxu0 0.0
    %1457 = vmatprep.subr.mxu0 0.0
    %1458 = vmatpush1.msra.mxu0 0.0
    %1459 = vmatprep.subr.mxu0 0.0
    %1460 = vmatpush1.msra.mxu0 0.0
    %1461 = vmatprep.subr.mxu0 0.0
    %1462 = vmatpush1.msra.mxu0 0.0
    %1463 = vmatprep.subr.mxu0 0.0
    %1464 = vmatpush1.msra.mxu0 0.0
    %1465 = vmatprep.subr.mxu0 0.0
    %1466 = vmatpush1.msra.mxu0 0.0
    %1467 = vmatprep.subr.mxu0 0.0
    %1468 = vmatpush1.msra.mxu0 0.0
    %1469 = vmatprep.subr.mxu0 0.0
    %1470 = vmatpush1.msra.mxu0 0.0
    %1471 = vmatprep.subr.mxu0 0.0
    %1472 = vmatpush1.msra.mxu0 0.0
    %1473 = vmatprep.subr.mxu0 0.0
    %1474 = vmatpush1.msra.mxu0 0.0
    %1475 = vmatprep.subr.mxu0 0.0
    %1476 = vmatpush1.msra.mxu0 0.0
    %1477 = vmatprep.subr.mxu0 0.0
    %1478 = vmatpush1.msra.mxu0 0.0
    %1479 = vmatprep.mubr.f32.mxu0 0.0
    %1480 = vmatmul.mubr.f32.gmra.mrb[0].mxu0 %v1413
    %v1481 = vpop.f32.mrb[0].mxu0
    %v1482 = vadd.f32 0.0, %v1481
    %v1483 = vpop.f32.mrb[0].mxu0
    %1484 = vdwg.mxu0
    %v1485 = vadd.f32 %v992, %v1482
    %v1486 = vsub.f32 0.0, %v1485
    %v1487 = vmul.f32 %v1486, 1.442695
    %v1488 = vpow.pop %v1487
    %v1489 = vadd.f32 %v1488, 1.0
    %v1490 = vrcp.pop %v1489
    %v1491 = vtanh.pop %v1485
    %v1493 = vrot.slane %v1402, 6
    %v1495 = vmul.f32 %v1490, %v1493
    %1497 = vrot.lane.b32.xlu0 %v1491, 96
    %v1498 = vpop.permute.xlu0 %1497
    %v1500 = vmul.f32 %v1490, %v1498
    %1502 = vrot.lane.b32.xlu0 %v1500, 16
    %v1503 = vpop.permute.xlu0 %1502
    %v1505 = vadd.f32 %v1495, %v1503
    %v1506 = vtanh.pop %v1505
    %1508 = vrot.lane.b32.xlu0 %v1506, 32
    %v1509 = vpop.permute.xlu0 %1508
    %v1511 = vmul.f32 %v1490, %v1509
    %1513 = vrot.lane.b32.xlu0 %v1511, 80
    %v1514 = vpop.permute.xlu0 %1513
    %v1515 = vsel %vm293, %v1514, 0
    %1517 = vmatprep.subr.mxu0 0.0
    %1518 = vmatpush1.msra.mxu0 %v881
    %1519 = vmatprep.subr.mxu0 0.0
    %1520 = vmatpush1.msra.mxu0 %v882
    %1521 = vmatprep.subr.mxu0 0.0
    %1522 = vmatpush1.msra.mxu0 0.0
    %1523 = vmatprep.subr.mxu0 0.0
    %1524 = vmatpush1.msra.mxu0 0.0
    %1525 = vmatprep.subr.mxu0 0.0
    %1526 = vmatpush1.msra.mxu0 0.0
    %1527 = vmatprep.subr.mxu0 0.0
    %1528 = vmatpush1.msra.mxu0 0.0
    %1529 = vmatprep.subr.mxu0 0.0
    %1530 = vmatpush1.msra.mxu0 0.0
    %1531 = vmatprep.subr.mxu0 0.0
    %1532 = vmatpush1.msra.mxu0 0.0
    %1533 = vmatprep.subr.mxu0 0.0
    %1534 = vmatpush1.msra.mxu0 0.0
    %1535 = vmatprep.subr.mxu0 0.0
    %1536 = vmatpush1.msra.mxu0 0.0
    %1537 = vmatprep.subr.mxu0 0.0
    %1538 = vmatpush1.msra.mxu0 0.0
    %1539 = vmatprep.subr.mxu0 0.0
    %1540 = vmatpush1.msra.mxu0 0.0
    %1541 = vmatprep.subr.mxu0 0.0
    %1542 = vmatpush1.msra.mxu0 0.0
    %1543 = vmatprep.subr.mxu0 0.0
    %1544 = vmatpush1.msra.mxu0 0.0
    %1545 = vmatprep.subr.mxu0 0.0
    %1546 = vmatpush1.msra.mxu0 0.0
    %1547 = vmatprep.subr.mxu0 0.0
    %1548 = vmatpush1.msra.mxu0 0.0
    %1549 = vmatprep.subr.mxu0 0.0
    %1550 = vmatpush1.msra.mxu0 0.0
    %1551 = vmatprep.subr.mxu0 0.0
    %1552 = vmatpush1.msra.mxu0 0.0
    %1553 = vmatprep.subr.mxu0 0.0
    %1554 = vmatpush1.msra.mxu0 0.0
    %1555 = vmatprep.subr.mxu0 0.0
    %1556 = vmatpush1.msra.mxu0 0.0
    %1557 = vmatprep.subr.mxu0 0.0
    %1558 = vmatpush1.msra.mxu0 0.0
    %1559 = vmatprep.subr.mxu0 0.0
    %1560 = vmatpush1.msra.mxu0 0.0
    %1561 = vmatprep.subr.mxu0 0.0
    %1562 = vmatpush1.msra.mxu0 0.0
    %1563 = vmatprep.subr.mxu0 0.0
    %1564 = vmatpush1.msra.mxu0 0.0
    %1565 = vmatprep.subr.mxu0 0.0
    %1566 = vmatpush1.msra.mxu0 0.0
    %1567 = vmatprep.subr.mxu0 0.0
    %1568 = vmatpush1.msra.mxu0 0.0
    %1569 = vmatprep.subr.mxu0 0.0
    %1570 = vmatpush1.msra.mxu0 0.0
    %1571 = vmatprep.subr.mxu0 0.0
    %1572 = vmatpush1.msra.mxu0 0.0
    %1573 = vmatprep.subr.mxu0 0.0
    %1574 = vmatpush1.msra.mxu0 0.0
    %1575 = vmatprep.subr.mxu0 0.0
    %1576 = vmatpush1.msra.mxu0 0.0
    %1577 = vmatprep.subr.mxu0 0.0
    %1578 = vmatpush1.msra.mxu0 0.0
    %1579 = vmatprep.subr.mxu0 0.0
    %1580 = vmatpush1.msra.mxu0 0.0
    %1581 = vmatprep.mubr.f32.mxu0 0.0
    %1582 = vmatmul.mubr.f32.gmra.mrb[0].mxu0 %v1515
    %v1583 = vpop.f32.mrb[0].mxu0
    %v1584 = vadd.f32 0.0, %v1583
    %v1585 = vpop.f32.mrb[0].mxu0
    %1586 = vdwg.mxu0
    %v1588 = vrot.slane %v1584, 6
    %v1590 = vadd.f32 %v992, %v1588
    %v1591 = vsub.f32 0.0, %v1590
    %v1592 = vmul.f32 %v1591, 1.442695
    %v1593 = vpow.pop %v1592
    %v1594 = vadd.f32 %v1593, 1.0
    %v1595 = vrcp.pop %v1594
    %v1596 = vtanh.pop %v1590
    %v1598 = vrot.slane %v1505, 6
    %v1600 = vmul.f32 %v1595, %v1598
    %1602 = vrot.lane.b32.xlu0 %v1596, 96
    %v1603 = vpop.permute.xlu0 %1602
    %v1605 = vmul.f32 %v1595, %v1603
    %1607 = vrot.lane.b32.xlu0 %v1605, 16
    %v1608 = vpop.permute.xlu0 %1607
    %v1610 = vadd.f32 %v1600, %v1608
    %v1611 = vtanh.pop %v1610
    %1613 = vrot.lane.b32.xlu0 %v1611, 32
    %v1614 = vpop.permute.xlu0 %1613
    %v1616 = vmul.f32 %v1595, %v1614
    %v1618 = vlaneseq
    %v1619 = vshrl.u32 %v1618, 7
    %v1620 = vsub.s32 0, %v1619
    %v1621 = vrot.slane %v888, %v1620
    %v1624 = vrot.slane %v1616, 2
    %1625 = vrot.lane.b32.xlu0 %v1624, 80
    %v1626 = vpop.permute.xlu0 %1625
    %v1627 = vsel %vm293, %v1626, 0
    %1629 = vmatprep.subr.mxu0 0.0
    %1630 = vmatpush1.msra.mxu0 %v886
    %1631 = vmatprep.subr.mxu0 0.0
    %1632 = vmatpush1.msra.mxu0 %v887
    %1633 = vmatprep.subr.mxu0 0.0
    %1634 = vmatpush1.msra.mxu0 0.0
    %1635 = vmatprep.subr.mxu0 0.0
    %1636 = vmatpush1.msra.mxu0 0.0
    %1637 = vmatprep.subr.mxu0 0.0
    %1638 = vmatpush1.msra.mxu0 0.0
    %1639 = vmatprep.subr.mxu0 0.0
    %1640 = vmatpush1.msra.mxu0 0.0
    %1641 = vmatprep.subr.mxu0 0.0
    %1642 = vmatpush1.msra.mxu0 0.0
    %1643 = vmatprep.subr.mxu0 0.0
    %1644 = vmatpush1.msra.mxu0 0.0
    %1645 = vmatprep.subr.mxu0 0.0
    %1646 = vmatpush1.msra.mxu0 0.0
    %1647 = vmatprep.subr.mxu0 0.0
    %1648 = vmatpush1.msra.mxu0 0.0
    %1649 = vmatprep.subr.mxu0 0.0
    %1650 = vmatpush1.msra.mxu0 0.0
    %1651 = vmatprep.subr.mxu0 0.0
    %1652 = vmatpush1.msra.mxu0 0.0
    %1653 = vmatprep.subr.mxu0 0.0
    %1654 = vmatpush1.msra.mxu0 0.0
    %1655 = vmatprep.subr.mxu0 0.0
    %1656 = vmatpush1.msra.mxu0 0.0
    %1657 = vmatprep.subr.mxu0 0.0
    %1658 = vmatpush1.msra.mxu0 0.0
    %1659 = vmatprep.subr.mxu0 0.0
    %1660 = vmatpush1.msra.mxu0 0.0
    %1661 = vmatprep.subr.mxu0 0.0
    %1662 = vmatpush1.msra.mxu0 0.0
    %1663 = vmatprep.subr.mxu0 0.0
    %1664 = vmatpush1.msra.mxu0 0.0
    %1665 = vmatprep.subr.mxu0 0.0
    %1666 = vmatpush1.msra.mxu0 0.0
    %1667 = vmatprep.subr.mxu0 0.0
    %1668 = vmatpush1.msra.mxu0 0.0
    %1669 = vmatprep.subr.mxu0 0.0
    %1670 = vmatpush1.msra.mxu0 0.0
    %1671 = vmatprep.subr.mxu0 0.0
    %1672 = vmatpush1.msra.mxu0 0.0
    %1673 = vmatprep.subr.mxu0 0.0
    %1674 = vmatpush1.msra.mxu0 0.0
    %1675 = vmatprep.subr.mxu0 0.0
    %1676 = vmatpush1.msra.mxu0 0.0
    %1677 = vmatprep.subr.mxu0 0.0
    %1678 = vmatpush1.msra.mxu0 0.0
    %1679 = vmatprep.subr.mxu0 0.0
    %1680 = vmatpush1.msra.mxu0 0.0
    %1681 = vmatprep.subr.mxu0 0.0
    %1682 = vmatpush1.msra.mxu0 0.0
    %1683 = vmatprep.subr.mxu0 0.0
    %1684 = vmatpush1.msra.mxu0 0.0
    %1685 = vmatprep.subr.mxu0 0.0
    %1686 = vmatpush1.msra.mxu0 0.0
    %1687 = vmatprep.subr.mxu0 0.0
    %1688 = vmatpush1.msra.mxu0 0.0
    %1689 = vmatprep.subr.mxu0 0.0
    %1690 = vmatpush1.msra.mxu0 0.0
    %1691 = vmatprep.subr.mxu0 0.0
    %1692 = vmatpush1.msra.mxu0 0.0
    %1693 = vmatprep.mubr.f32.mxu0 0.0
    %1694 = vmatmul.mubr.f32.gmra.mrb[0].mxu0 %v1627
    %v1695 = vpop.f32.mrb[0].mxu0
    %v1696 = vadd.f32 %v1621, %v1695
    %v1697 = vpop.f32.mrb[0].mxu0
    %1698 = vdwg.mxu0
    %1699 = vmatprep.subr.mxu0 0.0
    %1700 = vmatpush1.msra.mxu0 %v884
    %1701 = vmatprep.subr.mxu0 0.0
    %1702 = vmatpush1.msra.mxu0 %v885
    %1703 = vmatprep.subr.mxu0 0.0
    %1704 = vmatpush1.msra.mxu0 0.0
    %1705 = vmatprep.subr.mxu0 0.0
    %1706 = vmatpush1.msra.mxu0 0.0
    %1707 = vmatprep.subr.mxu0 0.0
    %1708 = vmatpush1.msra.mxu0 0.0
    %1709 = vmatprep.subr.mxu0 0.0
    %1710 = vmatpush1.msra.mxu0 0.0
    %1711 = vmatprep.subr.mxu0 0.0
    %1712 = vmatpush1.msra.mxu0 0.0
    %1713 = vmatprep.subr.mxu0 0.0
    %1714 = vmatpush1.msra.mxu0 0.0
    %1715 = vmatprep.subr.mxu0 0.0
    %1716 = vmatpush1.msra.mxu0 0.0
    %1717 = vmatprep.subr.mxu0 0.0
    %1718 = vmatpush1.msra.mxu0 0.0
    %1719 = vmatprep.subr.mxu0 0.0
    %1720 = vmatpush1.msra.mxu0 0.0
    %1721 = vmatprep.subr.mxu0 0.0
    %1722 = vmatpush1.msra.mxu0 0.0
    %1723 = vmatprep.subr.mxu0 0.0
    %1724 = vmatpush1.msra.mxu0 0.0
    %1725 = vmatprep.subr.mxu0 0.0
    %1726 = vmatpush1.msra.mxu0 0.0
    %1727 = vmatprep.subr.mxu0 0.0
    %1728 = vmatpush1.msra.mxu0 0.0
    %1729 = vmatprep.subr.mxu0 0.0
    %1730 = vmatpush1.msra.mxu0 0.0
    %1731 = vmatprep.subr.mxu0 0.0
    %1732 = vmatpush1.msra.mxu0 0.0
    %1733 = vmatprep.subr.mxu0 0.0
    %1734 = vmatpush1.msra.mxu0 0.0
    %1735 = vmatprep.subr.mxu0 0.0
    %1736 = vmatpush1.msra.mxu0 0.0
    %1737 = vmatprep.subr.mxu0 0.0
    %1738 = vmatpush1.msra.mxu0 0.0
    %1739 = vmatprep.subr.mxu0 0.0
    %1740 = vmatpush1.msra.mxu0 0.0
    %1741 = vmatprep.subr.mxu0 0.0
    %1742 = vmatpush1.msra.mxu0 0.0
    %1743 = vmatprep.subr.mxu0 0.0
    %1744 = vmatpush1.msra.mxu0 0.0
    %1745 = vmatprep.subr.mxu0 0.0
    %1746 = vmatpush1.msra.mxu0 0.0
    %1747 = vmatprep.subr.mxu0 0.0
    %1748 = vmatpush1.msra.mxu0 0.0
    %1749 = vmatprep.subr.mxu0 0.0
    %1750 = vmatpush1.msra.mxu0 0.0
    %1751 = vmatprep.subr.mxu0 0.0
    %1752 = vmatpush1.msra.mxu0 0.0
    %1753 = vmatprep.subr.mxu0 0.0
    %1754 = vmatpush1.msra.mxu0 0.0
    %1755 = vmatprep.subr.mxu0 0.0
    %1756 = vmatpush1.msra.mxu0 0.0
    %1757 = vmatprep.subr.mxu0 0.0
    %1758 = vmatpush1.msra.mxu0 0.0
    %1759 = vmatprep.subr.mxu0 0.0
    %1760 = vmatpush1.msra.mxu0 0.0
    %1761 = vmatprep.subr.mxu0 0.0
    %1762 = vmatpush1.msra.mxu0 0.0
    %1763 = vmatprep.mubr.f32.mxu0 0.0
    %1764 = vmatmul.mubr.f32.gmra.mrb[0].mxu0 %v1627
    %v1765 = vpop.f32.mrb[0].mxu0
    %v1766 = vadd.f32 0.0, %v1765
    %v1767 = vpop.f32.mrb[0].mxu0
    %1768 = vdwg.mxu0
    %v1770 = vsel %vm214, %v1696, 0
    %1772 = vmatprep.subr.mxu0 0.0
    %1773 = vmatpush1.msra.mxu0 %v883
    %1774 = vmatprep.subr.mxu0 0.0
    %1775 = vmatpush1.msra.mxu0 0.0
    %1776 = vmatprep.subr.mxu0 0.0
    %1777 = vmatpush1.msra.mxu0 0.0
    %1778 = vmatprep.subr.mxu0 0.0
    %1779 = vmatpush1.msra.mxu0 0.0
    %1780 = vmatprep.subr.mxu0 0.0
    %1781 = vmatpush1.msra.mxu0 0.0
    %1782 = vmatprep.subr.mxu0 0.0
    %1783 = vmatpush1.msra.mxu0 0.0
    %1784 = vmatprep.subr.mxu0 0.0
    %1785 = vmatpush1.msra.mxu0 0.0
    %1786 = vmatprep.subr.mxu0 0.0
    %1787 = vmatpush1.msra.mxu0 0.0
    %1788 = vmatprep.subr.mxu0 0.0
    %1789 = vmatpush1.msra.mxu0 0.0
    %1790 = vmatprep.subr.mxu0 0.0
    %1791 = vmatpush1.msra.mxu0 0.0
    %1792 = vmatprep.subr.mxu0 0.0
    %1793 = vmatpush1.msra.mxu0 0.0
    %1794 = vmatprep.subr.mxu0 0.0
    %1795 = vmatpush1.msra.mxu0 0.0
    %1796 = vmatprep.subr.mxu0 0.0
    %1797 = vmatpush1.msra.mxu0 0.0
    %1798 = vmatprep.subr.mxu0 0.0
    %1799 = vmatpush1.msra.mxu0 0.0
    %1800 = vmatprep.subr.mxu0 0.0
    %1801 = vmatpush1.msra.mxu0 0.0
    %1802 = vmatprep.subr.mxu0 0.0
    %1803 = vmatpush1.msra.mxu0 0.0
    %1804 = vmatprep.subr.mxu0 0.0
    %1805 = vmatpush1.msra.mxu0 0.0
    %1806 = vmatprep.subr.mxu0 0.0
    %1807 = vmatpush1.msra.mxu0 0.0
    %1808 = vmatprep.subr.mxu0 0.0
    %1809 = vmatpush1.msra.mxu0 0.0
    %1810 = vmatprep.subr.mxu0 0.0
    %1811 = vmatpush1.msra.mxu0 0.0
    %1812 = vmatprep.subr.mxu0 0.0
    %1813 = vmatpush1.msra.mxu0 0.0
    %1814 = vmatprep.subr.mxu0 0.0
    %1815 = vmatpush1.msra.mxu0 0.0
    %1816 = vmatprep.subr.mxu0 0.0
    %1817 = vmatpush1.msra.mxu0 0.0
    %1818 = vmatprep.subr.mxu0 0.0
    %1819 = vmatpush1.msra.mxu0 0.0
    %1820 = vmatprep.subr.mxu0 0.0
    %1821 = vmatpush1.msra.mxu0 0.0
    %1822 = vmatprep.subr.mxu0 0.0
    %1823 = vmatpush1.msra.mxu0 0.0
    %1824 = vmatprep.subr.mxu0 0.0
    %1825 = vmatpush1.msra.mxu0 0.0
    %1826 = vmatprep.subr.mxu0 0.0
    %1827 = vmatpush1.msra.mxu0 0.0
    %1828 = vmatprep.subr.mxu0 0.0
    %1829 = vmatpush1.msra.mxu0 0.0
    %1830 = vmatprep.subr.mxu0 0.0
    %1831 = vmatpush1.msra.mxu0 0.0
    %1832 = vmatprep.subr.mxu0 0.0
    %1833 = vmatpush1.msra.mxu0 0.0
    %1834 = vmatprep.subr.mxu0 0.0
    %1835 = vmatpush1.msra.mxu0 0.0
    %1836 = vmatprep.mubr.f32.mxu0 0.0
    %1837 = vmatmul.mubr.f32.gmra.mrb[0].mxu0 %v1770
    %v1838 = vpop.f32.mrb[0].mxu0
    %v1839 = vadd.f32 %v1766, %v1838
    %v1840 = vpop.f32.mrb[0].mxu0
    %1841 = vdwg.mxu0
    %v1842 = vsub.f32 0.0, %v1839
    %v1843 = vmul.f32 %v1842, 1.442695
    %v1844 = vpow.pop %v1843
    %v1845 = vadd.f32 %v1844, 1.0
    %v1846 = vrcp.pop %v1845
    %v1847 = vtanh.pop %v1839
    %v1849 = vrot.slane %v1610, 2
    %v1851 = vmul.f32 %v1846, %v1849
    %1853 = vrot.lane.b32.xlu0 %v1847, 96
    %v1854 = vpop.permute.xlu0 %1853
    %v1856 = vmul.f32 %v1846, %v1854
    %1858 = vrot.lane.b32.xlu0 %v1856, 16
    %v1859 = vpop.permute.xlu0 %1858
    %v1861 = vadd.f32 %v1851, %v1859
    %v1862 = vtanh.pop %v1861
    %1864 = vrot.lane.b32.xlu0 %v1862, 32
    %v1865 = vpop.permute.xlu0 %1864
    %v1867 = vmul.f32 %v1846, %v1865
    %1869 = vrot.lane.b32.xlu0 %v1867, 80
    %v1870 = vpop.permute.xlu0 %1869
    %v1871 = vsel %vm293, %v1870, 0
    %1873 = vmatprep.subr.mxu0 0.0
    %1874 = vmatpush1.msra.mxu0 %v886
    %1875 = vmatprep.subr.mxu0 0.0
    %1876 = vmatpush1.msra.mxu0 %v887
    %1877 = vmatprep.subr.mxu0 0.0
    %1878 = vmatpush1.msra.mxu0 0.0
    %1879 = vmatprep.subr.mxu0 0.0
    %1880 = vmatpush1.msra.mxu0 0.0
    %1881 = vmatprep.subr.mxu0 0.0
    %1882 = vmatpush1.msra.mxu0 0.0
    %1883 = vmatprep.subr.mxu0 0.0
    %1884 = vmatpush1.msra.mxu0 0.0
    %1885 = vmatprep.subr.mxu0 0.0
    %1886 = vmatpush1.msra.mxu0 0.0
    %1887 = vmatprep.subr.mxu0 0.0
    %1888 = vmatpush1.msra.mxu0 0.0
    %1889 = vmatprep.subr.mxu0 0.0
    %1890 = vmatpush1.msra.mxu0 0.0
    %1891 = vmatprep.subr.mxu0 0.0
    %1892 = vmatpush1.msra.mxu0 0.0
    %1893 = vmatprep.subr.mxu0 0.0
    %1894 = vmatpush1.msra.mxu0 0.0
    %1895 = vmatprep.subr.mxu0 0.0
    %1896 = vmatpush1.msra.mxu0 0.0
    %1897 = vmatprep.subr.mxu0 0.0
    %1898 = vmatpush1.msra.mxu0 0.0
    %1899 = vmatprep.subr.mxu0 0.0
    %1900 = vmatpush1.msra.mxu0 0.0
    %1901 = vmatprep.subr.mxu0 0.0
    %1902 = vmatpush1.msra.mxu0 0.0
    %1903 = vmatprep.subr.mxu0 0.0
    %1904 = vmatpush1.msra.mxu0 0.0
    %1905 = vmatprep.subr.mxu0 0.0
    %1906 = vmatpush1.msra.mxu0 0.0
    %1907 = vmatprep.subr.mxu0 0.0
    %1908 = vmatpush1.msra.mxu0 0.0
    %1909 = vmatprep.subr.mxu0 0.0
    %1910 = vmatpush1.msra.mxu0 0.0
    %1911 = vmatprep.subr.mxu0 0.0
    %1912 = vmatpush1.msra.mxu0 0.0
    %1913 = vmatprep.subr.mxu0 0.0
    %1914 = vmatpush1.msra.mxu0 0.0
    %1915 = vmatprep.subr.mxu0 0.0
    %1916 = vmatpush1.msra.mxu0 0.0
    %1917 = vmatprep.subr.mxu0 0.0
    %1918 = vmatpush1.msra.mxu0 0.0
    %1919 = vmatprep.subr.mxu0 0.0
    %1920 = vmatpush1.msra.mxu0 0.0
    %1921 = vmatprep.subr.mxu0 0.0
    %1922 = vmatpush1.msra.mxu0 0.0
    %1923 = vmatprep.subr.mxu0 0.0
    %1924 = vmatpush1.msra.mxu0 0.0
    %1925 = vmatprep.subr.mxu0 0.0
    %1926 = vmatpush1.msra.mxu0 0.0
    %1927 = vmatprep.subr.mxu0 0.0
    %1928 = vmatpush1.msra.mxu0 0.0
    %1929 = vmatprep.subr.mxu0 0.0
    %1930 = vmatpush1.msra.mxu0 0.0
    %1931 = vmatprep.subr.mxu0 0.0
    %1932 = vmatpush1.msra.mxu0 0.0
    %1933 = vmatprep.subr.mxu0 0.0
    %1934 = vmatpush1.msra.mxu0 0.0
    %1935 = vmatprep.subr.mxu0 0.0
    %1936 = vmatpush1.msra.mxu0 0.0
    %1937 = vmatprep.mubr.f32.mxu0 0.0
    %1938 = vmatmul.mubr.f32.gmra.mrb[0].mxu0 %v1871
    %v1939 = vpop.f32.mrb[0].mxu0
    %v1940 = vadd.f32 %v1621, %v1939
    %v1941 = vpop.f32.mrb[0].mxu0
    %1942 = vdwg.mxu0
    %1943 = vmatprep.subr.mxu0 0.0
    %1944 = vmatpush1.msra.mxu0 %v884
    %1945 = vmatprep.subr.mxu0 0.0
    %1946 = vmatpush1.msra.mxu0 %v885
    %1947 = vmatprep.subr.mxu0 0.0
    %1948 = vmatpush1.msra.mxu0 0.0
    %1949 = vmatprep.subr.mxu0 0.0
    %1950 = vmatpush1.msra.mxu0 0.0
    %1951 = vmatprep.subr.mxu0 0.0
    %1952 = vmatpush1.msra.mxu0 0.0
    %1953 = vmatprep.subr.mxu0 0.0
    %1954 = vmatpush1.msra.mxu0 0.0
    %1955 = vmatprep.subr.mxu0 0.0
    %1956 = vmatpush1.msra.mxu0 0.0
    %1957 = vmatprep.subr.mxu0 0.0
    %1958 = vmatpush1.msra.mxu0 0.0
    %1959 = vmatprep.subr.mxu0 0.0
    %1960 = vmatpush1.msra.mxu0 0.0
    %1961 = vmatprep.subr.mxu0 0.0
    %1962 = vmatpush1.msra.mxu0 0.0
    %1963 = vmatprep.subr.mxu0 0.0
    %1964 = vmatpush1.msra.mxu0 0.0
    %1965 = vmatprep.subr.mxu0 0.0
    %1966 = vmatpush1.msra.mxu0 0.0
    %1967 = vmatprep.subr.mxu0 0.0
    %1968 = vmatpush1.msra.mxu0 0.0
    %1969 = vmatprep.subr.mxu0 0.0
    %1970 = vmatpush1.msra.mxu0 0.0
    %1971 = vmatprep.subr.mxu0 0.0
    %1972 = vmatpush1.msra.mxu0 0.0
    %1973 = vmatprep.subr.mxu0 0.0
    %1974 = vmatpush1.msra.mxu0 0.0
    %1975 = vmatprep.subr.mxu0 0.0
    %1976 = vmatpush1.msra.mxu0 0.0
    %1977 = vmatprep.subr.mxu0 0.0
    %1978 = vmatpush1.msra.mxu0 0.0
    %1979 = vmatprep.subr.mxu0 0.0
    %1980 = vmatpush1.msra.mxu0 0.0
    %1981 = vmatprep.subr.mxu0 0.0
    %1982 = vmatpush1.msra.mxu0 0.0
    %1983 = vmatprep.subr.mxu0 0.0
    %1984 = vmatpush1.msra.mxu0 0.0
    %1985 = vmatprep.subr.mxu0 0.0
    %1986 = vmatpush1.msra.mxu0 0.0
    %1987 = vmatprep.subr.mxu0 0.0
    %1988 = vmatpush1.msra.mxu0 0.0
    %1989 = vmatprep.subr.mxu0 0.0
    %1990 = vmatpush1.msra.mxu0 0.0
    %1991 = vmatprep.subr.mxu0 0.0
    %1992 = vmatpush1.msra.mxu0 0.0
    %1993 = vmatprep.subr.mxu0 0.0
    %1994 = vmatpush1.msra.mxu0 0.0
    %1995 = vmatprep.subr.mxu0 0.0
    %1996 = vmatpush1.msra.mxu0 0.0
    %1997 = vmatprep.subr.mxu0 0.0
    %1998 = vmatpush1.msra.mxu0 0.0
    %1999 = vmatprep.subr.mxu0 0.0
    %2000 = vmatpush1.msra.mxu0 0.0
    %2001 = vmatprep.subr.mxu0 0.0
    %2002 = vmatpush1.msra.mxu0 0.0
    %2003 = vmatprep.subr.mxu0 0.0
    %2004 = vmatpush1.msra.mxu0 0.0
    %2005 = vmatprep.subr.mxu0 0.0
    %2006 = vmatpush1.msra.mxu0 0.0
    %2007 = vmatprep.mubr.f32.mxu0 0.0
    %2008 = vmatmul.mubr.f32.gmra.mrb[0].mxu0 %v1871
    %v2009 = vpop.f32.mrb[0].mxu0
    %v2010 = vadd.f32 0.0, %v2009
    %v2011 = vpop.f32.mrb[0].mxu0
    %2012 = vdwg.mxu0
    %v2014 = vsel %vm214, %v1940, 0
    %2016 = vmatprep.subr.mxu0 0.0
    %2017 = vmatpush1.msra.mxu0 %v883
    %2018 = vmatprep.subr.mxu0 0.0
    %2019 = vmatpush1.msra.mxu0 0.0
    %2020 = vmatprep.subr.mxu0 0.0
    %2021 = vmatpush1.msra.mxu0 0.0
    %2022 = vmatprep.subr.mxu0 0.0
    %2023 = vmatpush1.msra.mxu0 0.0
    %2024 = vmatprep.subr.mxu0 0.0
    %2025 = vmatpush1.msra.mxu0 0.0
    %2026 = vmatprep.subr.mxu0 0.0
    %2027 = vmatpush1.msra.mxu0 0.0
    %2028 = vmatprep.subr.mxu0 0.0
    %2029 = vmatpush1.msra.mxu0 0.0
    %2030 = vmatprep.subr.mxu0 0.0
    %2031 = vmatpush1.msra.mxu0 0.0
    %2032 = vmatprep.subr.mxu0 0.0
    %2033 = vmatpush1.msra.mxu0 0.0
    %2034 = vmatprep.subr.mxu0 0.0
    %2035 = vmatpush1.msra.mxu0 0.0
    %2036 = vmatprep.subr.mxu0 0.0
    %2037 = vmatpush1.msra.mxu0 0.0
    %2038 = vmatprep.subr.mxu0 0.0
    %2039 = vmatpush1.msra.mxu0 0.0
    %2040 = vmatprep.subr.mxu0 0.0
    %2041 = vmatpush1.msra.mxu0 0.0
    %2042 = vmatprep.subr.mxu0 0.0
    %2043 = vmatpush1.msra.mxu0 0.0
    %2044 = vmatprep.subr.mxu0 0.0
    %2045 = vmatpush1.msra.mxu0 0.0
    %2046 = vmatprep.subr.mxu0 0.0
    %2047 = vmatpush1.msra.mxu0 0.0
    %2048 = vmatprep.subr.mxu0 0.0
    %2049 = vmatpush1.msra.mxu0 0.0
    %2050 = vmatprep.subr.mxu0 0.0
    %2051 = vmatpush1.msra.mxu0 0.0
    %2052 = vmatprep.subr.mxu0 0.0
    %2053 = vmatpush1.msra.mxu0 0.0
    %2054 = vmatprep.subr.mxu0 0.0
    %2055 = vmatpush1.msra.mxu0 0.0
    %2056 = vmatprep.subr.mxu0 0.0
    %2057 = vmatpush1.msra.mxu0 0.0
    %2058 = vmatprep.subr.mxu0 0.0
    %2059 = vmatpush1.msra.mxu0 0.0
    %2060 = vmatprep.subr.mxu0 0.0
    %2061 = vmatpush1.msra.mxu0 0.0
    %2062 = vmatprep.subr.mxu0 0.0
    %2063 = vmatpush1.msra.mxu0 0.0
    %2064 = vmatprep.subr.mxu0 0.0
    %2065 = vmatpush1.msra.mxu0 0.0
    %2066 = vmatprep.subr.mxu0 0.0
    %2067 = vmatpush1.msra.mxu0 0.0
    %2068 = vmatprep.subr.mxu0 0.0
    %2069 = vmatpush1.msra.mxu0 0.0
    %2070 = vmatprep.subr.mxu0 0.0
    %2071 = vmatpush1.msra.mxu0 0.0
    %2072 = vmatprep.subr.mxu0 0.0
    %2073 = vmatpush1.msra.mxu0 0.0
    %2074 = vmatprep.subr.mxu0 0.0
    %2075 = vmatpush1.msra.mxu0 0.0
    %2076 = vmatprep.subr.mxu0 0.0
    %2077 = vmatpush1.msra.mxu0 0.0
    %2078 = vmatprep.subr.mxu0 0.0
    %2079 = vmatpush1.msra.mxu0 0.0
    %2080 = vmatprep.mubr.f32.mxu0 0.0
    %2081 = vmatmul.mubr.f32.gmra.mrb[0].mxu0 %v2014
    %v2082 = vpop.f32.mrb[0].mxu0
    %v2083 = vadd.f32 %v2010, %v2082
    %v2084 = vpop.f32.mrb[0].mxu0
    %2085 = vdwg.mxu0
    %v2086 = vsub.f32 0.0, %v2083
    %v2087 = vmul.f32 %v2086, 1.442695
    %v2088 = vpow.pop %v2087
    %v2089 = vadd.f32 %v2088, 1.0
    %v2090 = vrcp.pop %v2089
    %v2091 = vtanh.pop %v2083
    %v2092 = vmul.f32 %v2090, %v1861
    %2094 = vrot.lane.b32.xlu0 %v2091, 96
    %v2095 = vpop.permute.xlu0 %2094
    %v2097 = vmul.f32 %v2090, %v2095
    %2099 = vrot.lane.b32.xlu0 %v2097, 16
    %v2100 = vpop.permute.xlu0 %2099
    %v2102 = vadd.f32 %v2092, %v2100
    %v2103 = vtanh.pop %v2102
    %2105 = vrot.lane.b32.xlu0 %v2103, 32
    %v2106 = vpop.permute.xlu0 %2105
    %v2108 = vmul.f32 %v2090, %v2106
    %2110 = vrot.lane.b32.xlu0 %v2108, 80
    %v2111 = vpop.permute.xlu0 %2110
    %v2112 = vsel %vm293, %v2111, 0
    %2114 = vmatprep.subr.mxu0 0.0
    %2115 = vmatpush1.msra.mxu0 %v886
    %2116 = vmatprep.subr.mxu0 0.0
    %2117 = vmatpush1.msra.mxu0 %v887
    %2118 = vmatprep.subr.mxu0 0.0
    %2119 = vmatpush1.msra.mxu0 0.0
    %2120 = vmatprep.subr.mxu0 0.0
    %2121 = vmatpush1.msra.mxu0 0.0
    %2122 = vmatprep.subr.mxu0 0.0
    %2123 = vmatpush1.msra.mxu0 0.0
    %2124 = vmatprep.subr.mxu0 0.0
    %2125 = vmatpush1.msra.mxu0 0.0
    %2126 = vmatprep.subr.mxu0 0.0
    %2127 = vmatpush1.msra.mxu0 0.0
    %2128 = vmatprep.subr.mxu0 0.0
    %2129 = vmatpush1.msra.mxu0 0.0
    %2130 = vmatprep.subr.mxu0 0.0
    %2131 = vmatpush1.msra.mxu0 0.0
    %2132 = vmatprep.subr.mxu0 0.0
    %2133 = vmatpush1.msra.mxu0 0.0
    %2134 = vmatprep.subr.mxu0 0.0
    %2135 = vmatpush1.msra.mxu0 0.0
    %2136 = vmatprep.subr.mxu0 0.0
    %2137 = vmatpush1.msra.mxu0 0.0
    %2138 = vmatprep.subr.mxu0 0.0
    %2139 = vmatpush1.msra.mxu0 0.0
    %2140 = vmatprep.subr.mxu0 0.0
    %2141 = vmatpush1.msra.mxu0 0.0
    %2142 = vmatprep.subr.mxu0 0.0
    %2143 = vmatpush1.msra.mxu0 0.0
    %2144 = vmatprep.subr.mxu0 0.0
    %2145 = vmatpush1.msra.mxu0 0.0
    %2146 = vmatprep.subr.mxu0 0.0
    %2147 = vmatpush1.msra.mxu0 0.0
    %2148 = vmatprep.subr.mxu0 0.0
    %2149 = vmatpush1.msra.mxu0 0.0
    %2150 = vmatprep.subr.mxu0 0.0
    %2151 = vmatpush1.msra.mxu0 0.0
    %2152 = vmatprep.subr.mxu0 0.0
    %2153 = vmatpush1.msra.mxu0 0.0
    %2154 = vmatprep.subr.mxu0 0.0
    %2155 = vmatpush1.msra.mxu0 0.0
    %2156 = vmatprep.subr.mxu0 0.0
    %2157 = vmatpush1.msra.mxu0 0.0
    %2158 = vmatprep.subr.mxu0 0.0
    %2159 = vmatpush1.msra.mxu0 0.0
    %2160 = vmatprep.subr.mxu0 0.0
    %2161 = vmatpush1.msra.mxu0 0.0
    %2162 = vmatprep.subr.mxu0 0.0
    %2163 = vmatpush1.msra.mxu0 0.0
    %2164 = vmatprep.subr.mxu0 0.0
    %2165 = vmatpush1.msra.mxu0 0.0
    %2166 = vmatprep.subr.mxu0 0.0
    %2167 = vmatpush1.msra.mxu0 0.0
    %2168 = vmatprep.subr.mxu0 0.0
    %2169 = vmatpush1.msra.mxu0 0.0
    %2170 = vmatprep.subr.mxu0 0.0
    %2171 = vmatpush1.msra.mxu0 0.0
    %2172 = vmatprep.subr.mxu0 0.0
    %2173 = vmatpush1.msra.mxu0 0.0
    %2174 = vmatprep.subr.mxu0 0.0
    %2175 = vmatpush1.msra.mxu0 0.0
    %2176 = vmatprep.subr.mxu0 0.0
    %2177 = vmatpush1.msra.mxu0 0.0
    %2178 = vmatprep.mubr.f32.mxu0 0.0
    %2179 = vmatmul.mubr.f32.gmra.mrb[0].mxu0 %v2112
    %v2180 = vpop.f32.mrb[0].mxu0
    %v2181 = vadd.f32 %v1621, %v2180
    %v2182 = vpop.f32.mrb[0].mxu0
    %2183 = vdwg.mxu0
    %2184 = vmatprep.subr.mxu0 0.0
    %2185 = vmatpush1.msra.mxu0 %v884
    %2186 = vmatprep.subr.mxu0 0.0
    %2187 = vmatpush1.msra.mxu0 %v885
    %2188 = vmatprep.subr.mxu0 0.0
    %2189 = vmatpush1.msra.mxu0 0.0
    %2190 = vmatprep.subr.mxu0 0.0
    %2191 = vmatpush1.msra.mxu0 0.0
    %2192 = vmatprep.subr.mxu0 0.0
    %2193 = vmatpush1.msra.mxu0 0.0
    %2194 = vmatprep.subr.mxu0 0.0
    %2195 = vmatpush1.msra.mxu0 0.0
    %2196 = vmatprep.subr.mxu0 0.0
    %2197 = vmatpush1.msra.mxu0 0.0
    %2198 = vmatprep.subr.mxu0 0.0
    %2199 = vmatpush1.msra.mxu0 0.0
    %2200 = vmatprep.subr.mxu0 0.0
    %2201 = vmatpush1.msra.mxu0 0.0
    %2202 = vmatprep.subr.mxu0 0.0
    %2203 = vmatpush1.msra.mxu0 0.0
    %2204 = vmatprep.subr.mxu0 0.0
    %2205 = vmatpush1.msra.mxu0 0.0
    %2206 = vmatprep.subr.mxu0 0.0
    %2207 = vmatpush1.msra.mxu0 0.0
    %2208 = vmatprep.subr.mxu0 0.0
    %2209 = vmatpush1.msra.mxu0 0.0
    %2210 = vmatprep.subr.mxu0 0.0
    %2211 = vmatpush1.msra.mxu0 0.0
    %2212 = vmatprep.subr.mxu0 0.0
    %2213 = vmatpush1.msra.mxu0 0.0
    %2214 = vmatprep.subr.mxu0 0.0
    %2215 = vmatpush1.msra.mxu0 0.0
    %2216 = vmatprep.subr.mxu0 0.0
    %2217 = vmatpush1.msra.mxu0 0.0
    %2218 = vmatprep.subr.mxu0 0.0
    %2219 = vmatpush1.msra.mxu0 0.0
    %2220 = vmatprep.subr.mxu0 0.0
    %2221 = vmatpush1.msra.mxu0 0.0
    %2222 = vmatprep.subr.mxu0 0.0
    %2223 = vmatpush1.msra.mxu0 0.0
    %2224 = vmatprep.subr.mxu0 0.0
    %2225 = vmatpush1.msra.mxu0 0.0
    %2226 = vmatprep.subr.mxu0 0.0
    %2227 = vmatpush1.msra.mxu0 0.0
    %2228 = vmatprep.subr.mxu0 0.0
    %2229 = vmatpush1.msra.mxu0 0.0
    %2230 = vmatprep.subr.mxu0 0.0
    %2231 = vmatpush1.msra.mxu0 0.0
    %2232 = vmatprep.subr.mxu0 0.0
    %2233 = vmatpush1.msra.mxu0 0.0
    %2234 = vmatprep.subr.mxu0 0.0
    %2235 = vmatpush1.msra.mxu0 0.0
    %2236 = vmatprep.subr.mxu0 0.0
    %2237 = vmatpush1.msra.mxu0 0.0
    %2238 = vmatprep.subr.mxu0 0.0
    %2239 = vmatpush1.msra.mxu0 0.0
    %2240 = vmatprep.subr.mxu0 0.0
    %2241 = vmatpush1.msra.mxu0 0.0
    %2242 = vmatprep.subr.mxu0 0.0
    %2243 = vmatpush1.msra.mxu0 0.0
    %2244 = vmatprep.subr.mxu0 0.0
    %2245 = vmatpush1.msra.mxu0 0.0
    %2246 = vmatprep.subr.mxu0 0.0
    %2247 = vmatpush1.msra.mxu0 0.0
    %2248 = vmatprep.mubr.f32.mxu0 0.0
    %2249 = vmatmul.mubr.f32.gmra.mrb[0].mxu0 %v2112
    %v2250 = vpop.f32.mrb[0].mxu0
    %v2251 = vadd.f32 0.0, %v2250
    %v2252 = vpop.f32.mrb[0].mxu0
    %2253 = vdwg.mxu0
    %v2255 = vsel %vm214, %v2181, 0
    %2257 = vmatprep.subr.mxu0 0.0
    %2258 = vmatpush1.msra.mxu0 %v883
    %2259 = vmatprep.subr.mxu0 0.0
    %2260 = vmatpush1.msra.mxu0 0.0
    %2261 = vmatprep.subr.mxu0 0.0
    %2262 = vmatpush1.msra.mxu0 0.0
    %2263 = vmatprep.subr.mxu0 0.0
    %2264 = vmatpush1.msra.mxu0 0.0
    %2265 = vmatprep.subr.mxu0 0.0
    %2266 = vmatpush1.msra.mxu0 0.0
    %2267 = vmatprep.subr.mxu0 0.0
    %2268 = vmatpush1.msra.mxu0 0.0
    %2269 = vmatprep.subr.mxu0 0.0
    %2270 = vmatpush1.msra.mxu0 0.0
    %2271 = vmatprep.subr.mxu0 0.0
    %2272 = vmatpush1.msra.mxu0 0.0
    %2273 = vmatprep.subr.mxu0 0.0
    %2274 = vmatpush1.msra.mxu0 0.0
    %2275 = vmatprep.subr.mxu0 0.0
    %2276 = vmatpush1.msra.mxu0 0.0
    %2277 = vmatprep.subr.mxu0 0.0
    %2278 = vmatpush1.msra.mxu0 0.0
    %2279 = vmatprep.subr.mxu0 0.0
    %2280 = vmatpush1.msra.mxu0 0.0
    %2281 = vmatprep.subr.mxu0 0.0
    %2282 = vmatpush1.msra.mxu0 0.0
    %2283 = vmatprep.subr.mxu0 0.0
    %2284 = vmatpush1.msra.mxu0 0.0
    %2285 = vmatprep.subr.mxu0 0.0
    %2286 = vmatpush1.msra.mxu0 0.0
    %2287 = vmatprep.subr.mxu0 0.0
    %2288 = vmatpush1.msra.mxu0 0.0
    %2289 = vmatprep.subr.mxu0 0.0
    %2290 = vmatpush1.msra.mxu0 0.0
    %2291 = vmatprep.subr.mxu0 0.0
    %2292 = vmatpush1.msra.mxu0 0.0
    %2293 = vmatprep.subr.mxu0 0.0
    %2294 = vmatpush1.msra.mxu0 0.0
    %2295 = vmatprep.subr.mxu0 0.0
    %2296 = vmatpush1.msra.mxu0 0.0
    %2297 = vmatprep.subr.mxu0 0.0
    %2298 = vmatpush1.msra.mxu0 0.0
    %2299 = vmatprep.subr.mxu0 0.0
    %2300 = vmatpush1.msra.mxu0 0.0
    %2301 = vmatprep.subr.mxu0 0.0
    %2302 = vmatpush1.msra.mxu0 0.0
    %2303 = vmatprep.subr.mxu0 0.0
    %2304 = vmatpush1.msra.mxu0 0.0
    %2305 = vmatprep.subr.mxu0 0.0
    %2306 = vmatpush1.msra.mxu0 0.0
    %2307 = vmatprep.subr.mxu0 0.0
    %2308 = vmatpush1.msra.mxu0 0.0
    %2309 = vmatprep.subr.mxu0 0.0
    %2310 = vmatpush1.msra.mxu0 0.0
    %2311 = vmatprep.subr.mxu0 0.0
    %2312 = vmatpush1.msra.mxu0 0.0
    %2313 = vmatprep.subr.mxu0 0.0
    %2314 = vmatpush1.msra.mxu0 0.0
    %2315 = vmatprep.subr.mxu0 0.0
    %2316 = vmatpush1.msra.mxu0 0.0
    %2317 = vmatprep.subr.mxu0 0.0
    %2318 = vmatpush1.msra.mxu0 0.0
    %2319 = vmatprep.subr.mxu0 0.0
    %2320 = vmatpush1.msra.mxu0 0.0
    %2321 = vmatprep.mubr.f32.mxu0 0.0
    %2322 = vmatmul.mubr.f32.gmra.mrb[0].mxu0 %v2255
    %v2323 = vpop.f32.mrb[0].mxu0
    %v2324 = vadd.f32 %v2251, %v2323
    %v2325 = vpop.f32.mrb[0].mxu0
    %2326 = vdwg.mxu0
    %v2327 = vsub.f32 0.0, %v2324
    %v2328 = vmul.f32 %v2327, 1.442695
    %v2329 = vpow.pop %v2328
    %v2330 = vadd.f32 %v2329, 1.0
    %v2331 = vrcp.pop %v2330
    %v2332 = vtanh.pop %v2324
    %v2333 = vmul.f32 %v2331, %v2102
    %2335 = vrot.lane.b32.xlu0 %v2332, 96
    %v2336 = vpop.permute.xlu0 %2335
    %v2338 = vmul.f32 %v2331, %v2336
    %2340 = vrot.lane.b32.xlu0 %v2338, 16
    %v2341 = vpop.permute.xlu0 %2340
    %v2343 = vadd.f32 %v2333, %v2341
    %v2344 = vtanh.pop %v2343
    %2346 = vrot.lane.b32.xlu0 %v2344, 32
    %v2347 = vpop.permute.xlu0 %2346
    %v2349 = vmul.f32 %v2331, %v2347
    %2351 = vrot.lane.b32.xlu0 %v2349, 80
    %v2352 = vpop.permute.xlu0 %2351
    %v2353 = vsel %vm293, %v2352, 0
    %2355 = vmatprep.subr.mxu0 0.0
    %2356 = vmatpush1.msra.mxu0 %v886
    %2357 = vmatprep.subr.mxu0 0.0
    %2358 = vmatpush1.msra.mxu0 %v887
    %2359 = vmatprep.subr.mxu0 0.0
    %2360 = vmatpush1.msra.mxu0 0.0
    %2361 = vmatprep.subr.mxu0 0.0
    %2362 = vmatpush1.msra.mxu0 0.0
    %2363 = vmatprep.subr.mxu0 0.0
    %2364 = vmatpush1.msra.mxu0 0.0
    %2365 = vmatprep.subr.mxu0 0.0
    %2366 = vmatpush1.msra.mxu0 0.0
    %2367 = vmatprep.subr.mxu0 0.0
    %2368 = vmatpush1.msra.mxu0 0.0
    %2369 = vmatprep.subr.mxu0 0.0
    %2370 = vmatpush1.msra.mxu0 0.0
    %2371 = vmatprep.subr.mxu0 0.0
    %2372 = vmatpush1.msra.mxu0 0.0
    %2373 = vmatprep.subr.mxu0 0.0
    %2374 = vmatpush1.msra.mxu0 0.0
    %2375 = vmatprep.subr.mxu0 0.0
    %2376 = vmatpush1.msra.mxu0 0.0
    %2377 = vmatprep.subr.mxu0 0.0
    %2378 = vmatpush1.msra.mxu0 0.0
    %2379 = vmatprep.subr.mxu0 0.0
    %2380 = vmatpush1.msra.mxu0 0.0
    %2381 = vmatprep.subr.mxu0 0.0
    %2382 = vmatpush1.msra.mxu0 0.0
    %2383 = vmatprep.subr.mxu0 0.0
    %2384 = vmatpush1.msra.mxu0 0.0
    %2385 = vmatprep.subr.mxu0 0.0
    %2386 = vmatpush1.msra.mxu0 0.0
    %2387 = vmatprep.subr.mxu0 0.0
    %2388 = vmatpush1.msra.mxu0 0.0
    %2389 = vmatprep.subr.mxu0 0.0
    %2390 = vmatpush1.msra.mxu0 0.0
    %2391 = vmatprep.subr.mxu0 0.0
    %2392 = vmatpush1.msra.mxu0 0.0
    %2393 = vmatprep.subr.mxu0 0.0
    %2394 = vmatpush1.msra.mxu0 0.0
    %2395 = vmatprep.subr.mxu0 0.0
    %2396 = vmatpush1.msra.mxu0 0.0
    %2397 = vmatprep.subr.mxu0 0.0
    %2398 = vmatpush1.msra.mxu0 0.0
    %2399 = vmatprep.subr.mxu0 0.0
    %2400 = vmatpush1.msra.mxu0 0.0
    %2401 = vmatprep.subr.mxu0 0.0
    %2402 = vmatpush1.msra.mxu0 0.0
    %2403 = vmatprep.subr.mxu0 0.0
    %2404 = vmatpush1.msra.mxu0 0.0
    %2405 = vmatprep.subr.mxu0 0.0
    %2406 = vmatpush1.msra.mxu0 0.0
    %2407 = vmatprep.subr.mxu0 0.0
    %2408 = vmatpush1.msra.mxu0 0.0
    %2409 = vmatprep.subr.mxu0 0.0
    %2410 = vmatpush1.msra.mxu0 0.0
    %2411 = vmatprep.subr.mxu0 0.0
    %2412 = vmatpush1.msra.mxu0 0.0
    %2413 = vmatprep.subr.mxu0 0.0
    %2414 = vmatpush1.msra.mxu0 0.0
    %2415 = vmatprep.subr.mxu0 0.0
    %2416 = vmatpush1.msra.mxu0 0.0
    %2417 = vmatprep.subr.mxu0 0.0
    %2418 = vmatpush1.msra.mxu0 0.0
    %2419 = vmatprep.mubr.f32.mxu0 0.0
    %2420 = vmatmul.mubr.f32.gmra.mrb[0].mxu0 %v2353
    %v2421 = vpop.f32.mrb[0].mxu0
    %v2422 = vadd.f32 %v1621, %v2421
    %v2423 = vpop.f32.mrb[0].mxu0
    %2424 = vdwg.mxu0
    %2425 = vmatprep.subr.mxu0 0.0
    %2426 = vmatpush1.msra.mxu0 %v884
    %2427 = vmatprep.subr.mxu0 0.0
    %2428 = vmatpush1.msra.mxu0 %v885
    %2429 = vmatprep.subr.mxu0 0.0
    %2430 = vmatpush1.msra.mxu0 0.0
    %2431 = vmatprep.subr.mxu0 0.0
    %2432 = vmatpush1.msra.mxu0 0.0
    %2433 = vmatprep.subr.mxu0 0.0
    %2434 = vmatpush1.msra.mxu0 0.0
    %2435 = vmatprep.subr.mxu0 0.0
    %2436 = vmatpush1.msra.mxu0 0.0
    %2437 = vmatprep.subr.mxu0 0.0
    %2438 = vmatpush1.msra.mxu0 0.0
    %2439 = vmatprep.subr.mxu0 0.0
    %2440 = vmatpush1.msra.mxu0 0.0
    %2441 = vmatprep.subr.mxu0 0.0
    %2442 = vmatpush1.msra.mxu0 0.0
    %2443 = vmatprep.subr.mxu0 0.0
    %2444 = vmatpush1.msra.mxu0 0.0
    %2445 = vmatprep.subr.mxu0 0.0
    %2446 = vmatpush1.msra.mxu0 0.0
    %2447 = vmatprep.subr.mxu0 0.0
    %2448 = vmatpush1.msra.mxu0 0.0
    %2449 = vmatprep.subr.mxu0 0.0
    %2450 = vmatpush1.msra.mxu0 0.0
    %2451 = vmatprep.subr.mxu0 0.0
    %2452 = vmatpush1.msra.mxu0 0.0
    %2453 = vmatprep.subr.mxu0 0.0
    %2454 = vmatpush1.msra.mxu0 0.0
    %2455 = vmatprep.subr.mxu0 0.0
    %2456 = vmatpush1.msra.mxu0 0.0
    %2457 = vmatprep.subr.mxu0 0.0
    %2458 = vmatpush1.msra.mxu0 0.0
    %2459 = vmatprep.subr.mxu0 0.0
    %2460 = vmatpush1.msra.mxu0 0.0
    %2461 = vmatprep.subr.mxu0 0.0
    %2462 = vmatpush1.msra.mxu0 0.0
    %2463 = vmatprep.subr.mxu0 0.0
    %2464 = vmatpush1.msra.mxu0 0.0
    %2465 = vmatprep.subr.mxu0 0.0
    %2466 = vmatpush1.msra.mxu0 0.0
    %2467 = vmatprep.subr.mxu0 0.0
    %2468 = vmatpush1.msra.mxu0 0.0
    %2469 = vmatprep.subr.mxu0 0.0
    %2470 = vmatpush1.msra.mxu0 0.0
    %2471 = vmatprep.subr.mxu0 0.0
    %2472 = vmatpush1.msra.mxu0 0.0
    %2473 = vmatprep.subr.mxu0 0.0
    %2474 = vmatpush1.msra.mxu0 0.0
    %2475 = vmatprep.subr.mxu0 0.0
    %2476 = vmatpush1.msra.mxu0 0.0
    %2477 = vmatprep.subr.mxu0 0.0
    %2478 = vmatpush1.msra.mxu0 0.0
    %2479 = vmatprep.subr.mxu0 0.0
    %2480 = vmatpush1.msra.mxu0 0.0
    %2481 = vmatprep.subr.mxu0 0.0
    %2482 = vmatpush1.msra.mxu0 0.0
    %2483 = vmatprep.subr.mxu0 0.0
    %2484 = vmatpush1.msra.mxu0 0.0
    %2485 = vmatprep.subr.mxu0 0.0
    %2486 = vmatpush1.msra.mxu0 0.0
    %2487 = vmatprep.subr.mxu0 0.0
    %2488 = vmatpush1.msra.mxu0 0.0
    %2489 = vmatprep.mubr.f32.mxu0 0.0
    %2490 = vmatmul.mubr.f32.gmra.mrb[0].mxu0 %v2353
    %v2491 = vpop.f32.mrb[0].mxu0
    %v2492 = vadd.f32 0.0, %v2491
    %v2493 = vpop.f32.mrb[0].mxu0
    %2494 = vdwg.mxu0
    %v2496 = vsel %vm214, %v2422, 0
    %2498 = vmatprep.subr.mxu0 0.0
    %2499 = vmatpush1.msra.mxu0 %v883
    %2500 = vmatprep.subr.mxu0 0.0
    %2501 = vmatpush1.msra.mxu0 0.0
    %2502 = vmatprep.subr.mxu0 0.0
    %2503 = vmatpush1.msra.mxu0 0.0
    %2504 = vmatprep.subr.mxu0 0.0
    %2505 = vmatpush1.msra.mxu0 0.0
    %2506 = vmatprep.subr.mxu0 0.0
    %2507 = vmatpush1.msra.mxu0 0.0
    %2508 = vmatprep.subr.mxu0 0.0
    %2509 = vmatpush1.msra.mxu0 0.0
    %2510 = vmatprep.subr.mxu0 0.0
    %2511 = vmatpush1.msra.mxu0 0.0
    %2512 = vmatprep.subr.mxu0 0.0
    %2513 = vmatpush1.msra.mxu0 0.0
    %2514 = vmatprep.subr.mxu0 0.0
    %2515 = vmatpush1.msra.mxu0 0.0
    %2516 = vmatprep.subr.mxu0 0.0
    %2517 = vmatpush1.msra.mxu0 0.0
    %2518 = vmatprep.subr.mxu0 0.0
    %2519 = vmatpush1.msra.mxu0 0.0
    %2520 = vmatprep.subr.mxu0 0.0
    %2521 = vmatpush1.msra.mxu0 0.0
    %2522 = vmatprep.subr.mxu0 0.0
    %2523 = vmatpush1.msra.mxu0 0.0
    %2524 = vmatprep.subr.mxu0 0.0
    %2525 = vmatpush1.msra.mxu0 0.0
    %2526 = vmatprep.subr.mxu0 0.0
    %2527 = vmatpush1.msra.mxu0 0.0
    %2528 = vmatprep.subr.mxu0 0.0
    %2529 = vmatpush1.msra.mxu0 0.0
    %2530 = vmatprep.subr.mxu0 0.0
    %2531 = vmatpush1.msra.mxu0 0.0
    %2532 = vmatprep.subr.mxu0 0.0
    %2533 = vmatpush1.msra.mxu0 0.0
    %2534 = vmatprep.subr.mxu0 0.0
    %2535 = vmatpush1.msra.mxu0 0.0
    %2536 = vmatprep.subr.mxu0 0.0
    %2537 = vmatpush1.msra.mxu0 0.0
    %2538 = vmatprep.subr.mxu0 0.0
    %2539 = vmatpush1.msra.mxu0 0.0
    %2540 = vmatprep.subr.mxu0 0.0
    %2541 = vmatpush1.msra.mxu0 0.0
    %2542 = vmatprep.subr.mxu0 0.0
    %2543 = vmatpush1.msra.mxu0 0.0
    %2544 = vmatprep.subr.mxu0 0.0
    %2545 = vmatpush1.msra.mxu0 0.0
    %2546 = vmatprep.subr.mxu0 0.0
    %2547 = vmatpush1.msra.mxu0 0.0
    %2548 = vmatprep.subr.mxu0 0.0
    %2549 = vmatpush1.msra.mxu0 0.0
    %2550 = vmatprep.subr.mxu0 0.0
    %2551 = vmatpush1.msra.mxu0 0.0
    %2552 = vmatprep.subr.mxu0 0.0
    %2553 = vmatpush1.msra.mxu0 0.0
    %2554 = vmatprep.subr.mxu0 0.0
    %2555 = vmatpush1.msra.mxu0 0.0
    %2556 = vmatprep.subr.mxu0 0.0
    %2557 = vmatpush1.msra.mxu0 0.0
    %2558 = vmatprep.subr.mxu0 0.0
    %2559 = vmatpush1.msra.mxu0 0.0
    %2560 = vmatprep.subr.mxu0 0.0
    %2561 = vmatpush1.msra.mxu0 0.0
    %2562 = vmatprep.mubr.f32.mxu0 0.0
    %2563 = vmatmul.mubr.f32.gmra.mrb[0].mxu0 %v2496
    %v2564 = vpop.f32.mrb[0].mxu0
    %v2565 = vadd.f32 %v2492, %v2564
    %v2566 = vpop.f32.mrb[0].mxu0
    %2567 = vdwg.mxu0
    %v2568 = vsub.f32 0.0, %v2565
    %v2569 = vmul.f32 %v2568, 1.442695
    %v2570 = vpow.pop %v2569
    %v2571 = vadd.f32 %v2570, 1.0
    %v2572 = vrcp.pop %v2571
    %v2573 = vtanh.pop %v2565
    %v2574 = vmul.f32 %v2572, %v2343
    %2576 = vrot.lane.b32.xlu0 %v2573, 96
    %v2577 = vpop.permute.xlu0 %2576
    %v2579 = vmul.f32 %v2572, %v2577
    %2581 = vrot.lane.b32.xlu0 %v2579, 16
    %v2582 = vpop.permute.xlu0 %2581
    %v2584 = vadd.f32 %v2574, %v2582
    %v2585 = vtanh.pop %v2584
    %2587 = vrot.lane.b32.xlu0 %v2585, 32
    %v2588 = vpop.permute.xlu0 %2587
    %v2590 = vmul.f32 %v2572, %v2588
    %2592 = vrot.lane.b32.xlu0 %v2590, 80
    %v2593 = vpop.permute.xlu0 %2592
    %v2594 = vsel %vm293, %v2593, 0
    %2596 = vmatprep.subr.mxu0 0.0
    %2597 = vmatpush1.msra.mxu0 %v886
    %2598 = vmatprep.subr.mxu0 0.0
    %2599 = vmatpush1.msra.mxu0 %v887
    %2600 = vmatprep.subr.mxu0 0.0
    %2601 = vmatpush1.msra.mxu0 0.0
    %2602 = vmatprep.subr.mxu0 0.0
    %2603 = vmatpush1.msra.mxu0 0.0
    %2604 = vmatprep.subr.mxu0 0.0
    %2605 = vmatpush1.msra.mxu0 0.0
    %2606 = vmatprep.subr.mxu0 0.0
    %2607 = vmatpush1.msra.mxu0 0.0
    %2608 = vmatprep.subr.mxu0 0.0
    %2609 = vmatpush1.msra.mxu0 0.0
    %2610 = vmatprep.subr.mxu0 0.0
    %2611 = vmatpush1.msra.mxu0 0.0
    %2612 = vmatprep.subr.mxu0 0.0
    %2613 = vmatpush1.msra.mxu0 0.0
    %2614 = vmatprep.subr.mxu0 0.0
    %2615 = vmatpush1.msra.mxu0 0.0
    %2616 = vmatprep.subr.mxu0 0.0
    %2617 = vmatpush1.msra.mxu0 0.0
    %2618 = vmatprep.subr.mxu0 0.0
    %2619 = vmatpush1.msra.mxu0 0.0
    %2620 = vmatprep.subr.mxu0 0.0
    %2621 = vmatpush1.msra.mxu0 0.0
    %2622 = vmatprep.subr.mxu0 0.0
    %2623 = vmatpush1.msra.mxu0 0.0
    %2624 = vmatprep.subr.mxu0 0.0
    %2625 = vmatpush1.msra.mxu0 0.0
    %2626 = vmatprep.subr.mxu0 0.0
    %2627 = vmatpush1.msra.mxu0 0.0
    %2628 = vmatprep.subr.mxu0 0.0
    %2629 = vmatpush1.msra.mxu0 0.0
    %2630 = vmatprep.subr.mxu0 0.0
    %2631 = vmatpush1.msra.mxu0 0.0
    %2632 = vmatprep.subr.mxu0 0.0
    %2633 = vmatpush1.msra.mxu0 0.0
    %2634 = vmatprep.subr.mxu0 0.0
    %2635 = vmatpush1.msra.mxu0 0.0
    %2636 = vmatprep.subr.mxu0 0.0
    %2637 = vmatpush1.msra.mxu0 0.0
    %2638 = vmatprep.subr.mxu0 0.0
    %2639 = vmatpush1.msra.mxu0 0.0
    %2640 = vmatprep.subr.mxu0 0.0
    %2641 = vmatpush1.msra.mxu0 0.0
    %2642 = vmatprep.subr.mxu0 0.0
    %2643 = vmatpush1.msra.mxu0 0.0
    %2644 = vmatprep.subr.mxu0 0.0
    %2645 = vmatpush1.msra.mxu0 0.0
    %2646 = vmatprep.subr.mxu0 0.0
    %2647 = vmatpush1.msra.mxu0 0.0
    %2648 = vmatprep.subr.mxu0 0.0
    %2649 = vmatpush1.msra.mxu0 0.0
    %2650 = vmatprep.subr.mxu0 0.0
    %2651 = vmatpush1.msra.mxu0 0.0
    %2652 = vmatprep.subr.mxu0 0.0
    %2653 = vmatpush1.msra.mxu0 0.0
    %2654 = vmatprep.subr.mxu0 0.0
    %2655 = vmatpush1.msra.mxu0 0.0
    %2656 = vmatprep.subr.mxu0 0.0
    %2657 = vmatpush1.msra.mxu0 0.0
    %2658 = vmatprep.subr.mxu0 0.0
    %2659 = vmatpush1.msra.mxu0 0.0
    %2660 = vmatprep.mubr.f32.mxu0 0.0
    %2661 = vmatmul.mubr.f32.gmra.mrb[0].mxu0 %v2594
    %v2662 = vpop.f32.mrb[0].mxu0
    %v2663 = vadd.f32 %v1621, %v2662
    %v2664 = vpop.f32.mrb[0].mxu0
    %2665 = vdwg.mxu0
    %2666 = vmatprep.subr.mxu0 0.0
    %2667 = vmatpush1.msra.mxu0 %v884
    %2668 = vmatprep.subr.mxu0 0.0
    %2669 = vmatpush1.msra.mxu0 %v885
    %2670 = vmatprep.subr.mxu0 0.0
    %2671 = vmatpush1.msra.mxu0 0.0
    %2672 = vmatprep.subr.mxu0 0.0
    %2673 = vmatpush1.msra.mxu0 0.0
    %2674 = vmatprep.subr.mxu0 0.0
    %2675 = vmatpush1.msra.mxu0 0.0
    %2676 = vmatprep.subr.mxu0 0.0
    %2677 = vmatpush1.msra.mxu0 0.0
    %2678 = vmatprep.subr.mxu0 0.0
    %2679 = vmatpush1.msra.mxu0 0.0
    %2680 = vmatprep.subr.mxu0 0.0
    %2681 = vmatpush1.msra.mxu0 0.0
    %2682 = vmatprep.subr.mxu0 0.0
    %2683 = vmatpush1.msra.mxu0 0.0
    %2684 = vmatprep.subr.mxu0 0.0
    %2685 = vmatpush1.msra.mxu0 0.0
    %2686 = vmatprep.subr.mxu0 0.0
    %2687 = vmatpush1.msra.mxu0 0.0
    %2688 = vmatprep.subr.mxu0 0.0
    %2689 = vmatpush1.msra.mxu0 0.0
    %2690 = vmatprep.subr.mxu0 0.0
    %2691 = vmatpush1.msra.mxu0 0.0
    %2692 = vmatprep.subr.mxu0 0.0
    %2693 = vmatpush1.msra.mxu0 0.0
    %2694 = vmatprep.subr.mxu0 0.0
    %2695 = vmatpush1.msra.mxu0 0.0
    %2696 = vmatprep.subr.mxu0 0.0
    %2697 = vmatpush1.msra.mxu0 0.0
    %2698 = vmatprep.subr.mxu0 0.0
    %2699 = vmatpush1.msra.mxu0 0.0
    %2700 = vmatprep.subr.mxu0 0.0
    %2701 = vmatpush1.msra.mxu0 0.0
    %2702 = vmatprep.subr.mxu0 0.0
    %2703 = vmatpush1.msra.mxu0 0.0
    %2704 = vmatprep.subr.mxu0 0.0
    %2705 = vmatpush1.msra.mxu0 0.0
    %2706 = vmatprep.subr.mxu0 0.0
    %2707 = vmatpush1.msra.mxu0 0.0
    %2708 = vmatprep.subr.mxu0 0.0
    %2709 = vmatpush1.msra.mxu0 0.0
    %2710 = vmatprep.subr.mxu0 0.0
    %2711 = vmatpush1.msra.mxu0 0.0
    %2712 = vmatprep.subr.mxu0 0.0
    %2713 = vmatpush1.msra.mxu0 0.0
    %2714 = vmatprep.subr.mxu0 0.0
    %2715 = vmatpush1.msra.mxu0 0.0
    %2716 = vmatprep.subr.mxu0 0.0
    %2717 = vmatpush1.msra.mxu0 0.0
    %2718 = vmatprep.subr.mxu0 0.0
    %2719 = vmatpush1.msra.mxu0 0.0
    %2720 = vmatprep.subr.mxu0 0.0
    %2721 = vmatpush1.msra.mxu0 0.0
    %2722 = vmatprep.subr.mxu0 0.0
    %2723 = vmatpush1.msra.mxu0 0.0
    %2724 = vmatprep.subr.mxu0 0.0
    %2725 = vmatpush1.msra.mxu0 0.0
    %2726 = vmatprep.subr.mxu0 0.0
    %2727 = vmatpush1.msra.mxu0 0.0
    %2728 = vmatprep.subr.mxu0 0.0
    %2729 = vmatpush1.msra.mxu0 0.0
    %2730 = vmatprep.mubr.f32.mxu0 0.0
    %2731 = vmatmul.mubr.f32.gmra.mrb[0].mxu0 %v2594
    %v2732 = vpop.f32.mrb[0].mxu0
    %v2733 = vadd.f32 0.0, %v2732
    %v2734 = vpop.f32.mrb[0].mxu0
    %2735 = vdwg.mxu0
    %v2737 = vsel %vm214, %v2663, 0
    %2739 = vmatprep.subr.mxu0 0.0
    %2740 = vmatpush1.msra.mxu0 %v883
    %2741 = vmatprep.subr.mxu0 0.0
    %2742 = vmatpush1.msra.mxu0 0.0
    %2743 = vmatprep.subr.mxu0 0.0
    %2744 = vmatpush1.msra.mxu0 0.0
    %2745 = vmatprep.subr.mxu0 0.0
    %2746 = vmatpush1.msra.mxu0 0.0
    %2747 = vmatprep.subr.mxu0 0.0
    %2748 = vmatpush1.msra.mxu0 0.0
    %2749 = vmatprep.subr.mxu0 0.0
    %2750 = vmatpush1.msra.mxu0 0.0
    %2751 = vmatprep.subr.mxu0 0.0
    %2752 = vmatpush1.msra.mxu0 0.0
    %2753 = vmatprep.subr.mxu0 0.0
    %2754 = vmatpush1.msra.mxu0 0.0
    %2755 = vmatprep.subr.mxu0 0.0
    %2756 = vmatpush1.msra.mxu0 0.0
    %2757 = vmatprep.subr.mxu0 0.0
    %2758 = vmatpush1.msra.mxu0 0.0
    %2759 = vmatprep.subr.mxu0 0.0
    %2760 = vmatpush1.msra.mxu0 0.0
    %2761 = vmatprep.subr.mxu0 0.0
    %2762 = vmatpush1.msra.mxu0 0.0
    %2763 = vmatprep.subr.mxu0 0.0
    %2764 = vmatpush1.msra.mxu0 0.0
    %2765 = vmatprep.subr.mxu0 0.0
    %2766 = vmatpush1.msra.mxu0 0.0
    %2767 = vmatprep.subr.mxu0 0.0
    %2768 = vmatpush1.msra.mxu0 0.0
    %2769 = vmatprep.subr.mxu0 0.0
    %2770 = vmatpush1.msra.mxu0 0.0
    %2771 = vmatprep.subr.mxu0 0.0
    %2772 = vmatpush1.msra.mxu0 0.0
    %2773 = vmatprep.subr.mxu0 0.0
    %2774 = vmatpush1.msra.mxu0 0.0
    %2775 = vmatprep.subr.mxu0 0.0
    %2776 = vmatpush1.msra.mxu0 0.0
    %2777 = vmatprep.subr.mxu0 0.0
    %2778 = vmatpush1.msra.mxu0 0.0
    %2779 = vmatprep.subr.mxu0 0.0
    %2780 = vmatpush1.msra.mxu0 0.0
    %2781 = vmatprep.subr.mxu0 0.0
    %2782 = vmatpush1.msra.mxu0 0.0
    %2783 = vmatprep.subr.mxu0 0.0
    %2784 = vmatpush1.msra.mxu0 0.0
    %2785 = vmatprep.subr.mxu0 0.0
    %2786 = vmatpush1.msra.mxu0 0.0
    %2787 = vmatprep.subr.mxu0 0.0
    %2788 = vmatpush1.msra.mxu0 0.0
    %2789 = vmatprep.subr.mxu0 0.0
    %2790 = vmatpush1.msra.mxu0 0.0
    %2791 = vmatprep.subr.mxu0 0.0
    %2792 = vmatpush1.msra.mxu0 0.0
    %2793 = vmatprep.subr.mxu0 0.0
    %2794 = vmatpush1.msra.mxu0 0.0
    %2795 = vmatprep.subr.mxu0 0.0
    %2796 = vmatpush1.msra.mxu0 0.0
    %2797 = vmatprep.subr.mxu0 0.0
    %2798 = vmatpush1.msra.mxu0 0.0
    %2799 = vmatprep.subr.mxu0 0.0
    %2800 = vmatpush1.msra.mxu0 0.0
    %2801 = vmatprep.subr.mxu0 0.0
    %2802 = vmatpush1.msra.mxu0 0.0
    %2803 = vmatprep.mubr.f32.mxu0 0.0
    %2804 = vmatmul.mubr.f32.gmra.mrb[0].mxu0 %v2737
    %v2805 = vpop.f32.mrb[0].mxu0
    %v2806 = vadd.f32 %v2733, %v2805
    %v2807 = vpop.f32.mrb[0].mxu0
    %2808 = vdwg.mxu0
    %v2809 = vsub.f32 0.0, %v2806
    %v2810 = vmul.f32 %v2809, 1.442695
    %v2811 = vpow.pop %v2810
    %v2812 = vadd.f32 %v2811, 1.0
    %v2813 = vrcp.pop %v2812
    %v2814 = vtanh.pop %v2806
    %v2815 = vmul.f32 %v2813, %v2584
    %2817 = vrot.lane.b32.xlu0 %v2814, 96
    %v2818 = vpop.permute.xlu0 %2817
    %v2820 = vmul.f32 %v2813, %v2818
    %2822 = vrot.lane.b32.xlu0 %v2820, 16
    %v2823 = vpop.permute.xlu0 %2822
    %v2825 = vadd.f32 %v2815, %v2823
    %v2826 = vtanh.pop %v2825
    %2828 = vrot.lane.b32.xlu0 %v2826, 32
    %v2829 = vpop.permute.xlu0 %2828
    %v2831 = vmul.f32 %v2813, %v2829
    %2833 = vrot.lane.b32.xlu0 %v2831, 80
    %v2834 = vpop.permute.xlu0 %2833
    %v2835 = vsel %vm293, %v2834, 0
    %2837 = vmatprep.subr.mxu0 0.0
    %2838 = vmatpush1.msra.mxu0 %v886
    %2839 = vmatprep.subr.mxu0 0.0
    %2840 = vmatpush1.msra.mxu0 %v887
    %2841 = vmatprep.subr.mxu0 0.0
    %2842 = vmatpush1.msra.mxu0 0.0
    %2843 = vmatprep.subr.mxu0 0.0
    %2844 = vmatpush1.msra.mxu0 0.0
    %2845 = vmatprep.subr.mxu0 0.0
    %2846 = vmatpush1.msra.mxu0 0.0
    %2847 = vmatprep.subr.mxu0 0.0
    %2848 = vmatpush1.msra.mxu0 0.0
    %2849 = vmatprep.subr.mxu0 0.0
    %2850 = vmatpush1.msra.mxu0 0.0
    %2851 = vmatprep.subr.mxu0 0.0
    %2852 = vmatpush1.msra.mxu0 0.0
    %2853 = vmatprep.subr.mxu0 0.0
    %2854 = vmatpush1.msra.mxu0 0.0
    %2855 = vmatprep.subr.mxu0 0.0
    %2856 = vmatpush1.msra.mxu0 0.0
    %2857 = vmatprep.subr.mxu0 0.0
    %2858 = vmatpush1.msra.mxu0 0.0
    %2859 = vmatprep.subr.mxu0 0.0
    %2860 = vmatpush1.msra.mxu0 0.0
    %2861 = vmatprep.subr.mxu0 0.0
    %2862 = vmatpush1.msra.mxu0 0.0
    %2863 = vmatprep.subr.mxu0 0.0
    %2864 = vmatpush1.msra.mxu0 0.0
    %2865 = vmatprep.subr.mxu0 0.0
    %2866 = vmatpush1.msra.mxu0 0.0
    %2867 = vmatprep.subr.mxu0 0.0
    %2868 = vmatpush1.msra.mxu0 0.0
    %2869 = vmatprep.subr.mxu0 0.0
    %2870 = vmatpush1.msra.mxu0 0.0
    %2871 = vmatprep.subr.mxu0 0.0
    %2872 = vmatpush1.msra.mxu0 0.0
    %2873 = vmatprep.subr.mxu0 0.0
    %2874 = vmatpush1.msra.mxu0 0.0
    %2875 = vmatprep.subr.mxu0 0.0
    %2876 = vmatpush1.msra.mxu0 0.0
    %2877 = vmatprep.subr.mxu0 0.0
    %2878 = vmatpush1.msra.mxu0 0.0
    %2879 = vmatprep.subr.mxu0 0.0
    %2880 = vmatpush1.msra.mxu0 0.0
    %2881 = vmatprep.subr.mxu0 0.0
    %2882 = vmatpush1.msra.mxu0 0.0
    %2883 = vmatprep.subr.mxu0 0.0
    %2884 = vmatpush1.msra.mxu0 0.0
    %2885 = vmatprep.subr.mxu0 0.0
    %2886 = vmatpush1.msra.mxu0 0.0
    %2887 = vmatprep.subr.mxu0 0.0
    %2888 = vmatpush1.msra.mxu0 0.0
    %2889 = vmatprep.subr.mxu0 0.0
    %2890 = vmatpush1.msra.mxu0 0.0
    %2891 = vmatprep.subr.mxu0 0.0
    %2892 = vmatpush1.msra.mxu0 0.0
    %2893 = vmatprep.subr.mxu0 0.0
    %2894 = vmatpush1.msra.mxu0 0.0
    %2895 = vmatprep.subr.mxu0 0.0
    %2896 = vmatpush1.msra.mxu0 0.0
    %2897 = vmatprep.subr.mxu0 0.0
    %2898 = vmatpush1.msra.mxu0 0.0
    %2899 = vmatprep.subr.mxu0 0.0
    %2900 = vmatpush1.msra.mxu0 0.0
    %2901 = vmatprep.mubr.f32.mxu0 0.0
    %2902 = vmatmul.mubr.f32.gmra.mrb[0].mxu0 %v2835
    %v2903 = vpop.f32.mrb[0].mxu0
    %v2904 = vadd.f32 %v1621, %v2903
    %v2905 = vpop.f32.mrb[0].mxu0
    %2906 = vdwg.mxu0
    %2907 = vrot.lane.b32.xlu0 %v2663, 8
    %v2908 = vpop.permute.xlu0 %2907
    %2910 = vrot.lane.b32.xlu0 %v2422, 16
    %v2911 = vpop.permute.xlu0 %2910
    %2913 = vrot.lane.b32.xlu0 %v2181, 24
    %v2914 = vpop.permute.xlu0 %2913
    %2916 = vrot.lane.b32.xlu0 %v1940, 32
    %v2917 = vpop.permute.xlu0 %2916
    %2919 = vrot.lane.b32.xlu0 %v1696, 40
    %v2920 = vpop.permute.xlu0 %2919
    %v2922 = vsel %vm214, %v2904, %v2908
    %v2923 = vsel %vm293, %v2922, %v2911
    %v2924 = vsel %vm876, %v2923, %v2914
    %v2925 = vsel %vm155, %v2924, %v2917
    %v2926 = vsel %vm879, %v2925, %v2920
    %v2928 = vrot.slane %v2926, 6
    %v2930 = vsel %vm434, %v880, %v2928
    %v2931 = vld [vmem:[%s9] sm:$0xff]
    %v2932 = vld [vmem:[%s9 + $0x8] sm:$0xff]
    %v2933 = vld [vmem:[%s9 + $0x10] sm:$0xff]
    %v2934 = vld [vmem:[%s9 + $0x18] sm:$0xff]
    %v2935 = vld [vmem:[%s9 + $0x20] sm:$0xff]
    %v2936 = vld [vmem:[%s9 + $0x28] sm:$0xff]
    %v2937 = vld [vmem:[%s10] sm:$0x1]
    %v2939 = vlaneseq
    %v2940 = vshrl.u32 %v2939, 7
    %v2941 = vsub.s32 0, %v2940
    %v2942 = vrot.slane %v2937, %v2941
    %vm2944 = vcmask 392192
    %v2946 = vsel %vm2944, %v2930, 0
    %2948 = vmatprep.subr.mxu0 0.0
    %2949 = vmatpush1.msra.mxu0 %v2931
    %2950 = vmatprep.subr.mxu0 0.0
    %2951 = vmatpush1.msra.mxu0 %v2932
    %2952 = vmatprep.subr.mxu0 0.0
    %2953 = vmatpush1.msra.mxu0 %v2933
    %2954 = vmatprep.subr.mxu0 0.0
    %2955 = vmatpush1.msra.mxu0 %v2934
    %2956 = vmatprep.subr.mxu0 0.0
    %2957 = vmatpush1.msra.mxu0 %v2935
    %2958 = vmatprep.subr.mxu0 0.0
    %2959 = vmatpush1.msra.mxu0 %v2936
    %2960 = vmatprep.subr.mxu0 0.0
    %2961 = vmatpush1.msra.mxu0 0.0
    %2962 = vmatprep.subr.mxu0 0.0
    %2963 = vmatpush1.msra.mxu0 0.0
    %2964 = vmatprep.subr.mxu0 0.0
    %2965 = vmatpush1.msra.mxu0 0.0
    %2966 = vmatprep.subr.mxu0 0.0
    %2967 = vmatpush1.msra.mxu0 0.0
    %2968 = vmatprep.subr.mxu0 0.0
    %2969 = vmatpush1.msra.mxu0 0.0
    %2970 = vmatprep.subr.mxu0 0.0
    %2971 = vmatpush1.msra.mxu0 0.0
    %2972 = vmatprep.subr.mxu0 0.0
    %2973 = vmatpush1.msra.mxu0 0.0
    %2974 = vmatprep.subr.mxu0 0.0
    %2975 = vmatpush1.msra.mxu0 0.0
    %2976 = vmatprep.subr.mxu0 0.0
    %2977 = vmatpush1.msra.mxu0 0.0
    %2978 = vmatprep.subr.mxu0 0.0
    %2979 = vmatpush1.msra.mxu0 0.0
    %2980 = vmatprep.subr.mxu0 0.0
    %2981 = vmatpush1.msra.mxu0 0.0
    %2982 = vmatprep.subr.mxu0 0.0
    %2983 = vmatpush1.msra.mxu0 0.0
    %2984 = vmatprep.subr.mxu0 0.0
    %2985 = vmatpush1.msra.mxu0 0.0
    %2986 = vmatprep.subr.mxu0 0.0
    %2987 = vmatpush1.msra.mxu0 0.0
    %2988 = vmatprep.subr.mxu0 0.0
    %2989 = vmatpush1.msra.mxu0 0.0
    %2990 = vmatprep.subr.mxu0 0.0
    %2991 = vmatpush1.msra.mxu0 0.0
    %2992 = vmatprep.subr.mxu0 0.0
    %2993 = vmatpush1.msra.mxu0 0.0
    %2994 = vmatprep.subr.mxu0 0.0
    %2995 = vmatpush1.msra.mxu0 0.0
    %2996 = vmatprep.subr.mxu0 0.0
    %2997 = vmatpush1.msra.mxu0 0.0
    %2998 = vmatprep.subr.mxu0 0.0
    %2999 = vmatpush1.msra.mxu0 0.0
    %3000 = vmatprep.subr.mxu0 0.0
    %3001 = vmatpush1.msra.mxu0 0.0
    %3002 = vmatprep.subr.mxu0 0.0
    %3003 = vmatpush1.msra.mxu0 0.0
    %3004 = vmatprep.subr.mxu0 0.0
    %3005 = vmatpush1.msra.mxu0 0.0
    %3006 = vmatprep.subr.mxu0 0.0
    %3007 = vmatpush1.msra.mxu0 0.0
    %3008 = vmatprep.subr.mxu0 0.0
    %3009 = vmatpush1.msra.mxu0 0.0
    %3010 = vmatprep.subr.mxu0 0.0
    %3011 = vmatpush1.msra.mxu0 0.0
    %3012 = vmatprep.mubr.f32.mxu0 0.0
    %3013 = vmatmul.mubr.f32.gmra.mrb[0].mxu0 %v2946
    %v3014 = vpop.f32.mrb[0].mxu0
    %v3015 = vadd.f32 %v2942, %v3014
    %v3016 = vpop.f32.mrb[0].mxu0
    %3017 = vdwg.mxu0
    %v3018 = vmax.f32 %v3015, 0.0
    %v3019 = vld [vmem:[%s11] sm:$0xff]
    %v3020 = vld [vmem:[%s11 + $0x8] sm:$0xff]
    %v3021 = vld [vmem:[%s11 + $0x10] sm:$0xff]
    %v3022 = vld [vmem:[%s12] sm:$0x1]
    %v3024 = vlaneseq
    %v3025 = vshrl.u32 %v3024, 7
    %v3026 = vsub.s32 0, %v3025
    %v3027 = vrot.slane %v3022, %v3026
    %v3030 = vsel %vm876, %v3018, 0
    %3032 = vmatprep.subr.mxu0 0.0
    %3033 = vmatpush1.msra.mxu0 %v3019
    %3034 = vmatprep.subr.mxu0 0.0
    %3035 = vmatpush1.msra.mxu0 %v3020
    %3036 = vmatprep.subr.mxu0 0.0
    %3037 = vmatpush1.msra.mxu0 %v3021
    %3038 = vmatprep.subr.mxu0 0.0
    %3039 = vmatpush1.msra.mxu0 0.0
    %3040 = vmatprep.subr.mxu0 0.0
    %3041 = vmatpush1.msra.mxu0 0.0
    %3042 = vmatprep.subr.mxu0 0.0
    %3043 = vmatpush1.msra.mxu0 0.0
    %3044 = vmatprep.subr.mxu0 0.0
    %3045 = vmatpush1.msra.mxu0 0.0
    %3046 = vmatprep.subr.mxu0 0.0
    %3047 = vmatpush1.msra.mxu0 0.0
    %3048 = vmatprep.subr.mxu0 0.0
    %3049 = vmatpush1.msra.mxu0 0.0
    %3050 = vmatprep.subr.mxu0 0.0
    %3051 = vmatpush1.msra.mxu0 0.0
    %3052 = vmatprep.subr.mxu0 0.0
    %3053 = vmatpush1.msra.mxu0 0.0
    %3054 = vmatprep.subr.mxu0 0.0
    %3055 = vmatpush1.msra.mxu0 0.0
    %3056 = vmatprep.subr.mxu0 0.0
    %3057 = vmatpush1.msra.mxu0 0.0
    %3058 = vmatprep.subr.mxu0 0.0
    %3059 = vmatpush1.msra.mxu0 0.0
    %3060 = vmatprep.subr.mxu0 0.0
    %3061 = vmatpush1.msra.mxu0 0.0
    %3062 = vmatprep.subr.mxu0 0.0
    %3063 = vmatpush1.msra.mxu0 0.0
    %3064 = vmatprep.subr.mxu0 0.0
    %3065 = vmatpush1.msra.mxu0 0.0
    %3066 = vmatprep.subr.mxu0 0.0
    %3067 = vmatpush1.msra.mxu0 0.0
    %3068 = vmatprep.subr.mxu0 0.0
    %3069 = vmatpush1.msra.mxu0 0.0
    %3070 = vmatprep.subr.mxu0 0.0
    %3071 = vmatpush1.msra.mxu0 0.0
    %3072 = vmatprep.subr.mxu0 0.0
    %3073 = vmatpush1.msra.mxu0 0.0
    %3074 = vmatprep.subr.mxu0 0.0
    %3075 = vmatpush1.msra.mxu0 0.0
    %3076 = vmatprep.subr.mxu0 0.0
    %3077 = vmatpush1.msra.mxu0 0.0
    %3078 = vmatprep.subr.mxu0 0.0
    %3079 = vmatpush1.msra.mxu0 0.0
    %3080 = vmatprep.subr.mxu0 0.0
    %3081 = vmatpush1.msra.mxu0 0.0
    %3082 = vmatprep.subr.mxu0 0.0
    %3083 = vmatpush1.msra.mxu0 0.0
    %3084 = vmatprep.subr.mxu0 0.0
    %3085 = vmatpush1.msra.mxu0 0.0
    %3086 = vmatprep.subr.mxu0 0.0
    %3087 = vmatpush1.msra.mxu0 0.0
    %3088 = vmatprep.subr.mxu0 0.0
    %3089 = vmatpush1.msra.mxu0 0.0
    %3090 = vmatprep.subr.mxu0 0.0
    %3091 = vmatpush1.msra.mxu0 0.0
    %3092 = vmatprep.subr.mxu0 0.0
    %3093 = vmatpush1.msra.mxu0 0.0
    %3094 = vmatprep.subr.mxu0 0.0
    %3095 = vmatpush1.msra.mxu0 0.0
    %3096 = vmatprep.mubr.f32.mxu0 0.0
    %3097 = vmatmul.mubr.f32.gmra.mrb[0].mxu0 %v3030
    %v3098 = vpop.f32.mrb[0].mxu0
    %v3099 = vadd.f32 %v3027, %v3098
    %v3100 = vpop.f32.mrb[0].mxu0
    %3101 = vdwg.mxu0
    %vm3102 = vcmask 58368
    %3103 = vst.msk [vmem:[#allocation17] sm:$0x3] %vm3102, %v3099
    %vm3104 = vcmask 60418
    %3105 = vst.msk [vmem:[#allocation18 - $0x2] sm:$0xc] %vm3104, %v3099
    // Predicated region
    $region82: #{fwd.1} parent=1 // pred_check
      _
    $region83: #{fwd.1} parent=1 // pred_check_branch
      %3107 = sbr.rel (0) target = $region85
    $region84: #{fwd.1} parent=1 // pred_region
      %s3109 = ssub.s32 32, 32
      %3110 = vsyncadd [#allocation7], %s3109
      %s3112 = sshll.u32 [#allocation17], 4
      %s3113 = int_to_ptr.vmem [resolvable:$true] %s3112
      %3115 = dma.vmem_to_hbm [thread:$0]  %s3113, 32, %s13, [#allocation7]
    $region85: #{fwd.1} parent=1 // pred_fallthru
      _
    // Predicated region
    $region86: #{fwd.1} parent=1 // pred_check
      _
    $region87: #{fwd.1} parent=1 // pred_check_branch
      %3117 = sbr.rel (0) target = $region89
    $region88: #{fwd.1} parent=1 // pred_region
      %s3119 = ssub.s32 32, 32
      %3120 = vsyncadd [#allocation19], %s3119
      %s3122 = sshll.u32 [#allocation18], 4
      %s3123 = int_to_ptr.vmem [resolvable:$true] %s3122
      %3125 = dma.vmem_to_hbm [thread:$0]  %s3123, 32, %s14, [#allocation19]
    $region89: #{fwd.1} parent=1 // pred_fallthru
      _
    // Predicated region
    $region90: #{fwd.1} parent=1 // pred_check
      _
    $region91: #{fwd.1} parent=1 // pred_check_branch
      %3127 = sbr.rel (0) target = $region93
    $region92: #{fwd.1} parent=1 // pred_region
      %3128 = dma.done [#allocation7], 32
    $region93: #{fwd.1} parent=1 // pred_fallthru
      _
    // Predicated region
    $region94: #{fwd.1} parent=1 // pred_check
      _
    $region95: #{fwd.1} parent=1 // pred_check_branch
      %3130 = sbr.rel (0) target = $region97
    $region96: #{fwd.1} parent=1 // pred_region
      %3131 = dma.done [#allocation19], 32
    $region97: #{fwd.1} parent=1 // pred_fallthru
      _
    %3132 = vsyncpa [#allocation6], 1
    %3133 = vsyncpa [#allocation9], 1
    %3134 = vsyncpa [#allocation12], 1
    %3135 = vsyncpa [#allocation15], 1
    %3136 = vsyncpa [#allocation7], 1
    %3137 = vsyncpa [#allocation19], 1

</llo_original>
